<compile_context>
chip_gen: v5e
topology: v5e:2x2
jax: 0.10.0
libtpu: 0.0.40
codegen_flags: <defaults>
</compile_context>

<pallas_src>
import functools

import numpy as np
import jax
import jax.numpy as jnp
from jax import lax
from jax.experimental import pallas as pl
from jax.experimental.pallas import tpu as pltpu

# ----------------------------- configuration (small, synthetic) -----------------------
IMG_SIZE = (16, 16)
PATCH = 4
IN_CH = 3
HISTORY = 2
OUT_CH = 3
EMBED = 32
DEPTH = 2
DEC_DEPTH = 2
HEADS = 4
MLP_RATIO = 4.0
NECK = EMBED          # must equal EMBED for the reference head to be shape-consistent
LN_EPS = 1e-5         # nn.LayerNorm default (block norms)
LN2D_EPS = 1e-6       # LayerNorm2d default (neck norms)


# --------------------------------- in-kernel helpers ----------------------------------
def _ln(x, w, b, eps):
    """LayerNorm over the last dim (rsqrt rides the EUP slot)."""
    mean = jnp.mean(x, axis=-1, keepdims=True)
    xc = x - mean
    var = jnp.mean(xc * xc, axis=-1, keepdims=True)
    return xc * jax.lax.rsqrt(var + eps) * w + b


# TODO(synk): nn.GELU uses exact erf; the tanh-form GELU below (EUP tanh, ~4 VALU ops)
# deviates by <1e-3 relative — acceptable for inference, chosen per perf review.
def _gelu(x):
    c = 0.7978845608028654  # sqrt(2/pi)
    return 0.5 * x * (1.0 + jnp.tanh(c * (x + 0.044715 * x * x * x)))


# ----------------------------------- fused Pallas kernel ------------------------------
def _fused_kernel(x_ref, wpe_ref, posb_ref,
                  n1w_ref, n1b_ref,
                  qw_ref, qb_ref, kw_ref, kb_ref, vw_ref, vb_ref,
                  pw_ref, pb_ref,
                  n2w_ref, n2b_ref,
                  f1w_ref, f1b_ref, f2w_ref, f2b_ref,
                  w1_ref, g1_ref, b1_ref,
                  sm_ref, w2_ref, g2_ref, b2_ref,
                  hw_ref, hb_ref, hfw_ref, hfb_ref,
                  o_ref, *, depth, heads, dec_depth):
    """Entire SAM-ViT forward for one batch element, fully resident in VMEM/vregs."""
    f32 = jnp.float32
    bf16 = jnp.bfloat16

    # --- patch embed: im2col matmul + (conv bias + abs pos embed, pre-summed) ---
    tok = jnp.dot(x_ref[...].astype(bf16), wpe_ref[...],
                  preferred_element_type=f32) + posb_ref[...]          # (Ntok, D) f32

    # --- transformer blocks (statically unrolled; weights indexed per block/head) ---
    for d in range(depth):
        xn = _ln(tok, n1w_ref[d], n1b_ref[d], LN_EPS)
        xnb = xn.astype(bf16)
        attn = None
        for h in range(heads):
            # per-head weight slabs: static leading-index ref views (no activation slicing)
            q = jnp.dot(xnb, qw_ref[d, h], preferred_element_type=f32) + qb_ref[d, h]
            k = jnp.dot(xnb, kw_ref[d, h], preferred_element_type=f32) + kb_ref[d, h]
            v = jnp.dot(xnb, vw_ref[d, h], preferred_element_type=f32) + vb_ref[d, h]
            s = lax.dot_general(q.astype(bf16), k.astype(bf16),
                                (((1,), (1,)), ((), ())),
                                preferred_element_type=f32)            # (Ntok, Ntok)
            s = s - jnp.max(s, axis=-1, keepdims=True)
            p = jnp.exp(s)
            p = p * pl.reciprocal(jnp.sum(p, axis=-1, keepdims=True), approx=True)
            o_h = jnp.dot(p.astype(bf16), v.astype(bf16),
                          preferred_element_type=f32)                  # (Ntok, dh)
            # fold output projection into the head loop (avoids lane-dim concat)
            c = jnp.dot(o_h.astype(bf16), pw_ref[d, h], preferred_element_type=f32)
            attn = c if attn is None else attn + c
        tok = tok + attn + pb_ref[d]

        xn2 = _ln(tok, n2w_ref[d], n2b_ref[d], LN_EPS)
        h1 = jnp.dot(xn2.astype(bf16), f1w_ref[d],
                     preferred_element_type=f32) + f1b_ref[d]
        h1 = _gelu(h1)
        tok = tok + jnp.dot(h1.astype(bf16), f2w_ref[d],
                            preferred_element_type=f32) + f2b_ref[d]

    # --- neck part 1: 1x1 conv (no bias) + LayerNorm2d ---
    y1 = _ln(jnp.dot(tok.astype(bf16), w1_ref[...], preferred_element_type=f32),
             g1_ref[...], b1_ref[...], LN2D_EPS)                       # (Ntok, NECK)

    # --- neck part 2: 3x3 conv (padding=1, no bias), im2col done in-kernel via 9
    #     precomputed 0/1 shift matrices (zero-padding encoded as all-zero rows) ---
    y1b = y1.astype(bf16)
    acc = None
    for idx in range(9):
        g = jnp.dot(sm_ref[idx], y1b, preferred_element_type=f32)       # shifted rows
        g = jnp.dot(g.astype(bf16), w2_ref[idx], preferred_element_type=f32)
        acc = g if acc is None else acc + g
    y2 = _ln(acc, g2_ref[...], b2_ref[...], LN2D_EPS)                   # (Ntok, NECK)

    # --- decoder head: (Linear + GELU) * dec_depth, then final Linear ---
    y = y2
    for i in range(dec_depth):
        y = _gelu(jnp.dot(y.astype(bf16), hw_ref[i],
                          preferred_element_type=f32) + hb_ref[i])
    o_ref[...] = jnp.dot(y.astype(bf16), hfw_ref[...],
                         preferred_element_type=f32) + hfb_ref[...]


# ------------------------------- pallas_call wrapper ----------------------------------
def _full_spec(shape):
    n = len(shape)
    return pl.BlockSpec(tuple(shape), lambda b, _n=n: (0,) * _n)


def _batch_spec(feat_shape):
    n = len(feat_shape)
    return pl.BlockSpec((None,) + tuple(feat_shape), lambda b, _n=n: (b,) + (0,) * _n)


def _cost_numbers(B, Ntok, Cpp, NO, args):
    D, dh, hid = EMBED, EMBED // HEADS, int(EMBED * MLP_RATIO)
    blk = (2 * Ntok * D * dh * 3 * HEADS        # q/k/v projections
           + 2 * Ntok * Ntok * dh * 2 * HEADS   # q@k^T and p@v
           + 2 * Ntok * dh * D * HEADS          # per-head output projection
           + 2 * Ntok * D * hid * 2)            # MLP fc1 + fc2
    per_b = (2 * Ntok * Cpp * D
             + DEPTH * blk
             + 2 * Ntok * D * NECK
             + 9 * (2 * Ntok * Ntok * NECK + 2 * Ntok * NECK * NECK)
             + DEC_DEPTH * 2 * Ntok * D * D
             + 2 * Ntok * D * NO)
    trans = B * (DEPTH * HEADS * Ntok * Ntok    # softmax exp
                 + DEPTH * Ntok * hid           # GELU (MLP)
                 + DEC_DEPTH * Ntok * D)        # GELU (head)
    byt = sum(int(a.size) * a.dtype.itemsize for a in args) + B * Ntok * NO * 4
    return int(B * per_b), int(trans), int(byt)


def fused_forward_call(xp, w):
    B, Ntok, Cpp = xp.shape
    NO = w["hf_w"].shape[1]
    args = (xp, w["wpe"], w["posb"],
            w["n1w"], w["n1b"],
            w["qw"], w["qb"], w["kw"], w["kb"], w["vw"], w["vb"],
            w["pw"], w["pb"], w["n2w"], w["n2b"],
            w["f1w"], w["f1b"], w["f2w"], w["f2b"],
            w["w1"], w["g1"], w["b1"],
            w["sm"], w["w2"], w["g2"], w["b2"],
            w["hw"], w["hb"], w["hf_w"], w["hf_b"])
    in_specs = [_batch_spec((Ntok, Cpp))] + [_full_spec(a.shape) for a in args[1:]]
    kernel = functools.partial(_fused_kernel, depth=DEPTH, heads=HEADS,
                               dec_depth=DEC_DEPTH)
    flops, trans, byt = _cost_numbers(B, Ntok, Cpp, NO, args)
    return pl.pallas_call(
        kernel,
        grid=(B,),
        in_specs=in_specs,
        out_specs=_batch_spec((Ntok, NO)),
        out_shape=jax.ShapeDtypeStruct((B, Ntok, NO), jnp.float32),
        compiler_params=pltpu.CompilerParams(dimension_semantics=("parallel",)),
        cost_estimate=pl.CostEstimate(flops=flops, transcendentals=trans,
                                      bytes_accessed=byt),
    )(*args)


# ------------------------------------- parameters -------------------------------------
def init_params(key):
    keys = iter(jax.random.split(key, 64))

    def nrm(shape, s=0.02):
        return jax.random.normal(next(keys), shape, jnp.float32) * s

    Hp, Wp = IMG_SIZE[0] // PATCH, IMG_SIZE[1] // PATCH
    hid = int(EMBED * MLP_RATIO)
    params = {
        "patch_w": nrm((EMBED, IN_CH * HISTORY, PATCH, PATCH)),   # Conv2d weight (D,C,p,p)
        "patch_b": nrm((EMBED,)),
        "pos_embed": nrm((1, Hp, Wp, EMBED)),
    }
    blocks = []
    for _ in range(DEPTH):
        blocks.append(
            dict(
                norm1_w=jnp.ones((EMBED,), jnp.float32),
                norm1_b=jnp.zeros((EMBED,), jnp.float32),
                qkv_w=nrm((EMBED, 3 * EMBED)),
                qkv_b=nrm((3 * EMBED,)),
                proj_w=nrm((EMBED, EMBED)),
                proj_b=nrm((EMBED,)),
                norm2_w=jnp.ones((EMBED,), jnp.float32),
                norm2_b=jnp.zeros((EMBED,), jnp.float32),
                fc1_w=nrm((EMBED, hid)),
                fc1_b=nrm((hid,)),
                fc2_w=nrm((hid, EMBED)),
                fc2_b=nrm((EMBED,)),
            )
        )
    params["blocks"] = blocks
    params["neck_conv1_w"] = nrm((EMBED, NECK))          # 1x1 conv as (Cin, Cout) matmul
    params["neck_ln1_w"] = jnp.ones((NECK,), jnp.float32)
    params["neck_ln1_b"] = jnp.zeros((NECK,), jnp.float32)
    params["neck_conv2_w"] = nrm((NECK, NECK, 3, 3))     # Conv2d weight (Cout,Cin,3,3)
    params["neck_ln2_w"] = jnp.ones((NECK,), jnp.float32)
    params["neck_ln2_b"] = jnp.zeros((NECK,), jnp.float32)
    params["head_hidden"] = [(nrm((EMBED, EMBED)), nrm((EMBED,))) for _ in range(DEC_DEPTH)]
    params["head_final"] = (
        nrm((EMBED, OUT_CH * PATCH * PATCH)),
        nrm((OUT_CH * PATCH * PATCH,)),
    )
    return params


def _shift_matrices(Hp, Wp):
    """9 (Ntok, Ntok) 0/1 matrices implementing the padded 3x3 spatial gather."""
    Ntok = Hp * Wp
    mats = np.zeros((9, Ntok, Ntok), np.float32)
    for kh in range(3):
        for kw in range(3):
            idx = kh * 3 + kw
            for h in range(Hp):
                for w in range(Wp):
                    hh, ww = h + kh - 1, w + kw - 1
                    if 0 <= hh < Hp and 0 <= ww < Wp:
                        mats[idx, h * Wp + w, hh * Wp + ww] = 1.0
    return jnp.asarray(mats, dtype=jnp.bfloat16)   # 0/1 exact in bf16


def prepare_params(params):
    """One-time host-side repack: per-head weight slabs, bf16 matmul operands,
    scale folded into q, patch-bias folded into pos-embed, 3x3 shift matrices."""
    D = EMBED
    dh = D // HEADS
    hid = int(D * MLP_RATIO)
    Hp, Wp = IMG_SIZE[0] // PATCH, IMG_SIZE[1] // PATCH
    Ntok = Hp * Wp
    NO = OUT_CH * PATCH * PATCH
    scale = dh ** -0.5
    bf, f32 = jnp.bfloat16, jnp.float32
    blks = params["blocks"]

    def stk(fn, dtype):
        return jnp.stack([fn(b) for b in blks], axis=0).astype(dtype)

    def head_w(b, i):   # qkv_w is (D, 3D) ordered (q|k|v) x (head-major, dh)
        return b["qkv_w"][:, i * D:(i + 1) * D].reshape(D, HEADS, dh).transpose(1, 0, 2)

    def head_b(b, i):
        return b["qkv_b"][i * D:(i + 1) * D].reshape(HEADS, 1, dh)

    w = {
        "wpe": params["patch_w"].reshape(D, -1).T.astype(bf),                 # (Cpp, D)
        "posb": (params["pos_embed"].reshape(Ntok, D)
                 + params["patch_b"].reshape(1, D)).astype(f32),
        "n1w": stk(lambda b: b["norm1_w"].reshape(1, D), f32),
        "n1b": stk(lambda b: b["norm1_b"].reshape(1, D), f32),
        "qw": stk(lambda b: head_w(b, 0) * scale, bf),                        # scale folded
        "qb": stk(lambda b: head_b(b, 0) * scale, f32),
        "kw": stk(lambda b: head_w(b, 1), bf),
        "kb": stk(lambda b: head_b(b, 1), f32),
        "vw": stk(lambda b: head_w(b, 2), bf),
        "vb": stk(lambda b: head_b(b, 2), f32),
        "pw": stk(lambda b: b["proj_w"].reshape(HEADS, dh, D), bf),
        "pb": stk(lambda b: b["proj_b"].reshape(1, D), f32),
        "n2w": stk(lambda b: b["norm2_w"].reshape(1, D), f32),
        "n2b": stk(lambda b: b["norm2_b"].reshape(1, D), f32),
        "f1w": stk(lambda b: b["fc1_w"], bf),
        "f1b": stk(lambda b: b["fc1_b"].reshape(1, hid), f32),
        "f2w": stk(lambda b: b["fc2_w"], bf),
        "f2b": stk(lambda b: b["fc2_b"].reshape(1, D), f32),
        "w1": params["neck_conv1_w"].astype(bf),
        "g1": params["neck_ln1_w"].reshape(1, NECK).astype(f32),
        "b1": params["neck_ln1_b"].reshape(1, NECK).astype(f32),
        "sm": _shift_matrices(Hp, Wp),                                        # (9,Ntok,Ntok)
        "w2": params["neck_conv2_w"].transpose(2, 3, 1, 0).reshape(9, NECK, NECK).astype(bf),
        "g2": params["neck_ln2_w"].reshape(1, NECK).astype(f32),
        "b2": params["neck_ln2_b"].reshape(1, NECK).astype(f32),
        "hw": jnp.stack([hw for hw, _ in params["head_hidden"]], 0).astype(bf),
        "hb": jnp.stack([hb.reshape(1, D) for _, hb in params["head_hidden"]], 0).astype(f32),
        "hf_w": params["head_final"][0].astype(bf),
        "hf_b": params["head_final"][1].reshape(1, NO).astype(f32),
    }
    return w


# ------------------------------------- forward ----------------------------------------
def forward(prepared, x):
    # x: (B, T, C, H, W) or (B, C*T, H, W), NCHW like the PyTorch module.
    if x.ndim == 5:
        B, T, C, H, W = x.shape
        x = x.reshape(B, T * C, H, W)
    B, C, H, W = x.shape
    p = PATCH
    Hp, Wp = H // p, W // p
    Ntok = Hp * Wp

    # patch-embed im2col (layout-only glue); everything else runs in the fused kernel.
    xp = (
        x.reshape(B, C, Hp, p, Wp, p)
        .transpose(0, 2, 4, 1, 3, 5)                    # (B, Hp, Wp, C, p, p)
        .reshape(B, Ntok, C * p * p)
    )

    h = fused_forward_call(xp, prepared)                # (B, Ntok, OUT_CH*p*p)

    # unpatchify: (B, Hp, Wp, p, p, c) -> (B, c, H, W)  (matches reference einsum)
    h = h.reshape(B, Hp, Wp, p, p, OUT_CH)
    h = jnp.einsum("nhwpqc->nchpwq", h)
    preds = h.reshape(B, OUT_CH, Hp * p, Wp * p)
    return preds


# --------------------------------------- main ------------------------------------------
if __name__ == "__main__":
    key = jax.random.PRNGKey(0)
    pkey, xkey = jax.random.split(key)
    params = init_params(pkey)
    prepared = prepare_params(params)
    x = jax.random.normal(
        xkey, (2, HISTORY, IN_CH, IMG_SIZE[0], IMG_SIZE[1]), jnp.float32
    )
    preds = jax.jit(forward)(prepared, x)
    jax.block_until_ready(preds)
    assert preds.shape == (2, OUT_CH, IMG_SIZE[0], IMG_SIZE[1])
    assert bool(jnp.all(jnp.isfinite(preds)))
    print("KERNEL_OK")
</pallas_src>

<mosaic_0001>
module attributes {stable_mosaic.version = 11 : i64} {
  func.func @_fused_kernel(%arg0: i32, %arg1: memref<1x16x96xf32, #tpu.memory_space<vmem>>, %arg2: memref<96x32xbf16, #tpu.memory_space<vmem>>, %arg3: memref<16x32xf32, #tpu.memory_space<vmem>>, %arg4: memref<2x1x32xf32, #tpu.memory_space<vmem>>, %arg5: memref<2x1x32xf32, #tpu.memory_space<vmem>>, %arg6: memref<2x4x32x8xbf16, #tpu.memory_space<vmem>>, %arg7: memref<2x4x1x8xf32, #tpu.memory_space<vmem>>, %arg8: memref<2x4x32x8xbf16, #tpu.memory_space<vmem>>, %arg9: memref<2x4x1x8xf32, #tpu.memory_space<vmem>>, %arg10: memref<2x4x32x8xbf16, #tpu.memory_space<vmem>>, %arg11: memref<2x4x1x8xf32, #tpu.memory_space<vmem>>, %arg12: memref<2x4x8x32xbf16, #tpu.memory_space<vmem>>, %arg13: memref<2x1x32xf32, #tpu.memory_space<vmem>>, %arg14: memref<2x1x32xf32, #tpu.memory_space<vmem>>, %arg15: memref<2x1x32xf32, #tpu.memory_space<vmem>>, %arg16: memref<2x32x128xbf16, #tpu.memory_space<vmem>>, %arg17: memref<2x1x128xf32, #tpu.memory_space<vmem>>, %arg18: memref<2x128x32xbf16, #tpu.memory_space<vmem>>, %arg19: memref<2x1x32xf32, #tpu.memory_space<vmem>>, %arg20: memref<32x32xbf16, #tpu.memory_space<vmem>>, %arg21: memref<1x32xf32, #tpu.memory_space<vmem>>, %arg22: memref<1x32xf32, #tpu.memory_space<vmem>>, %arg23: memref<9x16x16xbf16, #tpu.memory_space<vmem>>, %arg24: memref<9x32x32xbf16, #tpu.memory_space<vmem>>, %arg25: memref<1x32xf32, #tpu.memory_space<vmem>>, %arg26: memref<1x32xf32, #tpu.memory_space<vmem>>, %arg27: memref<2x32x32xbf16, #tpu.memory_space<vmem>>, %arg28: memref<2x1x32xf32, #tpu.memory_space<vmem>>, %arg29: memref<32x48xbf16, #tpu.memory_space<vmem>>, %arg30: memref<1x48xf32, #tpu.memory_space<vmem>>, %arg31: memref<1x16x48xf32, #tpu.memory_space<vmem>>) attributes {dimension_semantics = [#tpu.dimension_semantics<parallel>], iteration_bounds = array<i64: 2>, scalar_prefetch = 0 : i64, scratch_operands = 0 : i64, tpu.core_type = #tpu.core_type<tc>, window_params = [{transform_indices = @transform_0, window_bounds = array<i64: 1, 16, 96>}, {pipeline_mode = #tpu.pipeline_mode<synchronous>, transform_indices = @transform_1, window_bounds = array<i64: 96, 32>}, {pipeline_mode = #tpu.pipeline_mode<synchronous>, transform_indices = @transform_2, window_bounds = array<i64: 16, 32>}, {pipeline_mode = #tpu.pipeline_mode<synchronous>, transform_indices = @transform_3, window_bounds = array<i64: 2, 1, 32>}, {pipeline_mode = #tpu.pipeline_mode<synchronous>, transform_indices = @transform_4, window_bounds = array<i64: 2, 1, 32>}, {pipeline_mode = #tpu.pipeline_mode<synchronous>, transform_indices = @transform_5, window_bounds = array<i64: 2, 4, 32, 8>}, {pipeline_mode = #tpu.pipeline_mode<synchronous>, transform_indices = @transform_6, window_bounds = array<i64: 2, 4, 1, 8>}, {pipeline_mode = #tpu.pipeline_mode<synchronous>, transform_indices = @transform_7, window_bounds = array<i64: 2, 4, 32, 8>}, {pipeline_mode = #tpu.pipeline_mode<synchronous>, transform_indices = @transform_8, window_bounds = array<i64: 2, 4, 1, 8>}, {pipeline_mode = #tpu.pipeline_mode<synchronous>, transform_indices = @transform_9, window_bounds = array<i64: 2, 4, 32, 8>}, {pipeline_mode = #tpu.pipeline_mode<synchronous>, transform_indices = @transform_10, window_bounds = array<i64: 2, 4, 1, 8>}, {pipeline_mode = #tpu.pipeline_mode<synchronous>, transform_indices = @transform_11, window_bounds = array<i64: 2, 4, 8, 32>}, {pipeline_mode = #tpu.pipeline_mode<synchronous>, transform_indices = @transform_12, window_bounds = array<i64: 2, 1, 32>}, {pipeline_mode = #tpu.pipeline_mode<synchronous>, transform_indices = @transform_13, window_bounds = array<i64: 2, 1, 32>}, {pipeline_mode = #tpu.pipeline_mode<synchronous>, transform_indices = @transform_14, window_bounds = array<i64: 2, 1, 32>}, {pipeline_mode = #tpu.pipeline_mode<synchronous>, transform_indices = @transform_15, window_bounds = array<i64: 2, 32, 128>}, {pipeline_mode = #tpu.pipeline_mode<synchronous>, transform_indices = @transform_16, window_bounds = array<i64: 2, 1, 128>}, {pipeline_mode = #tpu.pipeline_mode<synchronous>, transform_indices = @transform_17, window_bounds = array<i64: 2, 128, 32>}, {pipeline_mode = #tpu.pipeline_mode<synchronous>, transform_indices = @transform_18, window_bounds = array<i64: 2, 1, 32>}, {pipeline_mode = #tpu.pipeline_mode<synchronous>, transform_indices = @transform_19, window_bounds = array<i64: 32, 32>}, {pipeline_mode = #tpu.pipeline_mode<synchronous>, transform_indices = @transform_20, window_bounds = array<i64: 1, 32>}, {pipeline_mode = #tpu.pipeline_mode<synchronous>, transform_indices = @transform_21, window_bounds = array<i64: 1, 32>}, {pipeline_mode = #tpu.pipeline_mode<synchronous>, transform_indices = @transform_22, window_bounds = array<i64: 9, 16, 16>}, {pipeline_mode = #tpu.pipeline_mode<synchronous>, transform_indices = @transform_23, window_bounds = array<i64: 9, 32, 32>}, {pipeline_mode = #tpu.pipeline_mode<synchronous>, transform_indices = @transform_24, window_bounds = array<i64: 1, 32>}, {pipeline_mode = #tpu.pipeline_mode<synchronous>, transform_indices = @transform_25, window_bounds = array<i64: 1, 32>}, {pipeline_mode = #tpu.pipeline_mode<synchronous>, transform_indices = @transform_26, window_bounds = array<i64: 2, 32, 32>}, {pipeline_mode = #tpu.pipeline_mode<synchronous>, transform_indices = @transform_27, window_bounds = array<i64: 2, 1, 32>}, {pipeline_mode = #tpu.pipeline_mode<synchronous>, transform_indices = @transform_28, window_bounds = array<i64: 32, 48>}, {pipeline_mode = #tpu.pipeline_mode<synchronous>, transform_indices = @transform_29, window_bounds = array<i64: 1, 48>}, {transform_indices = @transform_30, window_bounds = array<i64: 1, 16, 48>}]} {
    %c0 = arith.constant 0 : index
    %c0_0 = arith.constant 0 : index
    %c0_1 = arith.constant 0 : index
    %0 = vector.load %arg1[%c0, %c0_0, %c0_1] : memref<1x16x96xf32, #tpu.memory_space<vmem>>, vector<1x16x96xf32>
    %1 = vector.shape_cast %0 : vector<1x16x96xf32> to vector<16x96xf32>
    %2 = arith.truncf %1 : vector<16x96xf32> to vector<16x96xbf16>
    %c0_2 = arith.constant 0 : index
    %c0_3 = arith.constant 0 : index
    %3 = vector.load %arg2[%c0_2, %c0_3] : memref<96x32xbf16, #tpu.memory_space<vmem>>, vector<96x32xbf16>
    %cst = arith.constant dense<0.000000e+00> : vector<16x32xf32>
    %4 = tpu.matmul %2, %3, %cst {dimension_numbers = #tpu.dot_dimension_numbers<[1], [0], [0], [1], [0, 0, 1, 1], [], []>} : vector<16x96xbf16>, vector<96x32xbf16>, vector<16x32xf32> -> vector<16x32xf32>
    %c0_4 = arith.constant 0 : index
    %c0_5 = arith.constant 0 : index
    %5 = vector.load %arg3[%c0_4, %c0_5] : memref<16x32xf32, #tpu.memory_space<vmem>>, vector<16x32xf32>
    %6 = arith.addf %4, %5 : vector<16x32xf32>
    %c0_6 = arith.constant 0 : index
    %c0_7 = arith.constant 0 : index
    %c0_8 = arith.constant 0 : index
    %7 = vector.load %arg4[%c0_6, %c0_7, %c0_8] : memref<2x1x32xf32, #tpu.memory_space<vmem>>, vector<1x1x32xf32>
    %8 = vector.shape_cast %7 : vector<1x1x32xf32> to vector<1x32xf32>
    %c0_9 = arith.constant 0 : index
    %c0_10 = arith.constant 0 : index
    %c0_11 = arith.constant 0 : index
    %9 = vector.load %arg5[%c0_9, %c0_10, %c0_11] : memref<2x1x32xf32, #tpu.memory_space<vmem>>, vector<1x1x32xf32>
    %10 = vector.shape_cast %9 : vector<1x1x32xf32> to vector<1x32xf32>
    %cst_12 = arith.constant dense<0.000000e+00> : vector<16xf32>
    %11 = vector.multi_reduction <add>, %6, %cst_12 [1] : vector<16x32xf32> to vector<16xf32>
    %12 = vector.shape_cast %11 : vector<16xf32> to vector<16x1xf32>
    %cst_13 = arith.constant 3.200000e+01 : f32
    %13 = vector.broadcast %cst_13 : f32 to vector<16x1xf32>
    %14 = arith.divf %12, %13 : vector<16x1xf32>
    %15 = vector.broadcast %14 : vector<16x1xf32> to vector<16x32xf32>
    %16 = arith.subf %6, %15 : vector<16x32xf32>
    %17 = arith.mulf %16, %16 : vector<16x32xf32>
    %cst_14 = arith.constant dense<0.000000e+00> : vector<16xf32>
    %18 = vector.multi_reduction <add>, %17, %cst_14 [1] : vector<16x32xf32> to vector<16xf32>
    %19 = vector.shape_cast %18 : vector<16xf32> to vector<16x1xf32>
    %cst_15 = arith.constant 3.200000e+01 : f32
    %20 = vector.broadcast %cst_15 : f32 to vector<16x1xf32>
    %21 = arith.divf %19, %20 : vector<16x1xf32>
    %cst_16 = arith.constant 9.99999974E-6 : f32
    %22 = vector.broadcast %cst_16 : f32 to vector<16x1xf32>
    %23 = arith.addf %21, %22 : vector<16x1xf32>
    %24 = math.rsqrt %23 : vector<16x1xf32>
    %25 = vector.broadcast %24 : vector<16x1xf32> to vector<16x32xf32>
    %26 = arith.mulf %16, %25 : vector<16x32xf32>
    %27 = vector.broadcast %8 : vector<1x32xf32> to vector<16x32xf32>
    %28 = arith.mulf %26, %27 : vector<16x32xf32>
    %29 = vector.broadcast %10 : vector<1x32xf32> to vector<16x32xf32>
    %30 = arith.addf %28, %29 : vector<16x32xf32>
    %31 = arith.truncf %30 : vector<16x32xf32> to vector<16x32xbf16>
    %c0_17 = arith.constant 0 : index
    %c0_18 = arith.constant 0 : index
    %c0_19 = arith.constant 0 : index
    %c0_20 = arith.constant 0 : index
    %32 = vector.load %arg6[%c0_17, %c0_18, %c0_19, %c0_20] : memref<2x4x32x8xbf16, #tpu.memory_space<vmem>>, vector<1x1x32x8xbf16>
    %33 = vector.shape_cast %32 : vector<1x1x32x8xbf16> to vector<32x8xbf16>
    %cst_21 = arith.constant dense<0.000000e+00> : vector<16x8xf32>
    %34 = tpu.matmul %31, %33, %cst_21 {dimension_numbers = #tpu.dot_dimension_numbers<[1], [0], [0], [1], [0, 0, 1, 1], [], []>} : vector<16x32xbf16>, vector<32x8xbf16>, vector<16x8xf32> -> vector<16x8xf32>
    %c0_22 = arith.constant 0 : index
    %c0_23 = arith.constant 0 : index
    %c0_24 = arith.constant 0 : index
    %c0_25 = arith.constant 0 : index
    %35 = vector.load %arg7[%c0_22, %c0_23, %c0_24, %c0_25] : memref<2x4x1x8xf32, #tpu.memory_space<vmem>>, vector<1x1x1x8xf32>
    %36 = vector.shape_cast %35 : vector<1x1x1x8xf32> to vector<1x8xf32>
    %37 = vector.broadcast %36 : vector<1x8xf32> to vector<16x8xf32>
    %38 = arith.addf %34, %37 : vector<16x8xf32>
    %c0_26 = arith.constant 0 : index
    %c0_27 = arith.constant 0 : index
    %c0_28 = arith.constant 0 : index
    %c0_29 = arith.constant 0 : index
    %39 = vector.load %arg8[%c0_26, %c0_27, %c0_28, %c0_29] : memref<2x4x32x8xbf16, #tpu.memory_space<vmem>>, vector<1x1x32x8xbf16>
    %40 = vector.shape_cast %39 : vector<1x1x32x8xbf16> to vector<32x8xbf16>
    %cst_30 = arith.constant dense<0.000000e+00> : vector<16x8xf32>
    %41 = tpu.matmul %31, %40, %cst_30 {dimension_numbers = #tpu.dot_dimension_numbers<[1], [0], [0], [1], [0, 0, 1, 1], [], []>} : vector<16x32xbf16>, vector<32x8xbf16>, vector<16x8xf32> -> vector<16x8xf32>
    %c0_31 = arith.constant 0 : index
    %c0_32 = arith.constant 0 : index
    %c0_33 = arith.constant 0 : index
    %c0_34 = arith.constant 0 : index
    %42 = vector.load %arg9[%c0_31, %c0_32, %c0_33, %c0_34] : memref<2x4x1x8xf32, #tpu.memory_space<vmem>>, vector<1x1x1x8xf32>
    %43 = vector.shape_cast %42 : vector<1x1x1x8xf32> to vector<1x8xf32>
    %44 = vector.broadcast %43 : vector<1x8xf32> to vector<16x8xf32>
    %45 = arith.addf %41, %44 : vector<16x8xf32>
    %c0_35 = arith.constant 0 : index
    %c0_36 = arith.constant 0 : index
    %c0_37 = arith.constant 0 : index
    %c0_38 = arith.constant 0 : index
    %46 = vector.load %arg10[%c0_35, %c0_36, %c0_37, %c0_38] : memref<2x4x32x8xbf16, #tpu.memory_space<vmem>>, vector<1x1x32x8xbf16>
    %47 = vector.shape_cast %46 : vector<1x1x32x8xbf16> to vector<32x8xbf16>
    %cst_39 = arith.constant dense<0.000000e+00> : vector<16x8xf32>
    %48 = tpu.matmul %31, %47, %cst_39 {dimension_numbers = #tpu.dot_dimension_numbers<[1], [0], [0], [1], [0, 0, 1, 1], [], []>} : vector<16x32xbf16>, vector<32x8xbf16>, vector<16x8xf32> -> vector<16x8xf32>
    %c0_40 = arith.constant 0 : index
    %c0_41 = arith.constant 0 : index
    %c0_42 = arith.constant 0 : index
    %c0_43 = arith.constant 0 : index
    %49 = vector.load %arg11[%c0_40, %c0_41, %c0_42, %c0_43] : memref<2x4x1x8xf32, #tpu.memory_space<vmem>>, vector<1x1x1x8xf32>
    %50 = vector.shape_cast %49 : vector<1x1x1x8xf32> to vector<1x8xf32>
    %51 = vector.broadcast %50 : vector<1x8xf32> to vector<16x8xf32>
    %52 = arith.addf %48, %51 : vector<16x8xf32>
    %53 = arith.truncf %38 : vector<16x8xf32> to vector<16x8xbf16>
    %54 = arith.truncf %45 : vector<16x8xf32> to vector<16x8xbf16>
    %cst_44 = arith.constant dense<0.000000e+00> : vector<16x16xf32>
    %55 = tpu.matmul %53, %54, %cst_44 {dimension_numbers = #tpu.dot_dimension_numbers<[1], [1], [0], [0], [0, 0, 1, 0], [], []>} : vector<16x8xbf16>, vector<16x8xbf16>, vector<16x16xf32> -> vector<16x16xf32>
    %cst_45 = arith.constant dense<0xFF800000> : vector<16xf32>
    %56 = vector.multi_reduction <maximumf>, %55, %cst_45 [1] : vector<16x16xf32> to vector<16xf32>
    %57 = vector.shape_cast %56 : vector<16xf32> to vector<16x1xf32>
    %58 = vector.broadcast %57 : vector<16x1xf32> to vector<16x16xf32>
    %59 = arith.subf %55, %58 : vector<16x16xf32>
    %60 = math.exp %59 : vector<16x16xf32>
    %cst_46 = arith.constant dense<0.000000e+00> : vector<16xf32>
    %61 = vector.multi_reduction <add>, %60, %cst_46 [1] : vector<16x16xf32> to vector<16xf32>
    %62 = vector.shape_cast %61 : vector<16xf32> to vector<16x1xf32>
    %63 = tpu.reciprocal %62 {approx = true} : vector<16x1xf32> -> vector<16x1xf32>
    %64 = vector.broadcast %63 : vector<16x1xf32> to vector<16x16xf32>
    %65 = arith.mulf %60, %64 : vector<16x16xf32>
    %66 = arith.truncf %65 : vector<16x16xf32> to vector<16x16xbf16>
    %67 = arith.truncf %52 : vector<16x8xf32> to vector<16x8xbf16>
    %cst_47 = arith.constant dense<0.000000e+00> : vector<16x8xf32>
    %68 = tpu.matmul %66, %67, %cst_47 {dimension_numbers = #tpu.dot_dimension_numbers<[1], [0], [0], [1], [0, 0, 1, 1], [], []>} : vector<16x16xbf16>, vector<16x8xbf16>, vector<16x8xf32> -> vector<16x8xf32>
    %69 = arith.truncf %68 : vector<16x8xf32> to vector<16x8xbf16>
    %c0_48 = arith.constant 0 : index
    %c0_49 = arith.constant 0 : index
    %c0_50 = arith.constant 0 : index
    %c0_51 = arith.constant 0 : index
    %70 = vector.load %arg12[%c0_48, %c0_49, %c0_50, %c0_51] : memref<2x4x8x32xbf16, #tpu.memory_space<vmem>>, vector<1x1x8x32xbf16>
    %71 = vector.shape_cast %70 : vector<1x1x8x32xbf16> to vector<8x32xbf16>
    %cst_52 = arith.constant dense<0.000000e+00> : vector<16x32xf32>
    %72 = tpu.matmul %69, %71, %cst_52 {dimension_numbers = #tpu.dot_dimension_numbers<[1], [0], [0], [1], [0, 0, 1, 1], [], []>} : vector<16x8xbf16>, vector<8x32xbf16>, vector<16x32xf32> -> vector<16x32xf32>
    %c0_53 = arith.constant 0 : index
    %c1 = arith.constant 1 : index
    %c0_54 = arith.constant 0 : index
    %c0_55 = arith.constant 0 : index
    %73 = vector.load %arg6[%c0_53, %c1, %c0_54, %c0_55] : memref<2x4x32x8xbf16, #tpu.memory_space<vmem>>, vector<1x1x32x8xbf16>
    %74 = vector.shape_cast %73 : vector<1x1x32x8xbf16> to vector<32x8xbf16>
    %cst_56 = arith.constant dense<0.000000e+00> : vector<16x8xf32>
    %75 = tpu.matmul %31, %74, %cst_56 {dimension_numbers = #tpu.dot_dimension_numbers<[1], [0], [0], [1], [0, 0, 1, 1], [], []>} : vector<16x32xbf16>, vector<32x8xbf16>, vector<16x8xf32> -> vector<16x8xf32>
    %c0_57 = arith.constant 0 : index
    %c1_58 = arith.constant 1 : index
    %c0_59 = arith.constant 0 : index
    %c0_60 = arith.constant 0 : index
    %76 = vector.load %arg7[%c0_57, %c1_58, %c0_59, %c0_60] : memref<2x4x1x8xf32, #tpu.memory_space<vmem>>, vector<1x1x1x8xf32>
    %77 = vector.shape_cast %76 : vector<1x1x1x8xf32> to vector<1x8xf32>
    %78 = vector.broadcast %77 : vector<1x8xf32> to vector<16x8xf32>
    %79 = arith.addf %75, %78 : vector<16x8xf32>
    %c0_61 = arith.constant 0 : index
    %c1_62 = arith.constant 1 : index
    %c0_63 = arith.constant 0 : index
    %c0_64 = arith.constant 0 : index
    %80 = vector.load %arg8[%c0_61, %c1_62, %c0_63, %c0_64] : memref<2x4x32x8xbf16, #tpu.memory_space<vmem>>, vector<1x1x32x8xbf16>
    %81 = vector.shape_cast %80 : vector<1x1x32x8xbf16> to vector<32x8xbf16>
    %cst_65 = arith.constant dense<0.000000e+00> : vector<16x8xf32>
    %82 = tpu.matmul %31, %81, %cst_65 {dimension_numbers = #tpu.dot_dimension_numbers<[1], [0], [0], [1], [0, 0, 1, 1], [], []>} : vector<16x32xbf16>, vector<32x8xbf16>, vector<16x8xf32> -> vector<16x8xf32>
    %c0_66 = arith.constant 0 : index
    %c1_67 = arith.constant 1 : index
    %c0_68 = arith.constant 0 : index
    %c0_69 = arith.constant 0 : index
    %83 = vector.load %arg9[%c0_66, %c1_67, %c0_68, %c0_69] : memref<2x4x1x8xf32, #tpu.memory_space<vmem>>, vector<1x1x1x8xf32>
    %84 = vector.shape_cast %83 : vector<1x1x1x8xf32> to vector<1x8xf32>
    %85 = vector.broadcast %84 : vector<1x8xf32> to vector<16x8xf32>
    %86 = arith.addf %82, %85 : vector<16x8xf32>
    %c0_70 = arith.constant 0 : index
    %c1_71 = arith.constant 1 : index
    %c0_72 = arith.constant 0 : index
    %c0_73 = arith.constant 0 : index
    %87 = vector.load %arg10[%c0_70, %c1_71, %c0_72, %c0_73] : memref<2x4x32x8xbf16, #tpu.memory_space<vmem>>, vector<1x1x32x8xbf16>
    %88 = vector.shape_cast %87 : vector<1x1x32x8xbf16> to vector<32x8xbf16>
    %cst_74 = arith.constant dense<0.000000e+00> : vector<16x8xf32>
    %89 = tpu.matmul %31, %88, %cst_74 {dimension_numbers = #tpu.dot_dimension_numbers<[1], [0], [0], [1], [0, 0, 1, 1], [], []>} : vector<16x32xbf16>, vector<32x8xbf16>, vector<16x8xf32> -> vector<16x8xf32>
    %c0_75 = arith.constant 0 : index
    %c1_76 = arith.constant 1 : index
    %c0_77 = arith.constant 0 : index
    %c0_78 = arith.constant 0 : index
    %90 = vector.load %arg11[%c0_75, %c1_76, %c0_77, %c0_78] : memref<2x4x1x8xf32, #tpu.memory_space<vmem>>, vector<1x1x1x8xf32>
    %91 = vector.shape_cast %90 : vector<1x1x1x8xf32> to vector<1x8xf32>
    %92 = vector.broadcast %91 : vector<1x8xf32> to vector<16x8xf32>
    %93 = arith.addf %89, %92 : vector<16x8xf32>
    %94 = arith.truncf %79 : vector<16x8xf32> to vector<16x8xbf16>
    %95 = arith.truncf %86 : vector<16x8xf32> to vector<16x8xbf16>
    %cst_79 = arith.constant dense<0.000000e+00> : vector<16x16xf32>
    %96 = tpu.matmul %94, %95, %cst_79 {dimension_numbers = #tpu.dot_dimension_numbers<[1], [1], [0], [0], [0, 0, 1, 0], [], []>} : vector<16x8xbf16>, vector<16x8xbf16>, vector<16x16xf32> -> vector<16x16xf32>
    %cst_80 = arith.constant dense<0xFF800000> : vector<16xf32>
    %97 = vector.multi_reduction <maximumf>, %96, %cst_80 [1] : vector<16x16xf32> to vector<16xf32>
    %98 = vector.shape_cast %97 : vector<16xf32> to vector<16x1xf32>
    %99 = vector.broadcast %98 : vector<16x1xf32> to vector<16x16xf32>
    %100 = arith.subf %96, %99 : vector<16x16xf32>
    %101 = math.exp %100 : vector<16x16xf32>
    %cst_81 = arith.constant dense<0.000000e+00> : vector<16xf32>
    %102 = vector.multi_reduction <add>, %101, %cst_81 [1] : vector<16x16xf32> to vector<16xf32>
    %103 = vector.shape_cast %102 : vector<16xf32> to vector<16x1xf32>
    %104 = tpu.reciprocal %103 {approx = true} : vector<16x1xf32> -> vector<16x1xf32>
    %105 = vector.broadcast %104 : vector<16x1xf32> to vector<16x16xf32>
    %106 = arith.mulf %101, %105 : vector<16x16xf32>
    %107 = arith.truncf %106 : vector<16x16xf32> to vector<16x16xbf16>
    %108 = arith.truncf %93 : vector<16x8xf32> to vector<16x8xbf16>
    %cst_82 = arith.constant dense<0.000000e+00> : vector<16x8xf32>
    %109 = tpu.matmul %107, %108, %cst_82 {dimension_numbers = #tpu.dot_dimension_numbers<[1], [0], [0], [1], [0, 0, 1, 1], [], []>} : vector<16x16xbf16>, vector<16x8xbf16>, vector<16x8xf32> -> vector<16x8xf32>
    %110 = arith.truncf %109 : vector<16x8xf32> to vector<16x8xbf16>
    %c0_83 = arith.constant 0 : index
    %c1_84 = arith.constant 1 : index
    %c0_85 = arith.constant 0 : index
    %c0_86 = arith.constant 0 : index
    %111 = vector.load %arg12[%c0_83, %c1_84, %c0_85, %c0_86] : memref<2x4x8x32xbf16, #tpu.memory_space<vmem>>, vector<1x1x8x32xbf16>
    %112 = vector.shape_cast %111 : vector<1x1x8x32xbf16> to vector<8x32xbf16>
    %cst_87 = arith.constant dense<0.000000e+00> : vector<16x32xf32>
    %113 = tpu.matmul %110, %112, %cst_87 {dimension_numbers = #tpu.dot_dimension_numbers<[1], [0], [0], [1], [0, 0, 1, 1], [], []>} : vector<16x8xbf16>, vector<8x32xbf16>, vector<16x32xf32> -> vector<16x32xf32>
    %114 = arith.addf %72, %113 : vector<16x32xf32>
    %c0_88 = arith.constant 0 : index
    %c2 = arith.constant 2 : index
    %c0_89 = arith.constant 0 : index
    %c0_90 = arith.constant 0 : index
    %115 = vector.load %arg6[%c0_88, %c2, %c0_89, %c0_90] : memref<2x4x32x8xbf16, #tpu.memory_space<vmem>>, vector<1x1x32x8xbf16>
    %116 = vector.shape_cast %115 : vector<1x1x32x8xbf16> to vector<32x8xbf16>
    %cst_91 = arith.constant dense<0.000000e+00> : vector<16x8xf32>
    %117 = tpu.matmul %31, %116, %cst_91 {dimension_numbers = #tpu.dot_dimension_numbers<[1], [0], [0], [1], [0, 0, 1, 1], [], []>} : vector<16x32xbf16>, vector<32x8xbf16>, vector<16x8xf32> -> vector<16x8xf32>
    %c0_92 = arith.constant 0 : index
    %c2_93 = arith.constant 2 : index
    %c0_94 = arith.constant 0 : index
    %c0_95 = arith.constant 0 : index
    %118 = vector.load %arg7[%c0_92, %c2_93, %c0_94, %c0_95] : memref<2x4x1x8xf32, #tpu.memory_space<vmem>>, vector<1x1x1x8xf32>
    %119 = vector.shape_cast %118 : vector<1x1x1x8xf32> to vector<1x8xf32>
    %120 = vector.broadcast %119 : vector<1x8xf32> to vector<16x8xf32>
    %121 = arith.addf %117, %120 : vector<16x8xf32>
    %c0_96 = arith.constant 0 : index
    %c2_97 = arith.constant 2 : index
    %c0_98 = arith.constant 0 : index
    %c0_99 = arith.constant 0 : index
    %122 = vector.load %arg8[%c0_96, %c2_97, %c0_98, %c0_99] : memref<2x4x32x8xbf16, #tpu.memory_space<vmem>>, vector<1x1x32x8xbf16>
    %123 = vector.shape_cast %122 : vector<1x1x32x8xbf16> to vector<32x8xbf16>
    %cst_100 = arith.constant dense<0.000000e+00> : vector<16x8xf32>
    %124 = tpu.matmul %31, %123, %cst_100 {dimension_numbers = #tpu.dot_dimension_numbers<[1], [0], [0], [1], [0, 0, 1, 1], [], []>} : vector<16x32xbf16>, vector<32x8xbf16>, vector<16x8xf32> -> vector<16x8xf32>
    %c0_101 = arith.constant 0 : index
    %c2_102 = arith.constant 2 : index
    %c0_103 = arith.constant 0 : index
    %c0_104 = arith.constant 0 : index
    %125 = vector.load %arg9[%c0_101, %c2_102, %c0_103, %c0_104] : memref<2x4x1x8xf32, #tpu.memory_space<vmem>>, vector<1x1x1x8xf32>
    %126 = vector.shape_cast %125 : vector<1x1x1x8xf32> to vector<1x8xf32>
    %127 = vector.broadcast %126 : vector<1x8xf32> to vector<16x8xf32>
    %128 = arith.addf %124, %127 : vector<16x8xf32>
    %c0_105 = arith.constant 0 : index
    %c2_106 = arith.constant 2 : index
    %c0_107 = arith.constant 0 : index
    %c0_108 = arith.constant 0 : index
    %129 = vector.load %arg10[%c0_105, %c2_106, %c0_107, %c0_108] : memref<2x4x32x8xbf16, #tpu.memory_space<vmem>>, vector<1x1x32x8xbf16>
    %130 = vector.shape_cast %129 : vector<1x1x32x8xbf16> to vector<32x8xbf16>
    %cst_109 = arith.constant dense<0.000000e+00> : vector<16x8xf32>
    %131 = tpu.matmul %31, %130, %cst_109 {dimension_numbers = #tpu.dot_dimension_numbers<[1], [0], [0], [1], [0, 0, 1, 1], [], []>} : vector<16x32xbf16>, vector<32x8xbf16>, vector<16x8xf32> -> vector<16x8xf32>
    %c0_110 = arith.constant 0 : index
    %c2_111 = arith.constant 2 : index
    %c0_112 = arith.constant 0 : index
    %c0_113 = arith.constant 0 : index
    %132 = vector.load %arg11[%c0_110, %c2_111, %c0_112, %c0_113] : memref<2x4x1x8xf32, #tpu.memory_space<vmem>>, vector<1x1x1x8xf32>
    %133 = vector.shape_cast %132 : vector<1x1x1x8xf32> to vector<1x8xf32>
    %134 = vector.broadcast %133 : vector<1x8xf32> to vector<16x8xf32>
    %135 = arith.addf %131, %134 : vector<16x8xf32>
    %136 = arith.truncf %121 : vector<16x8xf32> to vector<16x8xbf16>
    %137 = arith.truncf %128 : vector<16x8xf32> to vector<16x8xbf16>
    %cst_114 = arith.constant dense<0.000000e+00> : vector<16x16xf32>
    %138 = tpu.matmul %136, %137, %cst_114 {dimension_numbers = #tpu.dot_dimension_numbers<[1], [1], [0], [0], [0, 0, 1, 0], [], []>} : vector<16x8xbf16>, vector<16x8xbf16>, vector<16x16xf32> -> vector<16x16xf32>
    %cst_115 = arith.constant dense<0xFF800000> : vector<16xf32>
    %139 = vector.multi_reduction <maximumf>, %138, %cst_115 [1] : vector<16x16xf32> to vector<16xf32>
    %140 = vector.shape_cast %139 : vector<16xf32> to vector<16x1xf32>
    %141 = vector.broadcast %140 : vector<16x1xf32> to vector<16x16xf32>
    %142 = arith.subf %138, %141 : vector<16x16xf32>
    %143 = math.exp %142 : vector<16x16xf32>
    %cst_116 = arith.constant dense<0.000000e+00> : vector<16xf32>
    %144 = vector.multi_reduction <add>, %143, %cst_116 [1] : vector<16x16xf32> to vector<16xf32>
    %145 = vector.shape_cast %144 : vector<16xf32> to vector<16x1xf32>
    %146 = tpu.reciprocal %145 {approx = true} : vector<16x1xf32> -> vector<16x1xf32>
    %147 = vector.broadcast %146 : vector<16x1xf32> to vector<16x16xf32>
    %148 = arith.mulf %143, %147 : vector<16x16xf32>
    %149 = arith.truncf %148 : vector<16x16xf32> to vector<16x16xbf16>
    %150 = arith.truncf %135 : vector<16x8xf32> to vector<16x8xbf16>
    %cst_117 = arith.constant dense<0.000000e+00> : vector<16x8xf32>
    %151 = tpu.matmul %149, %150, %cst_117 {dimension_numbers = #tpu.dot_dimension_numbers<[1], [0], [0], [1], [0, 0, 1, 1], [], []>} : vector<16x16xbf16>, vector<16x8xbf16>, vector<16x8xf32> -> vector<16x8xf32>
    %152 = arith.truncf %151 : vector<16x8xf32> to vector<16x8xbf16>
    %c0_118 = arith.constant 0 : index
    %c2_119 = arith.constant 2 : index
    %c0_120 = arith.constant 0 : index
    %c0_121 = arith.constant 0 : index
    %153 = vector.load %arg12[%c0_118, %c2_119, %c0_120, %c0_121] : memref<2x4x8x32xbf16, #tpu.memory_space<vmem>>, vector<1x1x8x32xbf16>
    %154 = vector.shape_cast %153 : vector<1x1x8x32xbf16> to vector<8x32xbf16>
    %cst_122 = arith.constant dense<0.000000e+00> : vector<16x32xf32>
    %155 = tpu.matmul %152, %154, %cst_122 {dimension_numbers = #tpu.dot_dimension_numbers<[1], [0], [0], [1], [0, 0, 1, 1], [], []>} : vector<16x8xbf16>, vector<8x32xbf16>, vector<16x32xf32> -> vector<16x32xf32>
    %156 = arith.addf %114, %155 : vector<16x32xf32>
    %c0_123 = arith.constant 0 : index
    %c3 = arith.constant 3 : index
    %c0_124 = arith.constant 0 : index
    %c0_125 = arith.constant 0 : index
    %157 = vector.load %arg6[%c0_123, %c3, %c0_124, %c0_125] : memref<2x4x32x8xbf16, #tpu.memory_space<vmem>>, vector<1x1x32x8xbf16>
    %158 = vector.shape_cast %157 : vector<1x1x32x8xbf16> to vector<32x8xbf16>
    %cst_126 = arith.constant dense<0.000000e+00> : vector<16x8xf32>
    %159 = tpu.matmul %31, %158, %cst_126 {dimension_numbers = #tpu.dot_dimension_numbers<[1], [0], [0], [1], [0, 0, 1, 1], [], []>} : vector<16x32xbf16>, vector<32x8xbf16>, vector<16x8xf32> -> vector<16x8xf32>
    %c0_127 = arith.constant 0 : index
    %c3_128 = arith.constant 3 : index
    %c0_129 = arith.constant 0 : index
    %c0_130 = arith.constant 0 : index
    %160 = vector.load %arg7[%c0_127, %c3_128, %c0_129, %c0_130] : memref<2x4x1x8xf32, #tpu.memory_space<vmem>>, vector<1x1x1x8xf32>
    %161 = vector.shape_cast %160 : vector<1x1x1x8xf32> to vector<1x8xf32>
    %162 = vector.broadcast %161 : vector<1x8xf32> to vector<16x8xf32>
    %163 = arith.addf %159, %162 : vector<16x8xf32>
    %c0_131 = arith.constant 0 : index
    %c3_132 = arith.constant 3 : index
    %c0_133 = arith.constant 0 : index
    %c0_134 = arith.constant 0 : index
    %164 = vector.load %arg8[%c0_131, %c3_132, %c0_133, %c0_134] : memref<2x4x32x8xbf16, #tpu.memory_space<vmem>>, vector<1x1x32x8xbf16>
    %165 = vector.shape_cast %164 : vector<1x1x32x8xbf16> to vector<32x8xbf16>
    %cst_135 = arith.constant dense<0.000000e+00> : vector<16x8xf32>
    %166 = tpu.matmul %31, %165, %cst_135 {dimension_numbers = #tpu.dot_dimension_numbers<[1], [0], [0], [1], [0, 0, 1, 1], [], []>} : vector<16x32xbf16>, vector<32x8xbf16>, vector<16x8xf32> -> vector<16x8xf32>
    %c0_136 = arith.constant 0 : index
    %c3_137 = arith.constant 3 : index
    %c0_138 = arith.constant 0 : index
    %c0_139 = arith.constant 0 : index
    %167 = vector.load %arg9[%c0_136, %c3_137, %c0_138, %c0_139] : memref<2x4x1x8xf32, #tpu.memory_space<vmem>>, vector<1x1x1x8xf32>
    %168 = vector.shape_cast %167 : vector<1x1x1x8xf32> to vector<1x8xf32>
    %169 = vector.broadcast %168 : vector<1x8xf32> to vector<16x8xf32>
    %170 = arith.addf %166, %169 : vector<16x8xf32>
    %c0_140 = arith.constant 0 : index
    %c3_141 = arith.constant 3 : index
    %c0_142 = arith.constant 0 : index
    %c0_143 = arith.constant 0 : index
    %171 = vector.load %arg10[%c0_140, %c3_141, %c0_142, %c0_143] : memref<2x4x32x8xbf16, #tpu.memory_space<vmem>>, vector<1x1x32x8xbf16>
    %172 = vector.shape_cast %171 : vector<1x1x32x8xbf16> to vector<32x8xbf16>
    %cst_144 = arith.constant dense<0.000000e+00> : vector<16x8xf32>
    %173 = tpu.matmul %31, %172, %cst_144 {dimension_numbers = #tpu.dot_dimension_numbers<[1], [0], [0], [1], [0, 0, 1, 1], [], []>} : vector<16x32xbf16>, vector<32x8xbf16>, vector<16x8xf32> -> vector<16x8xf32>
    %c0_145 = arith.constant 0 : index
    %c3_146 = arith.constant 3 : index
    %c0_147 = arith.constant 0 : index
    %c0_148 = arith.constant 0 : index
    %174 = vector.load %arg11[%c0_145, %c3_146, %c0_147, %c0_148] : memref<2x4x1x8xf32, #tpu.memory_space<vmem>>, vector<1x1x1x8xf32>
    %175 = vector.shape_cast %174 : vector<1x1x1x8xf32> to vector<1x8xf32>
    %176 = vector.broadcast %175 : vector<1x8xf32> to vector<16x8xf32>
    %177 = arith.addf %173, %176 : vector<16x8xf32>
    %178 = arith.truncf %163 : vector<16x8xf32> to vector<16x8xbf16>
    %179 = arith.truncf %170 : vector<16x8xf32> to vector<16x8xbf16>
    %cst_149 = arith.constant dense<0.000000e+00> : vector<16x16xf32>
    %180 = tpu.matmul %178, %179, %cst_149 {dimension_numbers = #tpu.dot_dimension_numbers<[1], [1], [0], [0], [0, 0, 1, 0], [], []>} : vector<16x8xbf16>, vector<16x8xbf16>, vector<16x16xf32> -> vector<16x16xf32>
    %cst_150 = arith.constant dense<0xFF800000> : vector<16xf32>
    %181 = vector.multi_reduction <maximumf>, %180, %cst_150 [1] : vector<16x16xf32> to vector<16xf32>
    %182 = vector.shape_cast %181 : vector<16xf32> to vector<16x1xf32>
    %183 = vector.broadcast %182 : vector<16x1xf32> to vector<16x16xf32>
    %184 = arith.subf %180, %183 : vector<16x16xf32>
    %185 = math.exp %184 : vector<16x16xf32>
    %cst_151 = arith.constant dense<0.000000e+00> : vector<16xf32>
    %186 = vector.multi_reduction <add>, %185, %cst_151 [1] : vector<16x16xf32> to vector<16xf32>
    %187 = vector.shape_cast %186 : vector<16xf32> to vector<16x1xf32>
    %188 = tpu.reciprocal %187 {approx = true} : vector<16x1xf32> -> vector<16x1xf32>
    %189 = vector.broadcast %188 : vector<16x1xf32> to vector<16x16xf32>
    %190 = arith.mulf %185, %189 : vector<16x16xf32>
    %191 = arith.truncf %190 : vector<16x16xf32> to vector<16x16xbf16>
    %192 = arith.truncf %177 : vector<16x8xf32> to vector<16x8xbf16>
    %cst_152 = arith.constant dense<0.000000e+00> : vector<16x8xf32>
    %193 = tpu.matmul %191, %192, %cst_152 {dimension_numbers = #tpu.dot_dimension_numbers<[1], [0], [0], [1], [0, 0, 1, 1], [], []>} : vector<16x16xbf16>, vector<16x8xbf16>, vector<16x8xf32> -> vector<16x8xf32>
    %194 = arith.truncf %193 : vector<16x8xf32> to vector<16x8xbf16>
    %c0_153 = arith.constant 0 : index
    %c3_154 = arith.constant 3 : index
    %c0_155 = arith.constant 0 : index
    %c0_156 = arith.constant 0 : index
    %195 = vector.load %arg12[%c0_153, %c3_154, %c0_155, %c0_156] : memref<2x4x8x32xbf16, #tpu.memory_space<vmem>>, vector<1x1x8x32xbf16>
    %196 = vector.shape_cast %195 : vector<1x1x8x32xbf16> to vector<8x32xbf16>
    %cst_157 = arith.constant dense<0.000000e+00> : vector<16x32xf32>
    %197 = tpu.matmul %194, %196, %cst_157 {dimension_numbers = #tpu.dot_dimension_numbers<[1], [0], [0], [1], [0, 0, 1, 1], [], []>} : vector<16x8xbf16>, vector<8x32xbf16>, vector<16x32xf32> -> vector<16x32xf32>
    %198 = arith.addf %156, %197 : vector<16x32xf32>
    %199 = arith.addf %6, %198 : vector<16x32xf32>
    %c0_158 = arith.constant 0 : index
    %c0_159 = arith.constant 0 : index
    %c0_160 = arith.constant 0 : index
    %200 = vector.load %arg13[%c0_158, %c0_159, %c0_160] : memref<2x1x32xf32, #tpu.memory_space<vmem>>, vector<1x1x32xf32>
    %201 = vector.shape_cast %200 : vector<1x1x32xf32> to vector<1x32xf32>
    %202 = vector.broadcast %201 : vector<1x32xf32> to vector<16x32xf32>
    %203 = arith.addf %199, %202 : vector<16x32xf32>
    %c0_161 = arith.constant 0 : index
    %c0_162 = arith.constant 0 : index
    %c0_163 = arith.constant 0 : index
    %204 = vector.load %arg14[%c0_161, %c0_162, %c0_163] : memref<2x1x32xf32, #tpu.memory_space<vmem>>, vector<1x1x32xf32>
    %205 = vector.shape_cast %204 : vector<1x1x32xf32> to vector<1x32xf32>
    %c0_164 = arith.constant 0 : index
    %c0_165 = arith.constant 0 : index
    %c0_166 = arith.constant 0 : index
    %206 = vector.load %arg15[%c0_164, %c0_165, %c0_166] : memref<2x1x32xf32, #tpu.memory_space<vmem>>, vector<1x1x32xf32>
    %207 = vector.shape_cast %206 : vector<1x1x32xf32> to vector<1x32xf32>
    %cst_167 = arith.constant dense<0.000000e+00> : vector<16xf32>
    %208 = vector.multi_reduction <add>, %203, %cst_167 [1] : vector<16x32xf32> to vector<16xf32>
    %209 = vector.shape_cast %208 : vector<16xf32> to vector<16x1xf32>
    %cst_168 = arith.constant 3.200000e+01 : f32
    %210 = vector.broadcast %cst_168 : f32 to vector<16x1xf32>
    %211 = arith.divf %209, %210 : vector<16x1xf32>
    %212 = vector.broadcast %211 : vector<16x1xf32> to vector<16x32xf32>
    %213 = arith.subf %203, %212 : vector<16x32xf32>
    %214 = arith.mulf %213, %213 : vector<16x32xf32>
    %cst_169 = arith.constant dense<0.000000e+00> : vector<16xf32>
    %215 = vector.multi_reduction <add>, %214, %cst_169 [1] : vector<16x32xf32> to vector<16xf32>
    %216 = vector.shape_cast %215 : vector<16xf32> to vector<16x1xf32>
    %cst_170 = arith.constant 3.200000e+01 : f32
    %217 = vector.broadcast %cst_170 : f32 to vector<16x1xf32>
    %218 = arith.divf %216, %217 : vector<16x1xf32>
    %cst_171 = arith.constant 9.99999974E-6 : f32
    %219 = vector.broadcast %cst_171 : f32 to vector<16x1xf32>
    %220 = arith.addf %218, %219 : vector<16x1xf32>
    %221 = math.rsqrt %220 : vector<16x1xf32>
    %222 = vector.broadcast %221 : vector<16x1xf32> to vector<16x32xf32>
    %223 = arith.mulf %213, %222 : vector<16x32xf32>
    %224 = vector.broadcast %205 : vector<1x32xf32> to vector<16x32xf32>
    %225 = arith.mulf %223, %224 : vector<16x32xf32>
    %226 = vector.broadcast %207 : vector<1x32xf32> to vector<16x32xf32>
    %227 = arith.addf %225, %226 : vector<16x32xf32>
    %228 = arith.truncf %227 : vector<16x32xf32> to vector<16x32xbf16>
    %c0_172 = arith.constant 0 : index
    %c0_173 = arith.constant 0 : index
    %c0_174 = arith.constant 0 : index
    %229 = vector.load %arg16[%c0_172, %c0_173, %c0_174] : memref<2x32x128xbf16, #tpu.memory_space<vmem>>, vector<1x32x128xbf16>
    %230 = vector.shape_cast %229 : vector<1x32x128xbf16> to vector<32x128xbf16>
    %cst_175 = arith.constant dense<0.000000e+00> : vector<16x128xf32>
    %231 = tpu.matmul %228, %230, %cst_175 {dimension_numbers = #tpu.dot_dimension_numbers<[1], [0], [0], [1], [0, 0, 1, 1], [], []>} : vector<16x32xbf16>, vector<32x128xbf16>, vector<16x128xf32> -> vector<16x128xf32>
    %c0_176 = arith.constant 0 : index
    %c0_177 = arith.constant 0 : index
    %c0_178 = arith.constant 0 : index
    %232 = vector.load %arg17[%c0_176, %c0_177, %c0_178] : memref<2x1x128xf32, #tpu.memory_space<vmem>>, vector<1x1x128xf32>
    %233 = vector.shape_cast %232 : vector<1x1x128xf32> to vector<1x128xf32>
    %234 = vector.broadcast %233 : vector<1x128xf32> to vector<16x128xf32>
    %235 = arith.addf %231, %234 : vector<16x128xf32>
    %cst_179 = arith.constant 5.000000e-01 : f32
    %236 = vector.broadcast %cst_179 : f32 to vector<16x128xf32>
    %237 = arith.mulf %236, %235 : vector<16x128xf32>
    %cst_180 = arith.constant 4.471500e-02 : f32
    %238 = vector.broadcast %cst_180 : f32 to vector<16x128xf32>
    %239 = arith.mulf %238, %235 : vector<16x128xf32>
    %240 = arith.mulf %239, %235 : vector<16x128xf32>
    %241 = arith.mulf %240, %235 : vector<16x128xf32>
    %242 = arith.addf %235, %241 : vector<16x128xf32>
    %cst_181 = arith.constant 0.797884583 : f32
    %243 = vector.broadcast %cst_181 : f32 to vector<16x128xf32>
    %244 = arith.mulf %243, %242 : vector<16x128xf32>
    %245 = math.tanh %244 : vector<16x128xf32>
    %cst_182 = arith.constant 1.000000e+00 : f32
    %246 = vector.broadcast %cst_182 : f32 to vector<16x128xf32>
    %247 = arith.addf %246, %245 : vector<16x128xf32>
    %248 = arith.mulf %237, %247 : vector<16x128xf32>
    %249 = arith.truncf %248 : vector<16x128xf32> to vector<16x128xbf16>
    %c0_183 = arith.constant 0 : index
    %c0_184 = arith.constant 0 : index
    %c0_185 = arith.constant 0 : index
    %250 = vector.load %arg18[%c0_183, %c0_184, %c0_185] : memref<2x128x32xbf16, #tpu.memory_space<vmem>>, vector<1x128x32xbf16>
    %251 = vector.shape_cast %250 : vector<1x128x32xbf16> to vector<128x32xbf16>
    %cst_186 = arith.constant dense<0.000000e+00> : vector<16x32xf32>
    %252 = tpu.matmul %249, %251, %cst_186 {dimension_numbers = #tpu.dot_dimension_numbers<[1], [0], [0], [1], [0, 0, 1, 1], [], []>} : vector<16x128xbf16>, vector<128x32xbf16>, vector<16x32xf32> -> vector<16x32xf32>
    %253 = arith.addf %203, %252 : vector<16x32xf32>
    %c0_187 = arith.constant 0 : index
    %c0_188 = arith.constant 0 : index
    %c0_189 = arith.constant 0 : index
    %254 = vector.load %arg19[%c0_187, %c0_188, %c0_189] : memref<2x1x32xf32, #tpu.memory_space<vmem>>, vector<1x1x32xf32>
    %255 = vector.shape_cast %254 : vector<1x1x32xf32> to vector<1x32xf32>
    %256 = vector.broadcast %255 : vector<1x32xf32> to vector<16x32xf32>
    %257 = arith.addf %253, %256 : vector<16x32xf32>
    %c1_190 = arith.constant 1 : index
    %c0_191 = arith.constant 0 : index
    %c0_192 = arith.constant 0 : index
    %258 = vector.load %arg4[%c1_190, %c0_191, %c0_192] : memref<2x1x32xf32, #tpu.memory_space<vmem>>, vector<1x1x32xf32>
    %259 = vector.shape_cast %258 : vector<1x1x32xf32> to vector<1x32xf32>
    %c1_193 = arith.constant 1 : index
    %c0_194 = arith.constant 0 : index
    %c0_195 = arith.constant 0 : index
    %260 = vector.load %arg5[%c1_193, %c0_194, %c0_195] : memref<2x1x32xf32, #tpu.memory_space<vmem>>, vector<1x1x32xf32>
    %261 = vector.shape_cast %260 : vector<1x1x32xf32> to vector<1x32xf32>
    %cst_196 = arith.constant dense<0.000000e+00> : vector<16xf32>
    %262 = vector.multi_reduction <add>, %257, %cst_196 [1] : vector<16x32xf32> to vector<16xf32>
    %263 = vector.shape_cast %262 : vector<16xf32> to vector<16x1xf32>
    %cst_197 = arith.constant 3.200000e+01 : f32
    %264 = vector.broadcast %cst_197 : f32 to vector<16x1xf32>
    %265 = arith.divf %263, %264 : vector<16x1xf32>
    %266 = vector.broadcast %265 : vector<16x1xf32> to vector<16x32xf32>
    %267 = arith.subf %257, %266 : vector<16x32xf32>
    %268 = arith.mulf %267, %267 : vector<16x32xf32>
    %cst_198 = arith.constant dense<0.000000e+00> : vector<16xf32>
    %269 = vector.multi_reduction <add>, %268, %cst_198 [1] : vector<16x32xf32> to vector<16xf32>
    %270 = vector.shape_cast %269 : vector<16xf32> to vector<16x1xf32>
    %cst_199 = arith.constant 3.200000e+01 : f32
    %271 = vector.broadcast %cst_199 : f32 to vector<16x1xf32>
    %272 = arith.divf %270, %271 : vector<16x1xf32>
    %cst_200 = arith.constant 9.99999974E-6 : f32
    %273 = vector.broadcast %cst_200 : f32 to vector<16x1xf32>
    %274 = arith.addf %272, %273 : vector<16x1xf32>
    %275 = math.rsqrt %274 : vector<16x1xf32>
    %276 = vector.broadcast %275 : vector<16x1xf32> to vector<16x32xf32>
    %277 = arith.mulf %267, %276 : vector<16x32xf32>
    %278 = vector.broadcast %259 : vector<1x32xf32> to vector<16x32xf32>
    %279 = arith.mulf %277, %278 : vector<16x32xf32>
    %280 = vector.broadcast %261 : vector<1x32xf32> to vector<16x32xf32>
    %281 = arith.addf %279, %280 : vector<16x32xf32>
    %282 = arith.truncf %281 : vector<16x32xf32> to vector<16x32xbf16>
    %c1_201 = arith.constant 1 : index
    %c0_202 = arith.constant 0 : index
    %c0_203 = arith.constant 0 : index
    %c0_204 = arith.constant 0 : index
    %283 = vector.load %arg6[%c1_201, %c0_202, %c0_203, %c0_204] : memref<2x4x32x8xbf16, #tpu.memory_space<vmem>>, vector<1x1x32x8xbf16>
    %284 = vector.shape_cast %283 : vector<1x1x32x8xbf16> to vector<32x8xbf16>
    %cst_205 = arith.constant dense<0.000000e+00> : vector<16x8xf32>
    %285 = tpu.matmul %282, %284, %cst_205 {dimension_numbers = #tpu.dot_dimension_numbers<[1], [0], [0], [1], [0, 0, 1, 1], [], []>} : vector<16x32xbf16>, vector<32x8xbf16>, vector<16x8xf32> -> vector<16x8xf32>
    %c1_206 = arith.constant 1 : index
    %c0_207 = arith.constant 0 : index
    %c0_208 = arith.constant 0 : index
    %c0_209 = arith.constant 0 : index
    %286 = vector.load %arg7[%c1_206, %c0_207, %c0_208, %c0_209] : memref<2x4x1x8xf32, #tpu.memory_space<vmem>>, vector<1x1x1x8xf32>
    %287 = vector.shape_cast %286 : vector<1x1x1x8xf32> to vector<1x8xf32>
    %288 = vector.broadcast %287 : vector<1x8xf32> to vector<16x8xf32>
    %289 = arith.addf %285, %288 : vector<16x8xf32>
    %c1_210 = arith.constant 1 : index
    %c0_211 = arith.constant 0 : index
    %c0_212 = arith.constant 0 : index
    %c0_213 = arith.constant 0 : index
    %290 = vector.load %arg8[%c1_210, %c0_211, %c0_212, %c0_213] : memref<2x4x32x8xbf16, #tpu.memory_space<vmem>>, vector<1x1x32x8xbf16>
    %291 = vector.shape_cast %290 : vector<1x1x32x8xbf16> to vector<32x8xbf16>
    %cst_214 = arith.constant dense<0.000000e+00> : vector<16x8xf32>
    %292 = tpu.matmul %282, %291, %cst_214 {dimension_numbers = #tpu.dot_dimension_numbers<[1], [0], [0], [1], [0, 0, 1, 1], [], []>} : vector<16x32xbf16>, vector<32x8xbf16>, vector<16x8xf32> -> vector<16x8xf32>
    %c1_215 = arith.constant 1 : index
    %c0_216 = arith.constant 0 : index
    %c0_217 = arith.constant 0 : index
    %c0_218 = arith.constant 0 : index
    %293 = vector.load %arg9[%c1_215, %c0_216, %c0_217, %c0_218] : memref<2x4x1x8xf32, #tpu.memory_space<vmem>>, vector<1x1x1x8xf32>
    %294 = vector.shape_cast %293 : vector<1x1x1x8xf32> to vector<1x8xf32>
    %295 = vector.broadcast %294 : vector<1x8xf32> to vector<16x8xf32>
    %296 = arith.addf %292, %295 : vector<16x8xf32>
    %c1_219 = arith.constant 1 : index
    %c0_220 = arith.constant 0 : index
    %c0_221 = arith.constant 0 : index
    %c0_222 = arith.constant 0 : index
    %297 = vector.load %arg10[%c1_219, %c0_220, %c0_221, %c0_222] : memref<2x4x32x8xbf16, #tpu.memory_space<vmem>>, vector<1x1x32x8xbf16>
    %298 = vector.shape_cast %297 : vector<1x1x32x8xbf16> to vector<32x8xbf16>
    %cst_223 = arith.constant dense<0.000000e+00> : vector<16x8xf32>
    %299 = tpu.matmul %282, %298, %cst_223 {dimension_numbers = #tpu.dot_dimension_numbers<[1], [0], [0], [1], [0, 0, 1, 1], [], []>} : vector<16x32xbf16>, vector<32x8xbf16>, vector<16x8xf32> -> vector<16x8xf32>
    %c1_224 = arith.constant 1 : index
    %c0_225 = arith.constant 0 : index
    %c0_226 = arith.constant 0 : index
    %c0_227 = arith.constant 0 : index
    %300 = vector.load %arg11[%c1_224, %c0_225, %c0_226, %c0_227] : memref<2x4x1x8xf32, #tpu.memory_space<vmem>>, vector<1x1x1x8xf32>
    %301 = vector.shape_cast %300 : vector<1x1x1x8xf32> to vector<1x8xf32>
    %302 = vector.broadcast %301 : vector<1x8xf32> to vector<16x8xf32>
    %303 = arith.addf %299, %302 : vector<16x8xf32>
    %304 = arith.truncf %289 : vector<16x8xf32> to vector<16x8xbf16>
    %305 = arith.truncf %296 : vector<16x8xf32> to vector<16x8xbf16>
    %cst_228 = arith.constant dense<0.000000e+00> : vector<16x16xf32>
    %306 = tpu.matmul %304, %305, %cst_228 {dimension_numbers = #tpu.dot_dimension_numbers<[1], [1], [0], [0], [0, 0, 1, 0], [], []>} : vector<16x8xbf16>, vector<16x8xbf16>, vector<16x16xf32> -> vector<16x16xf32>
    %cst_229 = arith.constant dense<0xFF800000> : vector<16xf32>
    %307 = vector.multi_reduction <maximumf>, %306, %cst_229 [1] : vector<16x16xf32> to vector<16xf32>
    %308 = vector.shape_cast %307 : vector<16xf32> to vector<16x1xf32>
    %309 = vector.broadcast %308 : vector<16x1xf32> to vector<16x16xf32>
    %310 = arith.subf %306, %309 : vector<16x16xf32>
    %311 = math.exp %310 : vector<16x16xf32>
    %cst_230 = arith.constant dense<0.000000e+00> : vector<16xf32>
    %312 = vector.multi_reduction <add>, %311, %cst_230 [1] : vector<16x16xf32> to vector<16xf32>
    %313 = vector.shape_cast %312 : vector<16xf32> to vector<16x1xf32>
    %314 = tpu.reciprocal %313 {approx = true} : vector<16x1xf32> -> vector<16x1xf32>
    %315 = vector.broadcast %314 : vector<16x1xf32> to vector<16x16xf32>
    %316 = arith.mulf %311, %315 : vector<16x16xf32>
    %317 = arith.truncf %316 : vector<16x16xf32> to vector<16x16xbf16>
    %318 = arith.truncf %303 : vector<16x8xf32> to vector<16x8xbf16>
    %cst_231 = arith.constant dense<0.000000e+00> : vector<16x8xf32>
    %319 = tpu.matmul %317, %318, %cst_231 {dimension_numbers = #tpu.dot_dimension_numbers<[1], [0], [0], [1], [0, 0, 1, 1], [], []>} : vector<16x16xbf16>, vector<16x8xbf16>, vector<16x8xf32> -> vector<16x8xf32>
    %320 = arith.truncf %319 : vector<16x8xf32> to vector<16x8xbf16>
    %c1_232 = arith.constant 1 : index
    %c0_233 = arith.constant 0 : index
    %c0_234 = arith.constant 0 : index
    %c0_235 = arith.constant 0 : index
    %321 = vector.load %arg12[%c1_232, %c0_233, %c0_234, %c0_235] : memref<2x4x8x32xbf16, #tpu.memory_space<vmem>>, vector<1x1x8x32xbf16>
    %322 = vector.shape_cast %321 : vector<1x1x8x32xbf16> to vector<8x32xbf16>
    %cst_236 = arith.constant dense<0.000000e+00> : vector<16x32xf32>
    %323 = tpu.matmul %320, %322, %cst_236 {dimension_numbers = #tpu.dot_dimension_numbers<[1], [0], [0], [1], [0, 0, 1, 1], [], []>} : vector<16x8xbf16>, vector<8x32xbf16>, vector<16x32xf32> -> vector<16x32xf32>
    %c1_237 = arith.constant 1 : index
    %c1_238 = arith.constant 1 : index
    %c0_239 = arith.constant 0 : index
    %c0_240 = arith.constant 0 : index
    %324 = vector.load %arg6[%c1_237, %c1_238, %c0_239, %c0_240] : memref<2x4x32x8xbf16, #tpu.memory_space<vmem>>, vector<1x1x32x8xbf16>
    %325 = vector.shape_cast %324 : vector<1x1x32x8xbf16> to vector<32x8xbf16>
    %cst_241 = arith.constant dense<0.000000e+00> : vector<16x8xf32>
    %326 = tpu.matmul %282, %325, %cst_241 {dimension_numbers = #tpu.dot_dimension_numbers<[1], [0], [0], [1], [0, 0, 1, 1], [], []>} : vector<16x32xbf16>, vector<32x8xbf16>, vector<16x8xf32> -> vector<16x8xf32>
    %c1_242 = arith.constant 1 : index
    %c1_243 = arith.constant 1 : index
    %c0_244 = arith.constant 0 : index
    %c0_245 = arith.constant 0 : index
    %327 = vector.load %arg7[%c1_242, %c1_243, %c0_244, %c0_245] : memref<2x4x1x8xf32, #tpu.memory_space<vmem>>, vector<1x1x1x8xf32>
    %328 = vector.shape_cast %327 : vector<1x1x1x8xf32> to vector<1x8xf32>
    %329 = vector.broadcast %328 : vector<1x8xf32> to vector<16x8xf32>
    %330 = arith.addf %326, %329 : vector<16x8xf32>
    %c1_246 = arith.constant 1 : index
    %c1_247 = arith.constant 1 : index
    %c0_248 = arith.constant 0 : index
    %c0_249 = arith.constant 0 : index
    %331 = vector.load %arg8[%c1_246, %c1_247, %c0_248, %c0_249] : memref<2x4x32x8xbf16, #tpu.memory_space<vmem>>, vector<1x1x32x8xbf16>
    %332 = vector.shape_cast %331 : vector<1x1x32x8xbf16> to vector<32x8xbf16>
    %cst_250 = arith.constant dense<0.000000e+00> : vector<16x8xf32>
    %333 = tpu.matmul %282, %332, %cst_250 {dimension_numbers = #tpu.dot_dimension_numbers<[1], [0], [0], [1], [0, 0, 1, 1], [], []>} : vector<16x32xbf16>, vector<32x8xbf16>, vector<16x8xf32> -> vector<16x8xf32>
    %c1_251 = arith.constant 1 : index
    %c1_252 = arith.constant 1 : index
    %c0_253 = arith.constant 0 : index
    %c0_254 = arith.constant 0 : index
    %334 = vector.load %arg9[%c1_251, %c1_252, %c0_253, %c0_254] : memref<2x4x1x8xf32, #tpu.memory_space<vmem>>, vector<1x1x1x8xf32>
    %335 = vector.shape_cast %334 : vector<1x1x1x8xf32> to vector<1x8xf32>
    %336 = vector.broadcast %335 : vector<1x8xf32> to vector<16x8xf32>
    %337 = arith.addf %333, %336 : vector<16x8xf32>
    %c1_255 = arith.constant 1 : index
    %c1_256 = arith.constant 1 : index
    %c0_257 = arith.constant 0 : index
    %c0_258 = arith.constant 0 : index
    %338 = vector.load %arg10[%c1_255, %c1_256, %c0_257, %c0_258] : memref<2x4x32x8xbf16, #tpu.memory_space<vmem>>, vector<1x1x32x8xbf16>
    %339 = vector.shape_cast %338 : vector<1x1x32x8xbf16> to vector<32x8xbf16>
    %cst_259 = arith.constant dense<0.000000e+00> : vector<16x8xf32>
    %340 = tpu.matmul %282, %339, %cst_259 {dimension_numbers = #tpu.dot_dimension_numbers<[1], [0], [0], [1], [0, 0, 1, 1], [], []>} : vector<16x32xbf16>, vector<32x8xbf16>, vector<16x8xf32> -> vector<16x8xf32>
    %c1_260 = arith.constant 1 : index
    %c1_261 = arith.constant 1 : index
    %c0_262 = arith.constant 0 : index
    %c0_263 = arith.constant 0 : index
    %341 = vector.load %arg11[%c1_260, %c1_261, %c0_262, %c0_263] : memref<2x4x1x8xf32, #tpu.memory_space<vmem>>, vector<1x1x1x8xf32>
    %342 = vector.shape_cast %341 : vector<1x1x1x8xf32> to vector<1x8xf32>
    %343 = vector.broadcast %342 : vector<1x8xf32> to vector<16x8xf32>
    %344 = arith.addf %340, %343 : vector<16x8xf32>
    %345 = arith.truncf %330 : vector<16x8xf32> to vector<16x8xbf16>
    %346 = arith.truncf %337 : vector<16x8xf32> to vector<16x8xbf16>
    %cst_264 = arith.constant dense<0.000000e+00> : vector<16x16xf32>
    %347 = tpu.matmul %345, %346, %cst_264 {dimension_numbers = #tpu.dot_dimension_numbers<[1], [1], [0], [0], [0, 0, 1, 0], [], []>} : vector<16x8xbf16>, vector<16x8xbf16>, vector<16x16xf32> -> vector<16x16xf32>
    %cst_265 = arith.constant dense<0xFF800000> : vector<16xf32>
    %348 = vector.multi_reduction <maximumf>, %347, %cst_265 [1] : vector<16x16xf32> to vector<16xf32>
    %349 = vector.shape_cast %348 : vector<16xf32> to vector<16x1xf32>
    %350 = vector.broadcast %349 : vector<16x1xf32> to vector<16x16xf32>
    %351 = arith.subf %347, %350 : vector<16x16xf32>
    %352 = math.exp %351 : vector<16x16xf32>
    %cst_266 = arith.constant dense<0.000000e+00> : vector<16xf32>
    %353 = vector.multi_reduction <add>, %352, %cst_266 [1] : vector<16x16xf32> to vector<16xf32>
    %354 = vector.shape_cast %353 : vector<16xf32> to vector<16x1xf32>
    %355 = tpu.reciprocal %354 {approx = true} : vector<16x1xf32> -> vector<16x1xf32>
    %356 = vector.broadcast %355 : vector<16x1xf32> to vector<16x16xf32>
    %357 = arith.mulf %352, %356 : vector<16x16xf32>
    %358 = arith.truncf %357 : vector<16x16xf32> to vector<16x16xbf16>
    %359 = arith.truncf %344 : vector<16x8xf32> to vector<16x8xbf16>
    %cst_267 = arith.constant dense<0.000000e+00> : vector<16x8xf32>
    %360 = tpu.matmul %358, %359, %cst_267 {dimension_numbers = #tpu.dot_dimension_numbers<[1], [0], [0], [1], [0, 0, 1, 1], [], []>} : vector<16x16xbf16>, vector<16x8xbf16>, vector<16x8xf32> -> vector<16x8xf32>
    %361 = arith.truncf %360 : vector<16x8xf32> to vector<16x8xbf16>
    %c1_268 = arith.constant 1 : index
    %c1_269 = arith.constant 1 : index
    %c0_270 = arith.constant 0 : index
    %c0_271 = arith.constant 0 : index
    %362 = vector.load %arg12[%c1_268, %c1_269, %c0_270, %c0_271] : memref<2x4x8x32xbf16, #tpu.memory_space<vmem>>, vector<1x1x8x32xbf16>
    %363 = vector.shape_cast %362 : vector<1x1x8x32xbf16> to vector<8x32xbf16>
    %cst_272 = arith.constant dense<0.000000e+00> : vector<16x32xf32>
    %364 = tpu.matmul %361, %363, %cst_272 {dimension_numbers = #tpu.dot_dimension_numbers<[1], [0], [0], [1], [0, 0, 1, 1], [], []>} : vector<16x8xbf16>, vector<8x32xbf16>, vector<16x32xf32> -> vector<16x32xf32>
    %365 = arith.addf %323, %364 : vector<16x32xf32>
    %c1_273 = arith.constant 1 : index
    %c2_274 = arith.constant 2 : index
    %c0_275 = arith.constant 0 : index
    %c0_276 = arith.constant 0 : index
    %366 = vector.load %arg6[%c1_273, %c2_274, %c0_275, %c0_276] : memref<2x4x32x8xbf16, #tpu.memory_space<vmem>>, vector<1x1x32x8xbf16>
    %367 = vector.shape_cast %366 : vector<1x1x32x8xbf16> to vector<32x8xbf16>
    %cst_277 = arith.constant dense<0.000000e+00> : vector<16x8xf32>
    %368 = tpu.matmul %282, %367, %cst_277 {dimension_numbers = #tpu.dot_dimension_numbers<[1], [0], [0], [1], [0, 0, 1, 1], [], []>} : vector<16x32xbf16>, vector<32x8xbf16>, vector<16x8xf32> -> vector<16x8xf32>
    %c1_278 = arith.constant 1 : index
    %c2_279 = arith.constant 2 : index
    %c0_280 = arith.constant 0 : index
    %c0_281 = arith.constant 0 : index
    %369 = vector.load %arg7[%c1_278, %c2_279, %c0_280, %c0_281] : memref<2x4x1x8xf32, #tpu.memory_space<vmem>>, vector<1x1x1x8xf32>
    %370 = vector.shape_cast %369 : vector<1x1x1x8xf32> to vector<1x8xf32>
    %371 = vector.broadcast %370 : vector<1x8xf32> to vector<16x8xf32>
    %372 = arith.addf %368, %371 : vector<16x8xf32>
    %c1_282 = arith.constant 1 : index
    %c2_283 = arith.constant 2 : index
    %c0_284 = arith.constant 0 : index
    %c0_285 = arith.constant 0 : index
    %373 = vector.load %arg8[%c1_282, %c2_283, %c0_284, %c0_285] : memref<2x4x32x8xbf16, #tpu.memory_space<vmem>>, vector<1x1x32x8xbf16>
    %374 = vector.shape_cast %373 : vector<1x1x32x8xbf16> to vector<32x8xbf16>
    %cst_286 = arith.constant dense<0.000000e+00> : vector<16x8xf32>
    %375 = tpu.matmul %282, %374, %cst_286 {dimension_numbers = #tpu.dot_dimension_numbers<[1], [0], [0], [1], [0, 0, 1, 1], [], []>} : vector<16x32xbf16>, vector<32x8xbf16>, vector<16x8xf32> -> vector<16x8xf32>
    %c1_287 = arith.constant 1 : index
    %c2_288 = arith.constant 2 : index
    %c0_289 = arith.constant 0 : index
    %c0_290 = arith.constant 0 : index
    %376 = vector.load %arg9[%c1_287, %c2_288, %c0_289, %c0_290] : memref<2x4x1x8xf32, #tpu.memory_space<vmem>>, vector<1x1x1x8xf32>
    %377 = vector.shape_cast %376 : vector<1x1x1x8xf32> to vector<1x8xf32>
    %378 = vector.broadcast %377 : vector<1x8xf32> to vector<16x8xf32>
    %379 = arith.addf %375, %378 : vector<16x8xf32>
    %c1_291 = arith.constant 1 : index
    %c2_292 = arith.constant 2 : index
    %c0_293 = arith.constant 0 : index
    %c0_294 = arith.constant 0 : index
    %380 = vector.load %arg10[%c1_291, %c2_292, %c0_293, %c0_294] : memref<2x4x32x8xbf16, #tpu.memory_space<vmem>>, vector<1x1x32x8xbf16>
    %381 = vector.shape_cast %380 : vector<1x1x32x8xbf16> to vector<32x8xbf16>
    %cst_295 = arith.constant dense<0.000000e+00> : vector<16x8xf32>
    %382 = tpu.matmul %282, %381, %cst_295 {dimension_numbers = #tpu.dot_dimension_numbers<[1], [0], [0], [1], [0, 0, 1, 1], [], []>} : vector<16x32xbf16>, vector<32x8xbf16>, vector<16x8xf32> -> vector<16x8xf32>
    %c1_296 = arith.constant 1 : index
    %c2_297 = arith.constant 2 : index
    %c0_298 = arith.constant 0 : index
    %c0_299 = arith.constant 0 : index
    %383 = vector.load %arg11[%c1_296, %c2_297, %c0_298, %c0_299] : memref<2x4x1x8xf32, #tpu.memory_space<vmem>>, vector<1x1x1x8xf32>
    %384 = vector.shape_cast %383 : vector<1x1x1x8xf32> to vector<1x8xf32>
    %385 = vector.broadcast %384 : vector<1x8xf32> to vector<16x8xf32>
    %386 = arith.addf %382, %385 : vector<16x8xf32>
    %387 = arith.truncf %372 : vector<16x8xf32> to vector<16x8xbf16>
    %388 = arith.truncf %379 : vector<16x8xf32> to vector<16x8xbf16>
    %cst_300 = arith.constant dense<0.000000e+00> : vector<16x16xf32>
    %389 = tpu.matmul %387, %388, %cst_300 {dimension_numbers = #tpu.dot_dimension_numbers<[1], [1], [0], [0], [0, 0, 1, 0], [], []>} : vector<16x8xbf16>, vector<16x8xbf16>, vector<16x16xf32> -> vector<16x16xf32>
    %cst_301 = arith.constant dense<0xFF800000> : vector<16xf32>
    %390 = vector.multi_reduction <maximumf>, %389, %cst_301 [1] : vector<16x16xf32> to vector<16xf32>
    %391 = vector.shape_cast %390 : vector<16xf32> to vector<16x1xf32>
    %392 = vector.broadcast %391 : vector<16x1xf32> to vector<16x16xf32>
    %393 = arith.subf %389, %392 : vector<16x16xf32>
    %394 = math.exp %393 : vector<16x16xf32>
    %cst_302 = arith.constant dense<0.000000e+00> : vector<16xf32>
    %395 = vector.multi_reduction <add>, %394, %cst_302 [1] : vector<16x16xf32> to vector<16xf32>
    %396 = vector.shape_cast %395 : vector<16xf32> to vector<16x1xf32>
    %397 = tpu.reciprocal %396 {approx = true} : vector<16x1xf32> -> vector<16x1xf32>
    %398 = vector.broadcast %397 : vector<16x1xf32> to vector<16x16xf32>
    %399 = arith.mulf %394, %398 : vector<16x16xf32>
    %400 = arith.truncf %399 : vector<16x16xf32> to vector<16x16xbf16>
    %401 = arith.truncf %386 : vector<16x8xf32> to vector<16x8xbf16>
    %cst_303 = arith.constant dense<0.000000e+00> : vector<16x8xf32>
    %402 = tpu.matmul %400, %401, %cst_303 {dimension_numbers = #tpu.dot_dimension_numbers<[1], [0], [0], [1], [0, 0, 1, 1], [], []>} : vector<16x16xbf16>, vector<16x8xbf16>, vector<16x8xf32> -> vector<16x8xf32>
    %403 = arith.truncf %402 : vector<16x8xf32> to vector<16x8xbf16>
    %c1_304 = arith.constant 1 : index
    %c2_305 = arith.constant 2 : index
    %c0_306 = arith.constant 0 : index
    %c0_307 = arith.constant 0 : index
    %404 = vector.load %arg12[%c1_304, %c2_305, %c0_306, %c0_307] : memref<2x4x8x32xbf16, #tpu.memory_space<vmem>>, vector<1x1x8x32xbf16>
    %405 = vector.shape_cast %404 : vector<1x1x8x32xbf16> to vector<8x32xbf16>
    %cst_308 = arith.constant dense<0.000000e+00> : vector<16x32xf32>
    %406 = tpu.matmul %403, %405, %cst_308 {dimension_numbers = #tpu.dot_dimension_numbers<[1], [0], [0], [1], [0, 0, 1, 1], [], []>} : vector<16x8xbf16>, vector<8x32xbf16>, vector<16x32xf32> -> vector<16x32xf32>
    %407 = arith.addf %365, %406 : vector<16x32xf32>
    %c1_309 = arith.constant 1 : index
    %c3_310 = arith.constant 3 : index
    %c0_311 = arith.constant 0 : index
    %c0_312 = arith.constant 0 : index
    %408 = vector.load %arg6[%c1_309, %c3_310, %c0_311, %c0_312] : memref<2x4x32x8xbf16, #tpu.memory_space<vmem>>, vector<1x1x32x8xbf16>
    %409 = vector.shape_cast %408 : vector<1x1x32x8xbf16> to vector<32x8xbf16>
    %cst_313 = arith.constant dense<0.000000e+00> : vector<16x8xf32>
    %410 = tpu.matmul %282, %409, %cst_313 {dimension_numbers = #tpu.dot_dimension_numbers<[1], [0], [0], [1], [0, 0, 1, 1], [], []>} : vector<16x32xbf16>, vector<32x8xbf16>, vector<16x8xf32> -> vector<16x8xf32>
    %c1_314 = arith.constant 1 : index
    %c3_315 = arith.constant 3 : index
    %c0_316 = arith.constant 0 : index
    %c0_317 = arith.constant 0 : index
    %411 = vector.load %arg7[%c1_314, %c3_315, %c0_316, %c0_317] : memref<2x4x1x8xf32, #tpu.memory_space<vmem>>, vector<1x1x1x8xf32>
    %412 = vector.shape_cast %411 : vector<1x1x1x8xf32> to vector<1x8xf32>
    %413 = vector.broadcast %412 : vector<1x8xf32> to vector<16x8xf32>
    %414 = arith.addf %410, %413 : vector<16x8xf32>
    %c1_318 = arith.constant 1 : index
    %c3_319 = arith.constant 3 : index
    %c0_320 = arith.constant 0 : index
    %c0_321 = arith.constant 0 : index
    %415 = vector.load %arg8[%c1_318, %c3_319, %c0_320, %c0_321] : memref<2x4x32x8xbf16, #tpu.memory_space<vmem>>, vector<1x1x32x8xbf16>
    %416 = vector.shape_cast %415 : vector<1x1x32x8xbf16> to vector<32x8xbf16>
    %cst_322 = arith.constant dense<0.000000e+00> : vector<16x8xf32>
    %417 = tpu.matmul %282, %416, %cst_322 {dimension_numbers = #tpu.dot_dimension_numbers<[1], [0], [0], [1], [0, 0, 1, 1], [], []>} : vector<16x32xbf16>, vector<32x8xbf16>, vector<16x8xf32> -> vector<16x8xf32>
    %c1_323 = arith.constant 1 : index
    %c3_324 = arith.constant 3 : index
    %c0_325 = arith.constant 0 : index
    %c0_326 = arith.constant 0 : index
    %418 = vector.load %arg9[%c1_323, %c3_324, %c0_325, %c0_326] : memref<2x4x1x8xf32, #tpu.memory_space<vmem>>, vector<1x1x1x8xf32>
    %419 = vector.shape_cast %418 : vector<1x1x1x8xf32> to vector<1x8xf32>
    %420 = vector.broadcast %419 : vector<1x8xf32> to vector<16x8xf32>
    %421 = arith.addf %417, %420 : vector<16x8xf32>
    %c1_327 = arith.constant 1 : index
    %c3_328 = arith.constant 3 : index
    %c0_329 = arith.constant 0 : index
    %c0_330 = arith.constant 0 : index
    %422 = vector.load %arg10[%c1_327, %c3_328, %c0_329, %c0_330] : memref<2x4x32x8xbf16, #tpu.memory_space<vmem>>, vector<1x1x32x8xbf16>
    %423 = vector.shape_cast %422 : vector<1x1x32x8xbf16> to vector<32x8xbf16>
    %cst_331 = arith.constant dense<0.000000e+00> : vector<16x8xf32>
    %424 = tpu.matmul %282, %423, %cst_331 {dimension_numbers = #tpu.dot_dimension_numbers<[1], [0], [0], [1], [0, 0, 1, 1], [], []>} : vector<16x32xbf16>, vector<32x8xbf16>, vector<16x8xf32> -> vector<16x8xf32>
    %c1_332 = arith.constant 1 : index
    %c3_333 = arith.constant 3 : index
    %c0_334 = arith.constant 0 : index
    %c0_335 = arith.constant 0 : index
    %425 = vector.load %arg11[%c1_332, %c3_333, %c0_334, %c0_335] : memref<2x4x1x8xf32, #tpu.memory_space<vmem>>, vector<1x1x1x8xf32>
    %426 = vector.shape_cast %425 : vector<1x1x1x8xf32> to vector<1x8xf32>
    %427 = vector.broadcast %426 : vector<1x8xf32> to vector<16x8xf32>
    %428 = arith.addf %424, %427 : vector<16x8xf32>
    %429 = arith.truncf %414 : vector<16x8xf32> to vector<16x8xbf16>
    %430 = arith.truncf %421 : vector<16x8xf32> to vector<16x8xbf16>
    %cst_336 = arith.constant dense<0.000000e+00> : vector<16x16xf32>
    %431 = tpu.matmul %429, %430, %cst_336 {dimension_numbers = #tpu.dot_dimension_numbers<[1], [1], [0], [0], [0, 0, 1, 0], [], []>} : vector<16x8xbf16>, vector<16x8xbf16>, vector<16x16xf32> -> vector<16x16xf32>
    %cst_337 = arith.constant dense<0xFF800000> : vector<16xf32>
    %432 = vector.multi_reduction <maximumf>, %431, %cst_337 [1] : vector<16x16xf32> to vector<16xf32>
    %433 = vector.shape_cast %432 : vector<16xf32> to vector<16x1xf32>
    %434 = vector.broadcast %433 : vector<16x1xf32> to vector<16x16xf32>
    %435 = arith.subf %431, %434 : vector<16x16xf32>
    %436 = math.exp %435 : vector<16x16xf32>
    %cst_338 = arith.constant dense<0.000000e+00> : vector<16xf32>
    %437 = vector.multi_reduction <add>, %436, %cst_338 [1] : vector<16x16xf32> to vector<16xf32>
    %438 = vector.shape_cast %437 : vector<16xf32> to vector<16x1xf32>
    %439 = tpu.reciprocal %438 {approx = true} : vector<16x1xf32> -> vector<16x1xf32>
    %440 = vector.broadcast %439 : vector<16x1xf32> to vector<16x16xf32>
    %441 = arith.mulf %436, %440 : vector<16x16xf32>
    %442 = arith.truncf %441 : vector<16x16xf32> to vector<16x16xbf16>
    %443 = arith.truncf %428 : vector<16x8xf32> to vector<16x8xbf16>
    %cst_339 = arith.constant dense<0.000000e+00> : vector<16x8xf32>
    %444 = tpu.matmul %442, %443, %cst_339 {dimension_numbers = #tpu.dot_dimension_numbers<[1], [0], [0], [1], [0, 0, 1, 1], [], []>} : vector<16x16xbf16>, vector<16x8xbf16>, vector<16x8xf32> -> vector<16x8xf32>
    %445 = arith.truncf %444 : vector<16x8xf32> to vector<16x8xbf16>
    %c1_340 = arith.constant 1 : index
    %c3_341 = arith.constant 3 : index
    %c0_342 = arith.constant 0 : index
    %c0_343 = arith.constant 0 : index
    %446 = vector.load %arg12[%c1_340, %c3_341, %c0_342, %c0_343] : memref<2x4x8x32xbf16, #tpu.memory_space<vmem>>, vector<1x1x8x32xbf16>
    %447 = vector.shape_cast %446 : vector<1x1x8x32xbf16> to vector<8x32xbf16>
    %cst_344 = arith.constant dense<0.000000e+00> : vector<16x32xf32>
    %448 = tpu.matmul %445, %447, %cst_344 {dimension_numbers = #tpu.dot_dimension_numbers<[1], [0], [0], [1], [0, 0, 1, 1], [], []>} : vector<16x8xbf16>, vector<8x32xbf16>, vector<16x32xf32> -> vector<16x32xf32>
    %449 = arith.addf %407, %448 : vector<16x32xf32>
    %450 = arith.addf %257, %449 : vector<16x32xf32>
    %c1_345 = arith.constant 1 : index
    %c0_346 = arith.constant 0 : index
    %c0_347 = arith.constant 0 : index
    %451 = vector.load %arg13[%c1_345, %c0_346, %c0_347] : memref<2x1x32xf32, #tpu.memory_space<vmem>>, vector<1x1x32xf32>
    %452 = vector.shape_cast %451 : vector<1x1x32xf32> to vector<1x32xf32>
    %453 = vector.broadcast %452 : vector<1x32xf32> to vector<16x32xf32>
    %454 = arith.addf %450, %453 : vector<16x32xf32>
    %c1_348 = arith.constant 1 : index
    %c0_349 = arith.constant 0 : index
    %c0_350 = arith.constant 0 : index
    %455 = vector.load %arg14[%c1_348, %c0_349, %c0_350] : memref<2x1x32xf32, #tpu.memory_space<vmem>>, vector<1x1x32xf32>
    %456 = vector.shape_cast %455 : vector<1x1x32xf32> to vector<1x32xf32>
    %c1_351 = arith.constant 1 : index
    %c0_352 = arith.constant 0 : index
    %c0_353 = arith.constant 0 : index
    %457 = vector.load %arg15[%c1_351, %c0_352, %c0_353] : memref<2x1x32xf32, #tpu.memory_space<vmem>>, vector<1x1x32xf32>
    %458 = vector.shape_cast %457 : vector<1x1x32xf32> to vector<1x32xf32>
    %cst_354 = arith.constant dense<0.000000e+00> : vector<16xf32>
    %459 = vector.multi_reduction <add>, %454, %cst_354 [1] : vector<16x32xf32> to vector<16xf32>
    %460 = vector.shape_cast %459 : vector<16xf32> to vector<16x1xf32>
    %cst_355 = arith.constant 3.200000e+01 : f32
    %461 = vector.broadcast %cst_355 : f32 to vector<16x1xf32>
    %462 = arith.divf %460, %461 : vector<16x1xf32>
    %463 = vector.broadcast %462 : vector<16x1xf32> to vector<16x32xf32>
    %464 = arith.subf %454, %463 : vector<16x32xf32>
    %465 = arith.mulf %464, %464 : vector<16x32xf32>
    %cst_356 = arith.constant dense<0.000000e+00> : vector<16xf32>
    %466 = vector.multi_reduction <add>, %465, %cst_356 [1] : vector<16x32xf32> to vector<16xf32>
    %467 = vector.shape_cast %466 : vector<16xf32> to vector<16x1xf32>
    %cst_357 = arith.constant 3.200000e+01 : f32
    %468 = vector.broadcast %cst_357 : f32 to vector<16x1xf32>
    %469 = arith.divf %467, %468 : vector<16x1xf32>
    %cst_358 = arith.constant 9.99999974E-6 : f32
    %470 = vector.broadcast %cst_358 : f32 to vector<16x1xf32>
    %471 = arith.addf %469, %470 : vector<16x1xf32>
    %472 = math.rsqrt %471 : vector<16x1xf32>
    %473 = vector.broadcast %472 : vector<16x1xf32> to vector<16x32xf32>
    %474 = arith.mulf %464, %473 : vector<16x32xf32>
    %475 = vector.broadcast %456 : vector<1x32xf32> to vector<16x32xf32>
    %476 = arith.mulf %474, %475 : vector<16x32xf32>
    %477 = vector.broadcast %458 : vector<1x32xf32> to vector<16x32xf32>
    %478 = arith.addf %476, %477 : vector<16x32xf32>
    %479 = arith.truncf %478 : vector<16x32xf32> to vector<16x32xbf16>
    %c1_359 = arith.constant 1 : index
    %c0_360 = arith.constant 0 : index
    %c0_361 = arith.constant 0 : index
    %480 = vector.load %arg16[%c1_359, %c0_360, %c0_361] : memref<2x32x128xbf16, #tpu.memory_space<vmem>>, vector<1x32x128xbf16>
    %481 = vector.shape_cast %480 : vector<1x32x128xbf16> to vector<32x128xbf16>
    %cst_362 = arith.constant dense<0.000000e+00> : vector<16x128xf32>
    %482 = tpu.matmul %479, %481, %cst_362 {dimension_numbers = #tpu.dot_dimension_numbers<[1], [0], [0], [1], [0, 0, 1, 1], [], []>} : vector<16x32xbf16>, vector<32x128xbf16>, vector<16x128xf32> -> vector<16x128xf32>
    %c1_363 = arith.constant 1 : index
    %c0_364 = arith.constant 0 : index
    %c0_365 = arith.constant 0 : index
    %483 = vector.load %arg17[%c1_363, %c0_364, %c0_365] : memref<2x1x128xf32, #tpu.memory_space<vmem>>, vector<1x1x128xf32>
    %484 = vector.shape_cast %483 : vector<1x1x128xf32> to vector<1x128xf32>
    %485 = vector.broadcast %484 : vector<1x128xf32> to vector<16x128xf32>
    %486 = arith.addf %482, %485 : vector<16x128xf32>
    %cst_366 = arith.constant 5.000000e-01 : f32
    %487 = vector.broadcast %cst_366 : f32 to vector<16x128xf32>
    %488 = arith.mulf %487, %486 : vector<16x128xf32>
    %cst_367 = arith.constant 4.471500e-02 : f32
    %489 = vector.broadcast %cst_367 : f32 to vector<16x128xf32>
    %490 = arith.mulf %489, %486 : vector<16x128xf32>
    %491 = arith.mulf %490, %486 : vector<16x128xf32>
    %492 = arith.mulf %491, %486 : vector<16x128xf32>
    %493 = arith.addf %486, %492 : vector<16x128xf32>
    %cst_368 = arith.constant 0.797884583 : f32
    %494 = vector.broadcast %cst_368 : f32 to vector<16x128xf32>
    %495 = arith.mulf %494, %493 : vector<16x128xf32>
    %496 = math.tanh %495 : vector<16x128xf32>
    %cst_369 = arith.constant 1.000000e+00 : f32
    %497 = vector.broadcast %cst_369 : f32 to vector<16x128xf32>
    %498 = arith.addf %497, %496 : vector<16x128xf32>
    %499 = arith.mulf %488, %498 : vector<16x128xf32>
    %500 = arith.truncf %499 : vector<16x128xf32> to vector<16x128xbf16>
    %c1_370 = arith.constant 1 : index
    %c0_371 = arith.constant 0 : index
    %c0_372 = arith.constant 0 : index
    %501 = vector.load %arg18[%c1_370, %c0_371, %c0_372] : memref<2x128x32xbf16, #tpu.memory_space<vmem>>, vector<1x128x32xbf16>
    %502 = vector.shape_cast %501 : vector<1x128x32xbf16> to vector<128x32xbf16>
    %cst_373 = arith.constant dense<0.000000e+00> : vector<16x32xf32>
    %503 = tpu.matmul %500, %502, %cst_373 {dimension_numbers = #tpu.dot_dimension_numbers<[1], [0], [0], [1], [0, 0, 1, 1], [], []>} : vector<16x128xbf16>, vector<128x32xbf16>, vector<16x32xf32> -> vector<16x32xf32>
    %504 = arith.addf %454, %503 : vector<16x32xf32>
    %c1_374 = arith.constant 1 : index
    %c0_375 = arith.constant 0 : index
    %c0_376 = arith.constant 0 : index
    %505 = vector.load %arg19[%c1_374, %c0_375, %c0_376] : memref<2x1x32xf32, #tpu.memory_space<vmem>>, vector<1x1x32xf32>
    %506 = vector.shape_cast %505 : vector<1x1x32xf32> to vector<1x32xf32>
    %507 = vector.broadcast %506 : vector<1x32xf32> to vector<16x32xf32>
    %508 = arith.addf %504, %507 : vector<16x32xf32>
    %509 = arith.truncf %508 : vector<16x32xf32> to vector<16x32xbf16>
    %c0_377 = arith.constant 0 : index
    %c0_378 = arith.constant 0 : index
    %510 = vector.load %arg20[%c0_377, %c0_378] : memref<32x32xbf16, #tpu.memory_space<vmem>>, vector<32x32xbf16>
    %cst_379 = arith.constant dense<0.000000e+00> : vector<16x32xf32>
    %511 = tpu.matmul %509, %510, %cst_379 {dimension_numbers = #tpu.dot_dimension_numbers<[1], [0], [0], [1], [0, 0, 1, 1], [], []>} : vector<16x32xbf16>, vector<32x32xbf16>, vector<16x32xf32> -> vector<16x32xf32>
    %c0_380 = arith.constant 0 : index
    %c0_381 = arith.constant 0 : index
    %512 = vector.load %arg21[%c0_380, %c0_381] : memref<1x32xf32, #tpu.memory_space<vmem>>, vector<1x32xf32>
    %c0_382 = arith.constant 0 : index
    %c0_383 = arith.constant 0 : index
    %513 = vector.load %arg22[%c0_382, %c0_383] : memref<1x32xf32, #tpu.memory_space<vmem>>, vector<1x32xf32>
    %cst_384 = arith.constant dense<0.000000e+00> : vector<16xf32>
    %514 = vector.multi_reduction <add>, %511, %cst_384 [1] : vector<16x32xf32> to vector<16xf32>
    %515 = vector.shape_cast %514 : vector<16xf32> to vector<16x1xf32>
    %cst_385 = arith.constant 3.200000e+01 : f32
    %516 = vector.broadcast %cst_385 : f32 to vector<16x1xf32>
    %517 = arith.divf %515, %516 : vector<16x1xf32>
    %518 = vector.broadcast %517 : vector<16x1xf32> to vector<16x32xf32>
    %519 = arith.subf %511, %518 : vector<16x32xf32>
    %520 = arith.mulf %519, %519 : vector<16x32xf32>
    %cst_386 = arith.constant dense<0.000000e+00> : vector<16xf32>
    %521 = vector.multi_reduction <add>, %520, %cst_386 [1] : vector<16x32xf32> to vector<16xf32>
    %522 = vector.shape_cast %521 : vector<16xf32> to vector<16x1xf32>
    %cst_387 = arith.constant 3.200000e+01 : f32
    %523 = vector.broadcast %cst_387 : f32 to vector<16x1xf32>
    %524 = arith.divf %522, %523 : vector<16x1xf32>
    %cst_388 = arith.constant 9.99999997E-7 : f32
    %525 = vector.broadcast %cst_388 : f32 to vector<16x1xf32>
    %526 = arith.addf %524, %525 : vector<16x1xf32>
    %527 = math.rsqrt %526 : vector<16x1xf32>
    %528 = vector.broadcast %527 : vector<16x1xf32> to vector<16x32xf32>
    %529 = arith.mulf %519, %528 : vector<16x32xf32>
    %530 = vector.broadcast %512 : vector<1x32xf32> to vector<16x32xf32>
    %531 = arith.mulf %529, %530 : vector<16x32xf32>
    %532 = vector.broadcast %513 : vector<1x32xf32> to vector<16x32xf32>
    %533 = arith.addf %531, %532 : vector<16x32xf32>
    %534 = arith.truncf %533 : vector<16x32xf32> to vector<16x32xbf16>
    %c0_389 = arith.constant 0 : index
    %c0_390 = arith.constant 0 : index
    %c0_391 = arith.constant 0 : index
    %535 = vector.load %arg23[%c0_389, %c0_390, %c0_391] : memref<9x16x16xbf16, #tpu.memory_space<vmem>>, vector<1x16x16xbf16>
    %536 = vector.shape_cast %535 : vector<1x16x16xbf16> to vector<16x16xbf16>
    %cst_392 = arith.constant dense<0.000000e+00> : vector<16x32xf32>
    %537 = tpu.matmul %536, %534, %cst_392 {dimension_numbers = #tpu.dot_dimension_numbers<[1], [0], [0], [1], [0, 0, 1, 1], [], []>} : vector<16x16xbf16>, vector<16x32xbf16>, vector<16x32xf32> -> vector<16x32xf32>
    %538 = arith.truncf %537 : vector<16x32xf32> to vector<16x32xbf16>
    %c0_393 = arith.constant 0 : index
    %c0_394 = arith.constant 0 : index
    %c0_395 = arith.constant 0 : index
    %539 = vector.load %arg24[%c0_393, %c0_394, %c0_395] : memref<9x32x32xbf16, #tpu.memory_space<vmem>>, vector<1x32x32xbf16>
    %540 = vector.shape_cast %539 : vector<1x32x32xbf16> to vector<32x32xbf16>
    %cst_396 = arith.constant dense<0.000000e+00> : vector<16x32xf32>
    %541 = tpu.matmul %538, %540, %cst_396 {dimension_numbers = #tpu.dot_dimension_numbers<[1], [0], [0], [1], [0, 0, 1, 1], [], []>} : vector<16x32xbf16>, vector<32x32xbf16>, vector<16x32xf32> -> vector<16x32xf32>
    %c1_397 = arith.constant 1 : index
    %c0_398 = arith.constant 0 : index
    %c0_399 = arith.constant 0 : index
    %542 = vector.load %arg23[%c1_397, %c0_398, %c0_399] : memref<9x16x16xbf16, #tpu.memory_space<vmem>>, vector<1x16x16xbf16>
    %543 = vector.shape_cast %542 : vector<1x16x16xbf16> to vector<16x16xbf16>
    %cst_400 = arith.constant dense<0.000000e+00> : vector<16x32xf32>
    %544 = tpu.matmul %543, %534, %cst_400 {dimension_numbers = #tpu.dot_dimension_numbers<[1], [0], [0], [1], [0, 0, 1, 1], [], []>} : vector<16x16xbf16>, vector<16x32xbf16>, vector<16x32xf32> -> vector<16x32xf32>
    %545 = arith.truncf %544 : vector<16x32xf32> to vector<16x32xbf16>
    %c1_401 = arith.constant 1 : index
    %c0_402 = arith.constant 0 : index
    %c0_403 = arith.constant 0 : index
    %546 = vector.load %arg24[%c1_401, %c0_402, %c0_403] : memref<9x32x32xbf16, #tpu.memory_space<vmem>>, vector<1x32x32xbf16>
    %547 = vector.shape_cast %546 : vector<1x32x32xbf16> to vector<32x32xbf16>
    %cst_404 = arith.constant dense<0.000000e+00> : vector<16x32xf32>
    %548 = tpu.matmul %545, %547, %cst_404 {dimension_numbers = #tpu.dot_dimension_numbers<[1], [0], [0], [1], [0, 0, 1, 1], [], []>} : vector<16x32xbf16>, vector<32x32xbf16>, vector<16x32xf32> -> vector<16x32xf32>
    %549 = arith.addf %541, %548 : vector<16x32xf32>
    %c2_405 = arith.constant 2 : index
    %c0_406 = arith.constant 0 : index
    %c0_407 = arith.constant 0 : index
    %550 = vector.load %arg23[%c2_405, %c0_406, %c0_407] : memref<9x16x16xbf16, #tpu.memory_space<vmem>>, vector<1x16x16xbf16>
    %551 = vector.shape_cast %550 : vector<1x16x16xbf16> to vector<16x16xbf16>
    %cst_408 = arith.constant dense<0.000000e+00> : vector<16x32xf32>
    %552 = tpu.matmul %551, %534, %cst_408 {dimension_numbers = #tpu.dot_dimension_numbers<[1], [0], [0], [1], [0, 0, 1, 1], [], []>} : vector<16x16xbf16>, vector<16x32xbf16>, vector<16x32xf32> -> vector<16x32xf32>
    %553 = arith.truncf %552 : vector<16x32xf32> to vector<16x32xbf16>
    %c2_409 = arith.constant 2 : index
    %c0_410 = arith.constant 0 : index
    %c0_411 = arith.constant 0 : index
    %554 = vector.load %arg24[%c2_409, %c0_410, %c0_411] : memref<9x32x32xbf16, #tpu.memory_space<vmem>>, vector<1x32x32xbf16>
    %555 = vector.shape_cast %554 : vector<1x32x32xbf16> to vector<32x32xbf16>
    %cst_412 = arith.constant dense<0.000000e+00> : vector<16x32xf32>
    %556 = tpu.matmul %553, %555, %cst_412 {dimension_numbers = #tpu.dot_dimension_numbers<[1], [0], [0], [1], [0, 0, 1, 1], [], []>} : vector<16x32xbf16>, vector<32x32xbf16>, vector<16x32xf32> -> vector<16x32xf32>
    %557 = arith.addf %549, %556 : vector<16x32xf32>
    %c3_413 = arith.constant 3 : index
    %c0_414 = arith.constant 0 : index
    %c0_415 = arith.constant 0 : index
    %558 = vector.load %arg23[%c3_413, %c0_414, %c0_415] : memref<9x16x16xbf16, #tpu.memory_space<vmem>>, vector<1x16x16xbf16>
    %559 = vector.shape_cast %558 : vector<1x16x16xbf16> to vector<16x16xbf16>
    %cst_416 = arith.constant dense<0.000000e+00> : vector<16x32xf32>
    %560 = tpu.matmul %559, %534, %cst_416 {dimension_numbers = #tpu.dot_dimension_numbers<[1], [0], [0], [1], [0, 0, 1, 1], [], []>} : vector<16x16xbf16>, vector<16x32xbf16>, vector<16x32xf32> -> vector<16x32xf32>
    %561 = arith.truncf %560 : vector<16x32xf32> to vector<16x32xbf16>
    %c3_417 = arith.constant 3 : index
    %c0_418 = arith.constant 0 : index
    %c0_419 = arith.constant 0 : index
    %562 = vector.load %arg24[%c3_417, %c0_418, %c0_419] : memref<9x32x32xbf16, #tpu.memory_space<vmem>>, vector<1x32x32xbf16>
    %563 = vector.shape_cast %562 : vector<1x32x32xbf16> to vector<32x32xbf16>
    %cst_420 = arith.constant dense<0.000000e+00> : vector<16x32xf32>
    %564 = tpu.matmul %561, %563, %cst_420 {dimension_numbers = #tpu.dot_dimension_numbers<[1], [0], [0], [1], [0, 0, 1, 1], [], []>} : vector<16x32xbf16>, vector<32x32xbf16>, vector<16x32xf32> -> vector<16x32xf32>
    %565 = arith.addf %557, %564 : vector<16x32xf32>
    %c4 = arith.constant 4 : index
    %c0_421 = arith.constant 0 : index
    %c0_422 = arith.constant 0 : index
    %566 = vector.load %arg23[%c4, %c0_421, %c0_422] : memref<9x16x16xbf16, #tpu.memory_space<vmem>>, vector<1x16x16xbf16>
    %567 = vector.shape_cast %566 : vector<1x16x16xbf16> to vector<16x16xbf16>
    %cst_423 = arith.constant dense<0.000000e+00> : vector<16x32xf32>
    %568 = tpu.matmul %567, %534, %cst_423 {dimension_numbers = #tpu.dot_dimension_numbers<[1], [0], [0], [1], [0, 0, 1, 1], [], []>} : vector<16x16xbf16>, vector<16x32xbf16>, vector<16x32xf32> -> vector<16x32xf32>
    %569 = arith.truncf %568 : vector<16x32xf32> to vector<16x32xbf16>
    %c4_424 = arith.constant 4 : index
    %c0_425 = arith.constant 0 : index
    %c0_426 = arith.constant 0 : index
    %570 = vector.load %arg24[%c4_424, %c0_425, %c0_426] : memref<9x32x32xbf16, #tpu.memory_space<vmem>>, vector<1x32x32xbf16>
    %571 = vector.shape_cast %570 : vector<1x32x32xbf16> to vector<32x32xbf16>
    %cst_427 = arith.constant dense<0.000000e+00> : vector<16x32xf32>
    %572 = tpu.matmul %569, %571, %cst_427 {dimension_numbers = #tpu.dot_dimension_numbers<[1], [0], [0], [1], [0, 0, 1, 1], [], []>} : vector<16x32xbf16>, vector<32x32xbf16>, vector<16x32xf32> -> vector<16x32xf32>
    %573 = arith.addf %565, %572 : vector<16x32xf32>
    %c5 = arith.constant 5 : index
    %c0_428 = arith.constant 0 : index
    %c0_429 = arith.constant 0 : index
    %574 = vector.load %arg23[%c5, %c0_428, %c0_429] : memref<9x16x16xbf16, #tpu.memory_space<vmem>>, vector<1x16x16xbf16>
    %575 = vector.shape_cast %574 : vector<1x16x16xbf16> to vector<16x16xbf16>
    %cst_430 = arith.constant dense<0.000000e+00> : vector<16x32xf32>
    %576 = tpu.matmul %575, %534, %cst_430 {dimension_numbers = #tpu.dot_dimension_numbers<[1], [0], [0], [1], [0, 0, 1, 1], [], []>} : vector<16x16xbf16>, vector<16x32xbf16>, vector<16x32xf32> -> vector<16x32xf32>
    %577 = arith.truncf %576 : vector<16x32xf32> to vector<16x32xbf16>
    %c5_431 = arith.constant 5 : index
    %c0_432 = arith.constant 0 : index
    %c0_433 = arith.constant 0 : index
    %578 = vector.load %arg24[%c5_431, %c0_432, %c0_433] : memref<9x32x32xbf16, #tpu.memory_space<vmem>>, vector<1x32x32xbf16>
    %579 = vector.shape_cast %578 : vector<1x32x32xbf16> to vector<32x32xbf16>
    %cst_434 = arith.constant dense<0.000000e+00> : vector<16x32xf32>
    %580 = tpu.matmul %577, %579, %cst_434 {dimension_numbers = #tpu.dot_dimension_numbers<[1], [0], [0], [1], [0, 0, 1, 1], [], []>} : vector<16x32xbf16>, vector<32x32xbf16>, vector<16x32xf32> -> vector<16x32xf32>
    %581 = arith.addf %573, %580 : vector<16x32xf32>
    %c6 = arith.constant 6 : index
    %c0_435 = arith.constant 0 : index
    %c0_436 = arith.constant 0 : index
    %582 = vector.load %arg23[%c6, %c0_435, %c0_436] : memref<9x16x16xbf16, #tpu.memory_space<vmem>>, vector<1x16x16xbf16>
    %583 = vector.shape_cast %582 : vector<1x16x16xbf16> to vector<16x16xbf16>
    %cst_437 = arith.constant dense<0.000000e+00> : vector<16x32xf32>
    %584 = tpu.matmul %583, %534, %cst_437 {dimension_numbers = #tpu.dot_dimension_numbers<[1], [0], [0], [1], [0, 0, 1, 1], [], []>} : vector<16x16xbf16>, vector<16x32xbf16>, vector<16x32xf32> -> vector<16x32xf32>
    %585 = arith.truncf %584 : vector<16x32xf32> to vector<16x32xbf16>
    %c6_438 = arith.constant 6 : index
    %c0_439 = arith.constant 0 : index
    %c0_440 = arith.constant 0 : index
    %586 = vector.load %arg24[%c6_438, %c0_439, %c0_440] : memref<9x32x32xbf16, #tpu.memory_space<vmem>>, vector<1x32x32xbf16>
    %587 = vector.shape_cast %586 : vector<1x32x32xbf16> to vector<32x32xbf16>
    %cst_441 = arith.constant dense<0.000000e+00> : vector<16x32xf32>
    %588 = tpu.matmul %585, %587, %cst_441 {dimension_numbers = #tpu.dot_dimension_numbers<[1], [0], [0], [1], [0, 0, 1, 1], [], []>} : vector<16x32xbf16>, vector<32x32xbf16>, vector<16x32xf32> -> vector<16x32xf32>
    %589 = arith.addf %581, %588 : vector<16x32xf32>
    %c7 = arith.constant 7 : index
    %c0_442 = arith.constant 0 : index
    %c0_443 = arith.constant 0 : index
    %590 = vector.load %arg23[%c7, %c0_442, %c0_443] : memref<9x16x16xbf16, #tpu.memory_space<vmem>>, vector<1x16x16xbf16>
    %591 = vector.shape_cast %590 : vector<1x16x16xbf16> to vector<16x16xbf16>
    %cst_444 = arith.constant dense<0.000000e+00> : vector<16x32xf32>
    %592 = tpu.matmul %591, %534, %cst_444 {dimension_numbers = #tpu.dot_dimension_numbers<[1], [0], [0], [1], [0, 0, 1, 1], [], []>} : vector<16x16xbf16>, vector<16x32xbf16>, vector<16x32xf32> -> vector<16x32xf32>
    %593 = arith.truncf %592 : vector<16x32xf32> to vector<16x32xbf16>
    %c7_445 = arith.constant 7 : index
    %c0_446 = arith.constant 0 : index
    %c0_447 = arith.constant 0 : index
    %594 = vector.load %arg24[%c7_445, %c0_446, %c0_447] : memref<9x32x32xbf16, #tpu.memory_space<vmem>>, vector<1x32x32xbf16>
    %595 = vector.shape_cast %594 : vector<1x32x32xbf16> to vector<32x32xbf16>
    %cst_448 = arith.constant dense<0.000000e+00> : vector<16x32xf32>
    %596 = tpu.matmul %593, %595, %cst_448 {dimension_numbers = #tpu.dot_dimension_numbers<[1], [0], [0], [1], [0, 0, 1, 1], [], []>} : vector<16x32xbf16>, vector<32x32xbf16>, vector<16x32xf32> -> vector<16x32xf32>
    %597 = arith.addf %589, %596 : vector<16x32xf32>
    %c8 = arith.constant 8 : index
    %c0_449 = arith.constant 0 : index
    %c0_450 = arith.constant 0 : index
    %598 = vector.load %arg23[%c8, %c0_449, %c0_450] : memref<9x16x16xbf16, #tpu.memory_space<vmem>>, vector<1x16x16xbf16>
    %599 = vector.shape_cast %598 : vector<1x16x16xbf16> to vector<16x16xbf16>
    %cst_451 = arith.constant dense<0.000000e+00> : vector<16x32xf32>
    %600 = tpu.matmul %599, %534, %cst_451 {dimension_numbers = #tpu.dot_dimension_numbers<[1], [0], [0], [1], [0, 0, 1, 1], [], []>} : vector<16x16xbf16>, vector<16x32xbf16>, vector<16x32xf32> -> vector<16x32xf32>
    %601 = arith.truncf %600 : vector<16x32xf32> to vector<16x32xbf16>
    %c8_452 = arith.constant 8 : index
    %c0_453 = arith.constant 0 : index
    %c0_454 = arith.constant 0 : index
    %602 = vector.load %arg24[%c8_452, %c0_453, %c0_454] : memref<9x32x32xbf16, #tpu.memory_space<vmem>>, vector<1x32x32xbf16>
    %603 = vector.shape_cast %602 : vector<1x32x32xbf16> to vector<32x32xbf16>
    %cst_455 = arith.constant dense<0.000000e+00> : vector<16x32xf32>
    %604 = tpu.matmul %601, %603, %cst_455 {dimension_numbers = #tpu.dot_dimension_numbers<[1], [0], [0], [1], [0, 0, 1, 1], [], []>} : vector<16x32xbf16>, vector<32x32xbf16>, vector<16x32xf32> -> vector<16x32xf32>
    %605 = arith.addf %597, %604 : vector<16x32xf32>
    %c0_456 = arith.constant 0 : index
    %c0_457 = arith.constant 0 : index
    %606 = vector.load %arg25[%c0_456, %c0_457] : memref<1x32xf32, #tpu.memory_space<vmem>>, vector<1x32xf32>
    %c0_458 = arith.constant 0 : index
    %c0_459 = arith.constant 0 : index
    %607 = vector.load %arg26[%c0_458, %c0_459] : memref<1x32xf32, #tpu.memory_space<vmem>>, vector<1x32xf32>
    %cst_460 = arith.constant dense<0.000000e+00> : vector<16xf32>
    %608 = vector.multi_reduction <add>, %605, %cst_460 [1] : vector<16x32xf32> to vector<16xf32>
    %609 = vector.shape_cast %608 : vector<16xf32> to vector<16x1xf32>
    %cst_461 = arith.constant 3.200000e+01 : f32
    %610 = vector.broadcast %cst_461 : f32 to vector<16x1xf32>
    %611 = arith.divf %609, %610 : vector<16x1xf32>
    %612 = vector.broadcast %611 : vector<16x1xf32> to vector<16x32xf32>
    %613 = arith.subf %605, %612 : vector<16x32xf32>
    %614 = arith.mulf %613, %613 : vector<16x32xf32>
    %cst_462 = arith.constant dense<0.000000e+00> : vector<16xf32>
    %615 = vector.multi_reduction <add>, %614, %cst_462 [1] : vector<16x32xf32> to vector<16xf32>
    %616 = vector.shape_cast %615 : vector<16xf32> to vector<16x1xf32>
    %cst_463 = arith.constant 3.200000e+01 : f32
    %617 = vector.broadcast %cst_463 : f32 to vector<16x1xf32>
    %618 = arith.divf %616, %617 : vector<16x1xf32>
    %cst_464 = arith.constant 9.99999997E-7 : f32
    %619 = vector.broadcast %cst_464 : f32 to vector<16x1xf32>
    %620 = arith.addf %618, %619 : vector<16x1xf32>
    %621 = math.rsqrt %620 : vector<16x1xf32>
    %622 = vector.broadcast %621 : vector<16x1xf32> to vector<16x32xf32>
    %623 = arith.mulf %613, %622 : vector<16x32xf32>
    %624 = vector.broadcast %606 : vector<1x32xf32> to vector<16x32xf32>
    %625 = arith.mulf %623, %624 : vector<16x32xf32>
    %626 = vector.broadcast %607 : vector<1x32xf32> to vector<16x32xf32>
    %627 = arith.addf %625, %626 : vector<16x32xf32>
    %628 = arith.truncf %627 : vector<16x32xf32> to vector<16x32xbf16>
    %c0_465 = arith.constant 0 : index
    %c0_466 = arith.constant 0 : index
    %c0_467 = arith.constant 0 : index
    %629 = vector.load %arg27[%c0_465, %c0_466, %c0_467] : memref<2x32x32xbf16, #tpu.memory_space<vmem>>, vector<1x32x32xbf16>
    %630 = vector.shape_cast %629 : vector<1x32x32xbf16> to vector<32x32xbf16>
    %cst_468 = arith.constant dense<0.000000e+00> : vector<16x32xf32>
    %631 = tpu.matmul %628, %630, %cst_468 {dimension_numbers = #tpu.dot_dimension_numbers<[1], [0], [0], [1], [0, 0, 1, 1], [], []>} : vector<16x32xbf16>, vector<32x32xbf16>, vector<16x32xf32> -> vector<16x32xf32>
    %c0_469 = arith.constant 0 : index
    %c0_470 = arith.constant 0 : index
    %c0_471 = arith.constant 0 : index
    %632 = vector.load %arg28[%c0_469, %c0_470, %c0_471] : memref<2x1x32xf32, #tpu.memory_space<vmem>>, vector<1x1x32xf32>
    %633 = vector.shape_cast %632 : vector<1x1x32xf32> to vector<1x32xf32>
    %634 = vector.broadcast %633 : vector<1x32xf32> to vector<16x32xf32>
    %635 = arith.addf %631, %634 : vector<16x32xf32>
    %cst_472 = arith.constant 5.000000e-01 : f32
    %636 = vector.broadcast %cst_472 : f32 to vector<16x32xf32>
    %637 = arith.mulf %636, %635 : vector<16x32xf32>
    %cst_473 = arith.constant 4.471500e-02 : f32
    %638 = vector.broadcast %cst_473 : f32 to vector<16x32xf32>
    %639 = arith.mulf %638, %635 : vector<16x32xf32>
    %640 = arith.mulf %639, %635 : vector<16x32xf32>
    %641 = arith.mulf %640, %635 : vector<16x32xf32>
    %642 = arith.addf %635, %641 : vector<16x32xf32>
    %cst_474 = arith.constant 0.797884583 : f32
    %643 = vector.broadcast %cst_474 : f32 to vector<16x32xf32>
    %644 = arith.mulf %643, %642 : vector<16x32xf32>
    %645 = math.tanh %644 : vector<16x32xf32>
    %cst_475 = arith.constant 1.000000e+00 : f32
    %646 = vector.broadcast %cst_475 : f32 to vector<16x32xf32>
    %647 = arith.addf %646, %645 : vector<16x32xf32>
    %648 = arith.mulf %637, %647 : vector<16x32xf32>
    %649 = arith.truncf %648 : vector<16x32xf32> to vector<16x32xbf16>
    %c1_476 = arith.constant 1 : index
    %c0_477 = arith.constant 0 : index
    %c0_478 = arith.constant 0 : index
    %650 = vector.load %arg27[%c1_476, %c0_477, %c0_478] : memref<2x32x32xbf16, #tpu.memory_space<vmem>>, vector<1x32x32xbf16>
    %651 = vector.shape_cast %650 : vector<1x32x32xbf16> to vector<32x32xbf16>
    %cst_479 = arith.constant dense<0.000000e+00> : vector<16x32xf32>
    %652 = tpu.matmul %649, %651, %cst_479 {dimension_numbers = #tpu.dot_dimension_numbers<[1], [0], [0], [1], [0, 0, 1, 1], [], []>} : vector<16x32xbf16>, vector<32x32xbf16>, vector<16x32xf32> -> vector<16x32xf32>
    %c1_480 = arith.constant 1 : index
    %c0_481 = arith.constant 0 : index
    %c0_482 = arith.constant 0 : index
    %653 = vector.load %arg28[%c1_480, %c0_481, %c0_482] : memref<2x1x32xf32, #tpu.memory_space<vmem>>, vector<1x1x32xf32>
    %654 = vector.shape_cast %653 : vector<1x1x32xf32> to vector<1x32xf32>
    %655 = vector.broadcast %654 : vector<1x32xf32> to vector<16x32xf32>
    %656 = arith.addf %652, %655 : vector<16x32xf32>
    %cst_483 = arith.constant 5.000000e-01 : f32
    %657 = vector.broadcast %cst_483 : f32 to vector<16x32xf32>
    %658 = arith.mulf %657, %656 : vector<16x32xf32>
    %cst_484 = arith.constant 4.471500e-02 : f32
    %659 = vector.broadcast %cst_484 : f32 to vector<16x32xf32>
    %660 = arith.mulf %659, %656 : vector<16x32xf32>
    %661 = arith.mulf %660, %656 : vector<16x32xf32>
    %662 = arith.mulf %661, %656 : vector<16x32xf32>
    %663 = arith.addf %656, %662 : vector<16x32xf32>
    %cst_485 = arith.constant 0.797884583 : f32
    %664 = vector.broadcast %cst_485 : f32 to vector<16x32xf32>
    %665 = arith.mulf %664, %663 : vector<16x32xf32>
    %666 = math.tanh %665 : vector<16x32xf32>
    %cst_486 = arith.constant 1.000000e+00 : f32
    %667 = vector.broadcast %cst_486 : f32 to vector<16x32xf32>
    %668 = arith.addf %667, %666 : vector<16x32xf32>
    %669 = arith.mulf %658, %668 : vector<16x32xf32>
    %670 = arith.truncf %669 : vector<16x32xf32> to vector<16x32xbf16>
    %c0_487 = arith.constant 0 : index
    %c0_488 = arith.constant 0 : index
    %671 = vector.load %arg29[%c0_487, %c0_488] : memref<32x48xbf16, #tpu.memory_space<vmem>>, vector<32x48xbf16>
    %cst_489 = arith.constant dense<0.000000e+00> : vector<16x48xf32>
    %672 = tpu.matmul %670, %671, %cst_489 {dimension_numbers = #tpu.dot_dimension_numbers<[1], [0], [0], [1], [0, 0, 1, 1], [], []>} : vector<16x32xbf16>, vector<32x48xbf16>, vector<16x48xf32> -> vector<16x48xf32>
    %c0_490 = arith.constant 0 : index
    %c0_491 = arith.constant 0 : index
    %673 = vector.load %arg30[%c0_490, %c0_491] : memref<1x48xf32, #tpu.memory_space<vmem>>, vector<1x48xf32>
    %674 = vector.broadcast %673 : vector<1x48xf32> to vector<16x48xf32>
    %675 = arith.addf %672, %674 : vector<16x48xf32>
    %c0_492 = arith.constant 0 : index
    %c0_493 = arith.constant 0 : index
    %c0_494 = arith.constant 0 : index
    %676 = vector.load %arg31[%c0_492, %c0_493, %c0_494] : memref<1x16x48xf32, #tpu.memory_space<vmem>>, vector<1x16x48xf32>
    %677 = vector.shape_cast %676 : vector<1x16x48xf32> to vector<16x48xf32>
    %678 = vector.shape_cast %675 : vector<16x48xf32> to vector<1x16x48xf32>
    tpu.vector_store %arg31[%c0_492, %c0_493, %c0_494], %678 {strides = array<i32>} : memref<1x16x48xf32, #tpu.memory_space<vmem>>, vector<1x16x48xf32>,
    return
  }
  func.func @transform_0(%arg0: i32) -> (i32, i32, i32) {
    %c0_i32 = arith.constant 0 : i32
    %c0_i32_0 = arith.constant 0 : i32
    %c0_i32_1 = arith.constant 0 : i32
    return %arg0, %c0_i32, %c0_i32_0 : i32, i32, i32
  }
  func.func @transform_1(%arg0: i32) -> (i32, i32) {
    %c0_i32 = arith.constant 0 : i32
    %c0_i32_0 = arith.constant 0 : i32
    %c0_i32_1 = arith.constant 0 : i32
    return %c0_i32, %c0_i32_0 : i32, i32
  }
  func.func @transform_2(%arg0: i32) -> (i32, i32) {
    %c0_i32 = arith.constant 0 : i32
    %c0_i32_0 = arith.constant 0 : i32
    %c0_i32_1 = arith.constant 0 : i32
    return %c0_i32, %c0_i32_0 : i32, i32
  }
  func.func @transform_3(%arg0: i32) -> (i32, i32, i32) {
    %c0_i32 = arith.constant 0 : i32
    %c0_i32_0 = arith.constant 0 : i32
    %c0_i32_1 = arith.constant 0 : i32
    %c0_i32_2 = arith.constant 0 : i32
    return %c0_i32, %c0_i32_0, %c0_i32_1 : i32, i32, i32
  }
  func.func @transform_4(%arg0: i32) -> (i32, i32, i32) {
    %c0_i32 = arith.constant 0 : i32
    %c0_i32_0 = arith.constant 0 : i32
    %c0_i32_1 = arith.constant 0 : i32
    %c0_i32_2 = arith.constant 0 : i32
    return %c0_i32, %c0_i32_0, %c0_i32_1 : i32, i32, i32
  }
  func.func @transform_5(%arg0: i32) -> (i32, i32, i32, i32) {
    %c0_i32 = arith.constant 0 : i32
    %c0_i32_0 = arith.constant 0 : i32
    %c0_i32_1 = arith.constant 0 : i32
    %c0_i32_2 = arith.constant 0 : i32
    %c0_i32_3 = arith.constant 0 : i32
    return %c0_i32, %c0_i32_0, %c0_i32_1, %c0_i32_2 : i32, i32, i32, i32
  }
  func.func @transform_6(%arg0: i32) -> (i32, i32, i32, i32) {
    %c0_i32 = arith.constant 0 : i32
    %c0_i32_0 = arith.constant 0 : i32
    %c0_i32_1 = arith.constant 0 : i32
    %c0_i32_2 = arith.constant 0 : i32
    %c0_i32_3 = arith.constant 0 : i32
    return %c0_i32, %c0_i32_0, %c0_i32_1, %c0_i32_2 : i32, i32, i32, i32
  }
  func.func @transform_7(%arg0: i32) -> (i32, i32, i32, i32) {
    %c0_i32 = arith.constant 0 : i32
    %c0_i32_0 = arith.constant 0 : i32
    %c0_i32_1 = arith.constant 0 : i32
    %c0_i32_2 = arith.constant 0 : i32
    %c0_i32_3 = arith.constant 0 : i32
    return %c0_i32, %c0_i32_0, %c0_i32_1, %c0_i32_2 : i32, i32, i32, i32
  }
  func.func @transform_8(%arg0: i32) -> (i32, i32, i32, i32) {
    %c0_i32 = arith.constant 0 : i32
    %c0_i32_0 = arith.constant 0 : i32
    %c0_i32_1 = arith.constant 0 : i32
    %c0_i32_2 = arith.constant 0 : i32
    %c0_i32_3 = arith.constant 0 : i32
    return %c0_i32, %c0_i32_0, %c0_i32_1, %c0_i32_2 : i32, i32, i32, i32
  }
  func.func @transform_9(%arg0: i32) -> (i32, i32, i32, i32) {
    %c0_i32 = arith.constant 0 : i32
    %c0_i32_0 = arith.constant 0 : i32
    %c0_i32_1 = arith.constant 0 : i32
    %c0_i32_2 = arith.constant 0 : i32
    %c0_i32_3 = arith.constant 0 : i32
    return %c0_i32, %c0_i32_0, %c0_i32_1, %c0_i32_2 : i32, i32, i32, i32
  }
  func.func @transform_10(%arg0: i32) -> (i32, i32, i32, i32) {
    %c0_i32 = arith.constant 0 : i32
    %c0_i32_0 = arith.constant 0 : i32
    %c0_i32_1 = arith.constant 0 : i32
    %c0_i32_2 = arith.constant 0 : i32
    %c0_i32_3 = arith.constant 0 : i32
    return %c0_i32, %c0_i32_0, %c0_i32_1, %c0_i32_2 : i32, i32, i32, i32
  }
  func.func @transform_11(%arg0: i32) -> (i32, i32, i32, i32) {
    %c0_i32 = arith.constant 0 : i32
    %c0_i32_0 = arith.constant 0 : i32
    %c0_i32_1 = arith.constant 0 : i32
    %c0_i32_2 = arith.constant 0 : i32
    %c0_i32_3 = arith.constant 0 : i32
    return %c0_i32, %c0_i32_0, %c0_i32_1, %c0_i32_2 : i32, i32, i32, i32
  }
  func.func @transform_12(%arg0: i32) -> (i32, i32, i32) {
    %c0_i32 = arith.constant 0 : i32
    %c0_i32_0 = arith.constant 0 : i32
    %c0_i32_1 = arith.constant 0 : i32
    %c0_i32_2 = arith.constant 0 : i32
    return %c0_i32, %c0_i32_0, %c0_i32_1 : i32, i32, i32
  }
  func.func @transform_13(%arg0: i32) -> (i32, i32, i32) {
    %c0_i32 = arith.constant 0 : i32
    %c0_i32_0 = arith.constant 0 : i32
    %c0_i32_1 = arith.constant 0 : i32
    %c0_i32_2 = arith.constant 0 : i32
    return %c0_i32, %c0_i32_0, %c0_i32_1 : i32, i32, i32
  }
  func.func @transform_14(%arg0: i32) -> (i32, i32, i32) {
    %c0_i32 = arith.constant 0 : i32
    %c0_i32_0 = arith.constant 0 : i32
    %c0_i32_1 = arith.constant 0 : i32
    %c0_i32_2 = arith.constant 0 : i32
    return %c0_i32, %c0_i32_0, %c0_i32_1 : i32, i32, i32
  }
  func.func @transform_15(%arg0: i32) -> (i32, i32, i32) {
    %c0_i32 = arith.constant 0 : i32
    %c0_i32_0 = arith.constant 0 : i32
    %c0_i32_1 = arith.constant 0 : i32
    %c0_i32_2 = arith.constant 0 : i32
    return %c0_i32, %c0_i32_0, %c0_i32_1 : i32, i32, i32
  }
  func.func @transform_16(%arg0: i32) -> (i32, i32, i32) {
    %c0_i32 = arith.constant 0 : i32
    %c0_i32_0 = arith.constant 0 : i32
    %c0_i32_1 = arith.constant 0 : i32
    %c0_i32_2 = arith.constant 0 : i32
    return %c0_i32, %c0_i32_0, %c0_i32_1 : i32, i32, i32
  }
  func.func @transform_17(%arg0: i32) -> (i32, i32, i32) {
    %c0_i32 = arith.constant 0 : i32
    %c0_i32_0 = arith.constant 0 : i32
    %c0_i32_1 = arith.constant 0 : i32
    %c0_i32_2 = arith.constant 0 : i32
    return %c0_i32, %c0_i32_0, %c0_i32_1 : i32, i32, i32
  }
  func.func @transform_18(%arg0: i32) -> (i32, i32, i32) {
    %c0_i32 = arith.constant 0 : i32
    %c0_i32_0 = arith.constant 0 : i32
    %c0_i32_1 = arith.constant 0 : i32
    %c0_i32_2 = arith.constant 0 : i32
    return %c0_i32, %c0_i32_0, %c0_i32_1 : i32, i32, i32
  }
  func.func @transform_19(%arg0: i32) -> (i32, i32) {
    %c0_i32 = arith.constant 0 : i32
    %c0_i32_0 = arith.constant 0 : i32
    %c0_i32_1 = arith.constant 0 : i32
    return %c0_i32, %c0_i32_0 : i32, i32
  }
  func.func @transform_20(%arg0: i32) -> (i32, i32) {
    %c0_i32 = arith.constant 0 : i32
    %c0_i32_0 = arith.constant 0 : i32
    %c0_i32_1 = arith.constant 0 : i32
    return %c0_i32, %c0_i32_0 : i32, i32
  }
  func.func @transform_21(%arg0: i32) -> (i32, i32) {
    %c0_i32 = arith.constant 0 : i32
    %c0_i32_0 = arith.constant 0 : i32
    %c0_i32_1 = arith.constant 0 : i32
    return %c0_i32, %c0_i32_0 : i32, i32
  }
  func.func @transform_22(%arg0: i32) -> (i32, i32, i32) {
    %c0_i32 = arith.constant 0 : i32
    %c0_i32_0 = arith.constant 0 : i32
    %c0_i32_1 = arith.constant 0 : i32
    %c0_i32_2 = arith.constant 0 : i32
    return %c0_i32, %c0_i32_0, %c0_i32_1 : i32, i32, i32
  }
  func.func @transform_23(%arg0: i32) -> (i32, i32, i32) {
    %c0_i32 = arith.constant 0 : i32
    %c0_i32_0 = arith.constant 0 : i32
    %c0_i32_1 = arith.constant 0 : i32
    %c0_i32_2 = arith.constant 0 : i32
    return %c0_i32, %c0_i32_0, %c0_i32_1 : i32, i32, i32
  }
  func.func @transform_24(%arg0: i32) -> (i32, i32) {
    %c0_i32 = arith.constant 0 : i32
    %c0_i32_0 = arith.constant 0 : i32
    %c0_i32_1 = arith.constant 0 : i32
    return %c0_i32, %c0_i32_0 : i32, i32
  }
  func.func @transform_25(%arg0: i32) -> (i32, i32) {
    %c0_i32 = arith.constant 0 : i32
    %c0_i32_0 = arith.constant 0 : i32
    %c0_i32_1 = arith.constant 0 : i32
    return %c0_i32, %c0_i32_0 : i32, i32
  }
  func.func @transform_26(%arg0: i32) -> (i32, i32, i32) {
    %c0_i32 = arith.constant 0 : i32
    %c0_i32_0 = arith.constant 0 : i32
    %c0_i32_1 = arith.constant 0 : i32
    %c0_i32_2 = arith.constant 0 : i32
    return %c0_i32, %c0_i32_0, %c0_i32_1 : i32, i32, i32
  }
  func.func @transform_27(%arg0: i32) -> (i32, i32, i32) {
    %c0_i32 = arith.constant 0 : i32
    %c0_i32_0 = arith.constant 0 : i32
    %c0_i32_1 = arith.constant 0 : i32
    %c0_i32_2 = arith.constant 0 : i32
    return %c0_i32, %c0_i32_0, %c0_i32_1 : i32, i32, i32
  }
  func.func @transform_28(%arg0: i32) -> (i32, i32) {
    %c0_i32 = arith.constant 0 : i32
    %c0_i32_0 = arith.constant 0 : i32
    %c0_i32_1 = arith.constant 0 : i32
    return %c0_i32, %c0_i32_0 : i32, i32
  }
  func.func @transform_29(%arg0: i32) -> (i32, i32) {
    %c0_i32 = arith.constant 0 : i32
    %c0_i32_0 = arith.constant 0 : i32
    %c0_i32_1 = arith.constant 0 : i32
    return %c0_i32, %c0_i32_0 : i32, i32
  }
  func.func @transform_30(%arg0: i32) -> (i32, i32, i32) {
    %c0_i32 = arith.constant 0 : i32
    %c0_i32_0 = arith.constant 0 : i32
    %c0_i32_1 = arith.constant 0 : i32
    return %arg0, %c0_i32, %c0_i32_0 : i32, i32, i32
  }
}

</mosaic_0001>

<llo_original>
// kernel: forward.1
$region0: #{forward.1}
  #allocation0 [shape = 'u32[]', space=smem, size = 0x4, offset = 0x4, fixed_abs, tag = 'smem constant byte address 0x4 - core index']
  #allocation1 [shape = 'u32[72,128]{1,0:T(1,128)}', space=vmem, size = 0x9000, scoped, tag = 'internal scratch']
  %s0 = inlined_call_operand.smem [shape: u32[31], index: -1, kind: input, shape index: {}]
  %s1 = sld [smem:[%s0]]
  %s2 = scalar_lea.smem %s0, 1
  %s3 = sld [smem:[%s2]]
  %s4 = scalar_lea.smem %s0, 2
  %s5 = sld [smem:[%s4]]
  %s6 = scalar_lea.smem %s0, 3
  %s7 = sld [smem:[%s6]]
  %s8 = scalar_lea.smem %s0, 4
  %s9 = sld [smem:[%s8]]
  %s10 = scalar_lea.smem %s0, 5
  %s11 = sld [smem:[%s10]]
  %s12 = scalar_lea.smem %s0, 6
  %s13 = sld [smem:[%s12]]
  %s14 = scalar_lea.smem %s0, 7
  %s15 = sld [smem:[%s14]]
  %s16 = scalar_lea.smem %s0, 8
  %s17 = sld [smem:[%s16]]
  %s18 = scalar_lea.smem %s0, 9
  %s19 = sld [smem:[%s18]]
  %s20 = scalar_lea.smem %s0, 10
  %s21 = sld [smem:[%s20]]
  %s22 = scalar_lea.smem %s0, 11
  %s23 = sld [smem:[%s22]]
  %s24 = scalar_lea.smem %s0, 12
  %s25 = sld [smem:[%s24]]
  %s26 = scalar_lea.smem %s0, 13
  %s27 = sld [smem:[%s26]]
  %s28 = scalar_lea.smem %s0, 14
  %s29 = sld [smem:[%s28]]
  %s30 = scalar_lea.smem %s0, 15
  %s31 = sld [smem:[%s30]]
  %s32 = scalar_lea.smem %s0, 16
  %s33 = sld [smem:[%s32]]
  %s34 = scalar_lea.smem %s0, 17
  %s35 = sld [smem:[%s34]]
  %s36 = scalar_lea.smem %s0, 18
  %s37 = sld [smem:[%s36]]
  %s38 = scalar_lea.smem %s0, 19
  %s39 = sld [smem:[%s38]]
  %s40 = scalar_lea.smem %s0, 20
  %s41 = sld [smem:[%s40]]
  %s42 = scalar_lea.smem %s0, 21
  %s43 = sld [smem:[%s42]]
  %s44 = scalar_lea.smem %s0, 22
  %s45 = sld [smem:[%s44]]
  %s46 = scalar_lea.smem %s0, 23
  %s47 = sld [smem:[%s46]]
  %s48 = scalar_lea.smem %s0, 24
  %s49 = sld [smem:[%s48]]
  %s50 = scalar_lea.smem %s0, 25
  %s51 = sld [smem:[%s50]]
  %s52 = scalar_lea.smem %s0, 26
  %s53 = sld [smem:[%s52]]
  %s54 = scalar_lea.smem %s0, 27
  %s55 = sld [smem:[%s54]]
  %s56 = scalar_lea.smem %s0, 28
  %s57 = sld [smem:[%s56]]
  %s58 = scalar_lea.smem %s0, 29
  %s59 = sld [smem:[%s58]]
  %s60 = scalar_lea.smem %s0, 30
  %s61 = sld [smem:[%s60]]
  %s62 = sld [smem:[#allocation0]]
  $region153: #{forward.1} parent=0
    _
  %s64 = ssub.s32 1, %s62
  %s65 = scalar_select 0, %s64, %s62
  loop: start=0, step=1, limit=4
  $region2: #{forward.1} parent=0 // loop_pre_header
    _
  $region3: #{forward.1} parent=0 // loop_header
    %s67 = sphi 0, %s71
    %p68 = scmp.ge.s32.totalorder %s67, 4
    %s77 = sphi 0, %s79
    %s80 = sphi 0, %s77
    %s81 = sphi 0, %s80
    %s97 = sphi 0, %s81
    %s101 = sphi 0, %s101
    %s103 = sphi 0, %s101
    %s104 = sphi 0, %s103
    %s118 = sphi 0, %s104
    %s122 = sphi 0, %s122
    %s124 = sphi 0, %s122
    %s125 = sphi 0, %s124
    %s139 = sphi 0, %s125
    %s143 = sphi 0, %s143
    %s145 = sphi 0, %s143
    %s146 = sphi 0, %s145
    %s160 = sphi 0, %s146
    %s164 = sphi 0, %s164
    %s166 = sphi 0, %s164
    %s167 = sphi 0, %s166
    %s181 = sphi 0, %s167
    %s185 = sphi 0, %s185
    %s187 = sphi 0, %s185
    %s188 = sphi 0, %s187
    %s202 = sphi 0, %s188
    %s206 = sphi 0, %s206
    %s208 = sphi 0, %s206
    %s209 = sphi 0, %s208
    %s223 = sphi 0, %s209
    %s227 = sphi 0, %s227
    %s229 = sphi 0, %s227
    %s230 = sphi 0, %s229
    %s244 = sphi 0, %s230
    %s248 = sphi 0, %s248
    %s250 = sphi 0, %s248
    %s251 = sphi 0, %s250
    %s265 = sphi 0, %s251
    %s269 = sphi 0, %s269
    %s271 = sphi 0, %s269
    %s272 = sphi 0, %s271
    %s286 = sphi 0, %s272
    %s290 = sphi 0, %s290
    %s292 = sphi 0, %s290
    %s293 = sphi 0, %s292
    %s307 = sphi 0, %s293
    %s311 = sphi 0, %s311
    %s313 = sphi 0, %s311
    %s314 = sphi 0, %s313
    %s328 = sphi 0, %s314
    %s332 = sphi 0, %s332
    %s334 = sphi 0, %s332
    %s335 = sphi 0, %s334
    %s349 = sphi 0, %s335
    %s353 = sphi 0, %s353
    %s355 = sphi 0, %s353
    %s356 = sphi 0, %s355
    %s370 = sphi 0, %s356
    %s374 = sphi 0, %s374
    %s376 = sphi 0, %s374
    %s377 = sphi 0, %s376
    %s391 = sphi 0, %s377
    %s395 = sphi 0, %s395
    %s397 = sphi 0, %s395
    %s398 = sphi 0, %s397
    %s412 = sphi 0, %s398
    %s416 = sphi 0, %s416
    %s418 = sphi 0, %s416
    %s419 = sphi 0, %s418
    %s433 = sphi 0, %s419
    %s437 = sphi 0, %s437
    %s439 = sphi 0, %s437
    %s440 = sphi 0, %s439
    %s454 = sphi 0, %s440
    %s458 = sphi 0, %s458
    %s460 = sphi 0, %s458
    %s461 = sphi 0, %s460
    %s475 = sphi 0, %s461
    %s479 = sphi 0, %s479
    %s481 = sphi 0, %s479
    %s482 = sphi 0, %s481
    %s496 = sphi 0, %s482
    %s500 = sphi 0, %s500
    %s502 = sphi 0, %s500
    %s503 = sphi 0, %s502
    %s517 = sphi 0, %s503
    %s521 = sphi 0, %s521
    %s523 = sphi 0, %s521
    %s524 = sphi 0, %s523
    %s538 = sphi 0, %s524
    %s542 = sphi 0, %s542
    %s544 = sphi 0, %s542
    %s545 = sphi 0, %s544
    %s559 = sphi 0, %s545
    %s563 = sphi 0, %s563
    %s565 = sphi 0, %s563
    %s566 = sphi 0, %s565
    %s580 = sphi 0, %s566
    %s584 = sphi 0, %s584
    %s586 = sphi 0, %s584
    %s587 = sphi 0, %s586
    %s601 = sphi 0, %s587
    %s605 = sphi 0, %s605
    %s607 = sphi 0, %s605
    %s608 = sphi 0, %s607
    %s622 = sphi 0, %s608
    %s626 = sphi 0, %s626
    %s628 = sphi 0, %s626
    %s629 = sphi 0, %s628
    %s643 = sphi 0, %s629
    %s647 = sphi 0, %s647
    %s649 = sphi 0, %s647
    %s650 = sphi 0, %s649
    %s664 = sphi 0, %s650
    %s668 = sphi 0, %s668
    %s670 = sphi 0, %s668
    %s671 = sphi 0, %s670
    %s685 = sphi 0, %s671
    %s689 = sphi 0, %s689
    %s691 = sphi 0, %s689
    %s692 = sphi 0, %s691
    %s706 = sphi 0, %s692
    %s712 = sphi 0, %s714
    %s715 = sphi 0, %s712
    %s716 = sphi 0, %s715
    %s732 = sphi 0, %s716
  $region4: #{forward.1} parent=0 // loop_header_branch
    %70 = sbr.rel (%p68) target = $region8
  $region5: #{forward.1} parent=0 // loop_body
    %s72 = ssub.s32 %s67, 1
    %s73 = ssub.s32 %s67, 2
    %s74 = sadd.s32 %s67, 1
    %s75 = ssub.s32 %s67, %s74
    %p76 = scmp.eq.s32.totalorder %s75, 0
    %s78 = sadd.s32 %s77, 1
    %s79 = scalar_select %p76, %s77, %s78
    %p82 = pneg %p76
    %p83 = scmp.eq.s32.totalorder %s67, 1
    %p84 = por %p82, %p83
    %p85 = scmp.ne.s32.totalorder %s77, %s80
    %p86 = scmp.eq.s32.totalorder %s67, 0
    %p87 = por %p85, %p86
    %p88 = scmp.ne.s32.totalorder %s77, %s80
    %p89 = scmp.eq.s32.totalorder %s72, 1
    %p90 = por %p88, %p89
    %p91 = scmp.ne.s32.totalorder %s80, %s81
    %p92 = scmp.eq.s32.totalorder %s72, 0
    %p93 = por %p91, %p92
    %p94 = scmp.ne.s32.totalorder %s80, %s81
    %p95 = scmp.eq.s32.totalorder %s73, 1
    %p96 = por %p94, %p95
    %p98 = scmp.ne.s32.totalorder %s81, %s97
    %p99 = scmp.eq.s32.totalorder %s73, 0
    %p100 = por %p98, %p99
    %s102 = sadd.s32 %s101, 1
    %p105 = scmp.eq.s32.totalorder %s67, 1
    %p106 = scmp.ne.s32.totalorder %s101, %s103
    %p107 = scmp.eq.s32.totalorder %s67, 0
    %p108 = por %p106, %p107
    %p109 = scmp.ne.s32.totalorder %s101, %s103
    %p110 = scmp.eq.s32.totalorder %s72, 1
    %p111 = por %p109, %p110
    %p112 = scmp.ne.s32.totalorder %s103, %s104
    %p113 = scmp.eq.s32.totalorder %s72, 0
    %p114 = por %p112, %p113
    %p115 = scmp.ne.s32.totalorder %s103, %s104
    %p116 = scmp.eq.s32.totalorder %s73, 1
    %p117 = por %p115, %p116
    %p119 = scmp.ne.s32.totalorder %s104, %s118
    %p120 = scmp.eq.s32.totalorder %s73, 0
    %p121 = por %p119, %p120
    %s123 = sadd.s32 %s122, 1
    %p126 = scmp.eq.s32.totalorder %s67, 1
    %p127 = scmp.ne.s32.totalorder %s122, %s124
    %p128 = scmp.eq.s32.totalorder %s67, 0
    %p129 = por %p127, %p128
    %p130 = scmp.ne.s32.totalorder %s122, %s124
    %p131 = scmp.eq.s32.totalorder %s72, 1
    %p132 = por %p130, %p131
    %p133 = scmp.ne.s32.totalorder %s124, %s125
    %p134 = scmp.eq.s32.totalorder %s72, 0
    %p135 = por %p133, %p134
    %p136 = scmp.ne.s32.totalorder %s124, %s125
    %p137 = scmp.eq.s32.totalorder %s73, 1
    %p138 = por %p136, %p137
    %p140 = scmp.ne.s32.totalorder %s125, %s139
    %p141 = scmp.eq.s32.totalorder %s73, 0
    %p142 = por %p140, %p141
    %s144 = sadd.s32 %s143, 1
    %p147 = scmp.eq.s32.totalorder %s67, 1
    %p148 = scmp.ne.s32.totalorder %s143, %s145
    %p149 = scmp.eq.s32.totalorder %s67, 0
    %p150 = por %p148, %p149
    %p151 = scmp.ne.s32.totalorder %s143, %s145
    %p152 = scmp.eq.s32.totalorder %s72, 1
    %p153 = por %p151, %p152
    %p154 = scmp.ne.s32.totalorder %s145, %s146
    %p155 = scmp.eq.s32.totalorder %s72, 0
    %p156 = por %p154, %p155
    %p157 = scmp.ne.s32.totalorder %s145, %s146
    %p158 = scmp.eq.s32.totalorder %s73, 1
    %p159 = por %p157, %p158
    %p161 = scmp.ne.s32.totalorder %s146, %s160
    %p162 = scmp.eq.s32.totalorder %s73, 0
    %p163 = por %p161, %p162
    %s165 = sadd.s32 %s164, 1
    %p168 = scmp.eq.s32.totalorder %s67, 1
    %p169 = scmp.ne.s32.totalorder %s164, %s166
    %p170 = scmp.eq.s32.totalorder %s67, 0
    %p171 = por %p169, %p170
    %p172 = scmp.ne.s32.totalorder %s164, %s166
    %p173 = scmp.eq.s32.totalorder %s72, 1
    %p174 = por %p172, %p173
    %p175 = scmp.ne.s32.totalorder %s166, %s167
    %p176 = scmp.eq.s32.totalorder %s72, 0
    %p177 = por %p175, %p176
    %p178 = scmp.ne.s32.totalorder %s166, %s167
    %p179 = scmp.eq.s32.totalorder %s73, 1
    %p180 = por %p178, %p179
    %p182 = scmp.ne.s32.totalorder %s167, %s181
    %p183 = scmp.eq.s32.totalorder %s73, 0
    %p184 = por %p182, %p183
    %s186 = sadd.s32 %s185, 1
    %p189 = scmp.eq.s32.totalorder %s67, 1
    %p190 = scmp.ne.s32.totalorder %s185, %s187
    %p191 = scmp.eq.s32.totalorder %s67, 0
    %p192 = por %p190, %p191
    %p193 = scmp.ne.s32.totalorder %s185, %s187
    %p194 = scmp.eq.s32.totalorder %s72, 1
    %p195 = por %p193, %p194
    %p196 = scmp.ne.s32.totalorder %s187, %s188
    %p197 = scmp.eq.s32.totalorder %s72, 0
    %p198 = por %p196, %p197
    %p199 = scmp.ne.s32.totalorder %s187, %s188
    %p200 = scmp.eq.s32.totalorder %s73, 1
    %p201 = por %p199, %p200
    %p203 = scmp.ne.s32.totalorder %s188, %s202
    %p204 = scmp.eq.s32.totalorder %s73, 0
    %p205 = por %p203, %p204
    %s207 = sadd.s32 %s206, 1
    %p210 = scmp.eq.s32.totalorder %s67, 1
    %p211 = scmp.ne.s32.totalorder %s206, %s208
    %p212 = scmp.eq.s32.totalorder %s67, 0
    %p213 = por %p211, %p212
    %p214 = scmp.ne.s32.totalorder %s206, %s208
    %p215 = scmp.eq.s32.totalorder %s72, 1
    %p216 = por %p214, %p215
    %p217 = scmp.ne.s32.totalorder %s208, %s209
    %p218 = scmp.eq.s32.totalorder %s72, 0
    %p219 = por %p217, %p218
    %p220 = scmp.ne.s32.totalorder %s208, %s209
    %p221 = scmp.eq.s32.totalorder %s73, 1
    %p222 = por %p220, %p221
    %p224 = scmp.ne.s32.totalorder %s209, %s223
    %p225 = scmp.eq.s32.totalorder %s73, 0
    %p226 = por %p224, %p225
    %s228 = sadd.s32 %s227, 1
    %p231 = scmp.eq.s32.totalorder %s67, 1
    %p232 = scmp.ne.s32.totalorder %s227, %s229
    %p233 = scmp.eq.s32.totalorder %s67, 0
    %p234 = por %p232, %p233
    %p235 = scmp.ne.s32.totalorder %s227, %s229
    %p236 = scmp.eq.s32.totalorder %s72, 1
    %p237 = por %p235, %p236
    %p238 = scmp.ne.s32.totalorder %s229, %s230
    %p239 = scmp.eq.s32.totalorder %s72, 0
    %p240 = por %p238, %p239
    %p241 = scmp.ne.s32.totalorder %s229, %s230
    %p242 = scmp.eq.s32.totalorder %s73, 1
    %p243 = por %p241, %p242
    %p245 = scmp.ne.s32.totalorder %s230, %s244
    %p246 = scmp.eq.s32.totalorder %s73, 0
    %p247 = por %p245, %p246
    %s249 = sadd.s32 %s248, 1
    %p252 = scmp.eq.s32.totalorder %s67, 1
    %p253 = scmp.ne.s32.totalorder %s248, %s250
    %p254 = scmp.eq.s32.totalorder %s67, 0
    %p255 = por %p253, %p254
    %p256 = scmp.ne.s32.totalorder %s248, %s250
    %p257 = scmp.eq.s32.totalorder %s72, 1
    %p258 = por %p256, %p257
    %p259 = scmp.ne.s32.totalorder %s250, %s251
    %p260 = scmp.eq.s32.totalorder %s72, 0
    %p261 = por %p259, %p260
    %p262 = scmp.ne.s32.totalorder %s250, %s251
    %p263 = scmp.eq.s32.totalorder %s73, 1
    %p264 = por %p262, %p263
    %p266 = scmp.ne.s32.totalorder %s251, %s265
    %p267 = scmp.eq.s32.totalorder %s73, 0
    %p268 = por %p266, %p267
    %s270 = sadd.s32 %s269, 1
    %p273 = scmp.eq.s32.totalorder %s67, 1
    %p274 = scmp.ne.s32.totalorder %s269, %s271
    %p275 = scmp.eq.s32.totalorder %s67, 0
    %p276 = por %p274, %p275
    %p277 = scmp.ne.s32.totalorder %s269, %s271
    %p278 = scmp.eq.s32.totalorder %s72, 1
    %p279 = por %p277, %p278
    %p280 = scmp.ne.s32.totalorder %s271, %s272
    %p281 = scmp.eq.s32.totalorder %s72, 0
    %p282 = por %p280, %p281
    %p283 = scmp.ne.s32.totalorder %s271, %s272
    %p284 = scmp.eq.s32.totalorder %s73, 1
    %p285 = por %p283, %p284
    %p287 = scmp.ne.s32.totalorder %s272, %s286
    %p288 = scmp.eq.s32.totalorder %s73, 0
    %p289 = por %p287, %p288
    %s291 = sadd.s32 %s290, 1
    %p294 = scmp.eq.s32.totalorder %s67, 1
    %p295 = scmp.ne.s32.totalorder %s290, %s292
    %p296 = scmp.eq.s32.totalorder %s67, 0
    %p297 = por %p295, %p296
    %p298 = scmp.ne.s32.totalorder %s290, %s292
    %p299 = scmp.eq.s32.totalorder %s72, 1
    %p300 = por %p298, %p299
    %p301 = scmp.ne.s32.totalorder %s292, %s293
    %p302 = scmp.eq.s32.totalorder %s72, 0
    %p303 = por %p301, %p302
    %p304 = scmp.ne.s32.totalorder %s292, %s293
    %p305 = scmp.eq.s32.totalorder %s73, 1
    %p306 = por %p304, %p305
    %p308 = scmp.ne.s32.totalorder %s293, %s307
    %p309 = scmp.eq.s32.totalorder %s73, 0
    %p310 = por %p308, %p309
    %s312 = sadd.s32 %s311, 1
    %p315 = scmp.eq.s32.totalorder %s67, 1
    %p316 = scmp.ne.s32.totalorder %s311, %s313
    %p317 = scmp.eq.s32.totalorder %s67, 0
    %p318 = por %p316, %p317
    %p319 = scmp.ne.s32.totalorder %s311, %s313
    %p320 = scmp.eq.s32.totalorder %s72, 1
    %p321 = por %p319, %p320
    %p322 = scmp.ne.s32.totalorder %s313, %s314
    %p323 = scmp.eq.s32.totalorder %s72, 0
    %p324 = por %p322, %p323
    %p325 = scmp.ne.s32.totalorder %s313, %s314
    %p326 = scmp.eq.s32.totalorder %s73, 1
    %p327 = por %p325, %p326
    %p329 = scmp.ne.s32.totalorder %s314, %s328
    %p330 = scmp.eq.s32.totalorder %s73, 0
    %p331 = por %p329, %p330
    %s333 = sadd.s32 %s332, 1
    %p336 = scmp.eq.s32.totalorder %s67, 1
    %p337 = scmp.ne.s32.totalorder %s332, %s334
    %p338 = scmp.eq.s32.totalorder %s67, 0
    %p339 = por %p337, %p338
    %p340 = scmp.ne.s32.totalorder %s332, %s334
    %p341 = scmp.eq.s32.totalorder %s72, 1
    %p342 = por %p340, %p341
    %p343 = scmp.ne.s32.totalorder %s334, %s335
    %p344 = scmp.eq.s32.totalorder %s72, 0
    %p345 = por %p343, %p344
    %p346 = scmp.ne.s32.totalorder %s334, %s335
    %p347 = scmp.eq.s32.totalorder %s73, 1
    %p348 = por %p346, %p347
    %p350 = scmp.ne.s32.totalorder %s335, %s349
    %p351 = scmp.eq.s32.totalorder %s73, 0
    %p352 = por %p350, %p351
    %s354 = sadd.s32 %s353, 1
    %p357 = scmp.eq.s32.totalorder %s67, 1
    %p358 = scmp.ne.s32.totalorder %s353, %s355
    %p359 = scmp.eq.s32.totalorder %s67, 0
    %p360 = por %p358, %p359
    %p361 = scmp.ne.s32.totalorder %s353, %s355
    %p362 = scmp.eq.s32.totalorder %s72, 1
    %p363 = por %p361, %p362
    %p364 = scmp.ne.s32.totalorder %s355, %s356
    %p365 = scmp.eq.s32.totalorder %s72, 0
    %p366 = por %p364, %p365
    %p367 = scmp.ne.s32.totalorder %s355, %s356
    %p368 = scmp.eq.s32.totalorder %s73, 1
    %p369 = por %p367, %p368
    %p371 = scmp.ne.s32.totalorder %s356, %s370
    %p372 = scmp.eq.s32.totalorder %s73, 0
    %p373 = por %p371, %p372
    %s375 = sadd.s32 %s374, 1
    %p378 = scmp.eq.s32.totalorder %s67, 1
    %p379 = scmp.ne.s32.totalorder %s374, %s376
    %p380 = scmp.eq.s32.totalorder %s67, 0
    %p381 = por %p379, %p380
    %p382 = scmp.ne.s32.totalorder %s374, %s376
    %p383 = scmp.eq.s32.totalorder %s72, 1
    %p384 = por %p382, %p383
    %p385 = scmp.ne.s32.totalorder %s376, %s377
    %p386 = scmp.eq.s32.totalorder %s72, 0
    %p387 = por %p385, %p386
    %p388 = scmp.ne.s32.totalorder %s376, %s377
    %p389 = scmp.eq.s32.totalorder %s73, 1
    %p390 = por %p388, %p389
    %p392 = scmp.ne.s32.totalorder %s377, %s391
    %p393 = scmp.eq.s32.totalorder %s73, 0
    %p394 = por %p392, %p393
    %s396 = sadd.s32 %s395, 1
    %p399 = scmp.eq.s32.totalorder %s67, 1
    %p400 = scmp.ne.s32.totalorder %s395, %s397
    %p401 = scmp.eq.s32.totalorder %s67, 0
    %p402 = por %p400, %p401
    %p403 = scmp.ne.s32.totalorder %s395, %s397
    %p404 = scmp.eq.s32.totalorder %s72, 1
    %p405 = por %p403, %p404
    %p406 = scmp.ne.s32.totalorder %s397, %s398
    %p407 = scmp.eq.s32.totalorder %s72, 0
    %p408 = por %p406, %p407
    %p409 = scmp.ne.s32.totalorder %s397, %s398
    %p410 = scmp.eq.s32.totalorder %s73, 1
    %p411 = por %p409, %p410
    %p413 = scmp.ne.s32.totalorder %s398, %s412
    %p414 = scmp.eq.s32.totalorder %s73, 0
    %p415 = por %p413, %p414
    %s417 = sadd.s32 %s416, 1
    %p420 = scmp.eq.s32.totalorder %s67, 1
    %p421 = scmp.ne.s32.totalorder %s416, %s418
    %p422 = scmp.eq.s32.totalorder %s67, 0
    %p423 = por %p421, %p422
    %p424 = scmp.ne.s32.totalorder %s416, %s418
    %p425 = scmp.eq.s32.totalorder %s72, 1
    %p426 = por %p424, %p425
    %p427 = scmp.ne.s32.totalorder %s418, %s419
    %p428 = scmp.eq.s32.totalorder %s72, 0
    %p429 = por %p427, %p428
    %p430 = scmp.ne.s32.totalorder %s418, %s419
    %p431 = scmp.eq.s32.totalorder %s73, 1
    %p432 = por %p430, %p431
    %p434 = scmp.ne.s32.totalorder %s419, %s433
    %p435 = scmp.eq.s32.totalorder %s73, 0
    %p436 = por %p434, %p435
    %s438 = sadd.s32 %s437, 1
    %p441 = scmp.eq.s32.totalorder %s67, 1
    %p442 = scmp.ne.s32.totalorder %s437, %s439
    %p443 = scmp.eq.s32.totalorder %s67, 0
    %p444 = por %p442, %p443
    %p445 = scmp.ne.s32.totalorder %s437, %s439
    %p446 = scmp.eq.s32.totalorder %s72, 1
    %p447 = por %p445, %p446
    %p448 = scmp.ne.s32.totalorder %s439, %s440
    %p449 = scmp.eq.s32.totalorder %s72, 0
    %p450 = por %p448, %p449
    %p451 = scmp.ne.s32.totalorder %s439, %s440
    %p452 = scmp.eq.s32.totalorder %s73, 1
    %p453 = por %p451, %p452
    %p455 = scmp.ne.s32.totalorder %s440, %s454
    %p456 = scmp.eq.s32.totalorder %s73, 0
    %p457 = por %p455, %p456
    %s459 = sadd.s32 %s458, 1
    %p462 = scmp.eq.s32.totalorder %s67, 1
    %p463 = scmp.ne.s32.totalorder %s458, %s460
    %p464 = scmp.eq.s32.totalorder %s67, 0
    %p465 = por %p463, %p464
    %p466 = scmp.ne.s32.totalorder %s458, %s460
    %p467 = scmp.eq.s32.totalorder %s72, 1
    %p468 = por %p466, %p467
    %p469 = scmp.ne.s32.totalorder %s460, %s461
    %p470 = scmp.eq.s32.totalorder %s72, 0
    %p471 = por %p469, %p470
    %p472 = scmp.ne.s32.totalorder %s460, %s461
    %p473 = scmp.eq.s32.totalorder %s73, 1
    %p474 = por %p472, %p473
    %p476 = scmp.ne.s32.totalorder %s461, %s475
    %p477 = scmp.eq.s32.totalorder %s73, 0
    %p478 = por %p476, %p477
    %s480 = sadd.s32 %s479, 1
    %p483 = scmp.eq.s32.totalorder %s67, 1
    %p484 = scmp.ne.s32.totalorder %s479, %s481
    %p485 = scmp.eq.s32.totalorder %s67, 0
    %p486 = por %p484, %p485
    %p487 = scmp.ne.s32.totalorder %s479, %s481
    %p488 = scmp.eq.s32.totalorder %s72, 1
    %p489 = por %p487, %p488
    %p490 = scmp.ne.s32.totalorder %s481, %s482
    %p491 = scmp.eq.s32.totalorder %s72, 0
    %p492 = por %p490, %p491
    %p493 = scmp.ne.s32.totalorder %s481, %s482
    %p494 = scmp.eq.s32.totalorder %s73, 1
    %p495 = por %p493, %p494
    %p497 = scmp.ne.s32.totalorder %s482, %s496
    %p498 = scmp.eq.s32.totalorder %s73, 0
    %p499 = por %p497, %p498
    %s501 = sadd.s32 %s500, 1
    %p504 = scmp.eq.s32.totalorder %s67, 1
    %p505 = scmp.ne.s32.totalorder %s500, %s502
    %p506 = scmp.eq.s32.totalorder %s67, 0
    %p507 = por %p505, %p506
    %p508 = scmp.ne.s32.totalorder %s500, %s502
    %p509 = scmp.eq.s32.totalorder %s72, 1
    %p510 = por %p508, %p509
    %p511 = scmp.ne.s32.totalorder %s502, %s503
    %p512 = scmp.eq.s32.totalorder %s72, 0
    %p513 = por %p511, %p512
    %p514 = scmp.ne.s32.totalorder %s502, %s503
    %p515 = scmp.eq.s32.totalorder %s73, 1
    %p516 = por %p514, %p515
    %p518 = scmp.ne.s32.totalorder %s503, %s517
    %p519 = scmp.eq.s32.totalorder %s73, 0
    %p520 = por %p518, %p519
    %s522 = sadd.s32 %s521, 1
    %p525 = scmp.eq.s32.totalorder %s67, 1
    %p526 = scmp.ne.s32.totalorder %s521, %s523
    %p527 = scmp.eq.s32.totalorder %s67, 0
    %p528 = por %p526, %p527
    %p529 = scmp.ne.s32.totalorder %s521, %s523
    %p530 = scmp.eq.s32.totalorder %s72, 1
    %p531 = por %p529, %p530
    %p532 = scmp.ne.s32.totalorder %s523, %s524
    %p533 = scmp.eq.s32.totalorder %s72, 0
    %p534 = por %p532, %p533
    %p535 = scmp.ne.s32.totalorder %s523, %s524
    %p536 = scmp.eq.s32.totalorder %s73, 1
    %p537 = por %p535, %p536
    %p539 = scmp.ne.s32.totalorder %s524, %s538
    %p540 = scmp.eq.s32.totalorder %s73, 0
    %p541 = por %p539, %p540
    %s543 = sadd.s32 %s542, 1
    %p546 = scmp.eq.s32.totalorder %s67, 1
    %p547 = scmp.ne.s32.totalorder %s542, %s544
    %p548 = scmp.eq.s32.totalorder %s67, 0
    %p549 = por %p547, %p548
    %p550 = scmp.ne.s32.totalorder %s542, %s544
    %p551 = scmp.eq.s32.totalorder %s72, 1
    %p552 = por %p550, %p551
    %p553 = scmp.ne.s32.totalorder %s544, %s545
    %p554 = scmp.eq.s32.totalorder %s72, 0
    %p555 = por %p553, %p554
    %p556 = scmp.ne.s32.totalorder %s544, %s545
    %p557 = scmp.eq.s32.totalorder %s73, 1
    %p558 = por %p556, %p557
    %p560 = scmp.ne.s32.totalorder %s545, %s559
    %p561 = scmp.eq.s32.totalorder %s73, 0
    %p562 = por %p560, %p561
    %s564 = sadd.s32 %s563, 1
    %p567 = scmp.eq.s32.totalorder %s67, 1
    %p568 = scmp.ne.s32.totalorder %s563, %s565
    %p569 = scmp.eq.s32.totalorder %s67, 0
    %p570 = por %p568, %p569
    %p571 = scmp.ne.s32.totalorder %s563, %s565
    %p572 = scmp.eq.s32.totalorder %s72, 1
    %p573 = por %p571, %p572
    %p574 = scmp.ne.s32.totalorder %s565, %s566
    %p575 = scmp.eq.s32.totalorder %s72, 0
    %p576 = por %p574, %p575
    %p577 = scmp.ne.s32.totalorder %s565, %s566
    %p578 = scmp.eq.s32.totalorder %s73, 1
    %p579 = por %p577, %p578
    %p581 = scmp.ne.s32.totalorder %s566, %s580
    %p582 = scmp.eq.s32.totalorder %s73, 0
    %p583 = por %p581, %p582
    %s585 = sadd.s32 %s584, 1
    %p588 = scmp.eq.s32.totalorder %s67, 1
    %p589 = scmp.ne.s32.totalorder %s584, %s586
    %p590 = scmp.eq.s32.totalorder %s67, 0
    %p591 = por %p589, %p590
    %p592 = scmp.ne.s32.totalorder %s584, %s586
    %p593 = scmp.eq.s32.totalorder %s72, 1
    %p594 = por %p592, %p593
    %p595 = scmp.ne.s32.totalorder %s586, %s587
    %p596 = scmp.eq.s32.totalorder %s72, 0
    %p597 = por %p595, %p596
    %p598 = scmp.ne.s32.totalorder %s586, %s587
    %p599 = scmp.eq.s32.totalorder %s73, 1
    %p600 = por %p598, %p599
    %p602 = scmp.ne.s32.totalorder %s587, %s601
    %p603 = scmp.eq.s32.totalorder %s73, 0
    %p604 = por %p602, %p603
    %s606 = sadd.s32 %s605, 1
    %p609 = scmp.eq.s32.totalorder %s67, 1
    %p610 = scmp.ne.s32.totalorder %s605, %s607
    %p611 = scmp.eq.s32.totalorder %s67, 0
    %p612 = por %p610, %p611
    %p613 = scmp.ne.s32.totalorder %s605, %s607
    %p614 = scmp.eq.s32.totalorder %s72, 1
    %p615 = por %p613, %p614
    %p616 = scmp.ne.s32.totalorder %s607, %s608
    %p617 = scmp.eq.s32.totalorder %s72, 0
    %p618 = por %p616, %p617
    %p619 = scmp.ne.s32.totalorder %s607, %s608
    %p620 = scmp.eq.s32.totalorder %s73, 1
    %p621 = por %p619, %p620
    %p623 = scmp.ne.s32.totalorder %s608, %s622
    %p624 = scmp.eq.s32.totalorder %s73, 0
    %p625 = por %p623, %p624
    %s627 = sadd.s32 %s626, 1
    %p630 = scmp.eq.s32.totalorder %s67, 1
    %p631 = scmp.ne.s32.totalorder %s626, %s628
    %p632 = scmp.eq.s32.totalorder %s67, 0
    %p633 = por %p631, %p632
    %p634 = scmp.ne.s32.totalorder %s626, %s628
    %p635 = scmp.eq.s32.totalorder %s72, 1
    %p636 = por %p634, %p635
    %p637 = scmp.ne.s32.totalorder %s628, %s629
    %p638 = scmp.eq.s32.totalorder %s72, 0
    %p639 = por %p637, %p638
    %p640 = scmp.ne.s32.totalorder %s628, %s629
    %p641 = scmp.eq.s32.totalorder %s73, 1
    %p642 = por %p640, %p641
    %p644 = scmp.ne.s32.totalorder %s629, %s643
    %p645 = scmp.eq.s32.totalorder %s73, 0
    %p646 = por %p644, %p645
    %s648 = sadd.s32 %s647, 1
    %p651 = scmp.eq.s32.totalorder %s67, 1
    %p652 = scmp.ne.s32.totalorder %s647, %s649
    %p653 = scmp.eq.s32.totalorder %s67, 0
    %p654 = por %p652, %p653
    %p655 = scmp.ne.s32.totalorder %s647, %s649
    %p656 = scmp.eq.s32.totalorder %s72, 1
    %p657 = por %p655, %p656
    %p658 = scmp.ne.s32.totalorder %s649, %s650
    %p659 = scmp.eq.s32.totalorder %s72, 0
    %p660 = por %p658, %p659
    %p661 = scmp.ne.s32.totalorder %s649, %s650
    %p662 = scmp.eq.s32.totalorder %s73, 1
    %p663 = por %p661, %p662
    %p665 = scmp.ne.s32.totalorder %s650, %s664
    %p666 = scmp.eq.s32.totalorder %s73, 0
    %p667 = por %p665, %p666
    %s669 = sadd.s32 %s668, 1
    %p672 = scmp.eq.s32.totalorder %s67, 1
    %p673 = scmp.ne.s32.totalorder %s668, %s670
    %p674 = scmp.eq.s32.totalorder %s67, 0
    %p675 = por %p673, %p674
    %p676 = scmp.ne.s32.totalorder %s668, %s670
    %p677 = scmp.eq.s32.totalorder %s72, 1
    %p678 = por %p676, %p677
    %p679 = scmp.ne.s32.totalorder %s670, %s671
    %p680 = scmp.eq.s32.totalorder %s72, 0
    %p681 = por %p679, %p680
    %p682 = scmp.ne.s32.totalorder %s670, %s671
    %p683 = scmp.eq.s32.totalorder %s73, 1
    %p684 = por %p682, %p683
    %p686 = scmp.ne.s32.totalorder %s671, %s685
    %p687 = scmp.eq.s32.totalorder %s73, 0
    %p688 = por %p686, %p687
    %s690 = sadd.s32 %s689, 1
    %p693 = scmp.eq.s32.totalorder %s67, 1
    %p694 = scmp.ne.s32.totalorder %s689, %s691
    %p695 = scmp.eq.s32.totalorder %s67, 0
    %p696 = por %p694, %p695
    %p697 = scmp.ne.s32.totalorder %s689, %s691
    %p698 = scmp.eq.s32.totalorder %s72, 1
    %p699 = por %p697, %p698
    %p700 = scmp.ne.s32.totalorder %s691, %s692
    %p701 = scmp.eq.s32.totalorder %s72, 0
    %p702 = por %p700, %p701
    %p703 = scmp.ne.s32.totalorder %s691, %s692
    %p704 = scmp.eq.s32.totalorder %s73, 1
    %p705 = por %p703, %p704
    %p707 = scmp.ne.s32.totalorder %s692, %s706
    %p708 = scmp.eq.s32.totalorder %s73, 0
    %p709 = por %p707, %p708
    %s710 = ssub.s32 %s67, %s74
    %p711 = scmp.eq.s32.totalorder %s710, 0
    %s713 = sadd.s32 %s712, 1
    %s714 = scalar_select %p711, %s712, %s713
    %p717 = pneg %p711
    %p718 = scmp.eq.s32.totalorder %s67, 1
    %p719 = por %p717, %p718
    %p720 = scmp.ne.s32.totalorder %s712, %s715
    %p721 = scmp.eq.s32.totalorder %s67, 0
    %p722 = por %p720, %p721
    %p723 = scmp.ne.s32.totalorder %s712, %s715
    %p724 = scmp.eq.s32.totalorder %s72, 1
    %p725 = por %p723, %p724
    %p726 = scmp.ne.s32.totalorder %s715, %s716
    %p727 = scmp.eq.s32.totalorder %s72, 0
    %p728 = por %p726, %p727
    %p729 = scmp.ne.s32.totalorder %s715, %s716
    %p730 = scmp.eq.s32.totalorder %s73, 1
    %p731 = por %p729, %p730
    %p733 = scmp.ne.s32.totalorder %s716, %s732
    %p734 = scmp.eq.s32.totalorder %s73, 0
    %p735 = por %p733, %p734
    %p736 = scmp.le.s32.totalorder 1, %s67
    %p737 = scmp.lt.s32.totalorder %s67, 3
    %p738 = pnand %p736, %p737
    %p739 = pneg %p738
    // Predicated region
    $region9: #{forward.1} parent=5 // pred_check
      _
    $region10: #{forward.1} parent=5 // pred_check_branch
      %741 = sbr.rel (%p738) target = $region12
    $region11: #{forward.1} parent=5 // pred_region
      %s742 = ssub.s32 %s67, 1
      // Predicated region
      $region13: #{forward.1} parent=11 // pred_check
        %p743 = pneg %p114
      $region14: #{forward.1} parent=11 // pred_check_branch
        %745 = sbr.rel (%p743) target = $region16
      $region15: #{forward.1} parent=11 // pred_region
        _
      $region16: #{forward.1} parent=11 // pred_fallthru
        _
      // Predicated region
      $region17: #{forward.1} parent=11 // pred_check
        %p746 = pneg %p135
      $region18: #{forward.1} parent=11 // pred_check_branch
        %748 = sbr.rel (%p746) target = $region20
      $region19: #{forward.1} parent=11 // pred_region
        _
      $region20: #{forward.1} parent=11 // pred_fallthru
        _
      // Predicated region
      $region21: #{forward.1} parent=11 // pred_check
        %p749 = pneg %p156
      $region22: #{forward.1} parent=11 // pred_check_branch
        %751 = sbr.rel (%p749) target = $region24
      $region23: #{forward.1} parent=11 // pred_region
        _
      $region24: #{forward.1} parent=11 // pred_fallthru
        _
      // Predicated region
      $region25: #{forward.1} parent=11 // pred_check
        %p752 = pneg %p177
      $region26: #{forward.1} parent=11 // pred_check_branch
        %754 = sbr.rel (%p752) target = $region28
      $region27: #{forward.1} parent=11 // pred_region
        _
      $region28: #{forward.1} parent=11 // pred_fallthru
        _
      // Predicated region
      $region29: #{forward.1} parent=11 // pred_check
        %p755 = pneg %p198
      $region30: #{forward.1} parent=11 // pred_check_branch
        %757 = sbr.rel (%p755) target = $region32
      $region31: #{forward.1} parent=11 // pred_region
        _
      $region32: #{forward.1} parent=11 // pred_fallthru
        _
      // Predicated region
      $region33: #{forward.1} parent=11 // pred_check
        %p758 = pneg %p219
      $region34: #{forward.1} parent=11 // pred_check_branch
        %760 = sbr.rel (%p758) target = $region36
      $region35: #{forward.1} parent=11 // pred_region
        _
      $region36: #{forward.1} parent=11 // pred_fallthru
        _
      // Predicated region
      $region37: #{forward.1} parent=11 // pred_check
        %p761 = pneg %p240
      $region38: #{forward.1} parent=11 // pred_check_branch
        %763 = sbr.rel (%p761) target = $region40
      $region39: #{forward.1} parent=11 // pred_region
        _
      $region40: #{forward.1} parent=11 // pred_fallthru
        _
      // Predicated region
      $region41: #{forward.1} parent=11 // pred_check
        %p764 = pneg %p261
      $region42: #{forward.1} parent=11 // pred_check_branch
        %766 = sbr.rel (%p764) target = $region44
      $region43: #{forward.1} parent=11 // pred_region
        _
      $region44: #{forward.1} parent=11 // pred_fallthru
        _
      // Predicated region
      $region45: #{forward.1} parent=11 // pred_check
        %p767 = pneg %p282
      $region46: #{forward.1} parent=11 // pred_check_branch
        %769 = sbr.rel (%p767) target = $region48
      $region47: #{forward.1} parent=11 // pred_region
        _
      $region48: #{forward.1} parent=11 // pred_fallthru
        _
      // Predicated region
      $region49: #{forward.1} parent=11 // pred_check
        %p770 = pneg %p303
      $region50: #{forward.1} parent=11 // pred_check_branch
        %772 = sbr.rel (%p770) target = $region52
      $region51: #{forward.1} parent=11 // pred_region
        _
      $region52: #{forward.1} parent=11 // pred_fallthru
        _
      // Predicated region
      $region53: #{forward.1} parent=11 // pred_check
        %p773 = pneg %p324
      $region54: #{forward.1} parent=11 // pred_check_branch
        %775 = sbr.rel (%p773) target = $region56
      $region55: #{forward.1} parent=11 // pred_region
        _
      $region56: #{forward.1} parent=11 // pred_fallthru
        _
      // Predicated region
      $region57: #{forward.1} parent=11 // pred_check
        %p776 = pneg %p345
      $region58: #{forward.1} parent=11 // pred_check_branch
        %778 = sbr.rel (%p776) target = $region60
      $region59: #{forward.1} parent=11 // pred_region
        _
      $region60: #{forward.1} parent=11 // pred_fallthru
        _
      // Predicated region
      $region61: #{forward.1} parent=11 // pred_check
        %p779 = pneg %p366
      $region62: #{forward.1} parent=11 // pred_check_branch
        %781 = sbr.rel (%p779) target = $region64
      $region63: #{forward.1} parent=11 // pred_region
        _
      $region64: #{forward.1} parent=11 // pred_fallthru
        _
      // Predicated region
      $region65: #{forward.1} parent=11 // pred_check
        %p782 = pneg %p387
      $region66: #{forward.1} parent=11 // pred_check_branch
        %784 = sbr.rel (%p782) target = $region68
      $region67: #{forward.1} parent=11 // pred_region
        _
      $region68: #{forward.1} parent=11 // pred_fallthru
        _
      // Predicated region
      $region69: #{forward.1} parent=11 // pred_check
        %p785 = pneg %p408
      $region70: #{forward.1} parent=11 // pred_check_branch
        %787 = sbr.rel (%p785) target = $region72
      $region71: #{forward.1} parent=11 // pred_region
        _
      $region72: #{forward.1} parent=11 // pred_fallthru
        _
      // Predicated region
      $region73: #{forward.1} parent=11 // pred_check
        %p788 = pneg %p429
      $region74: #{forward.1} parent=11 // pred_check_branch
        %790 = sbr.rel (%p788) target = $region76
      $region75: #{forward.1} parent=11 // pred_region
        _
      $region76: #{forward.1} parent=11 // pred_fallthru
        _
      // Predicated region
      $region77: #{forward.1} parent=11 // pred_check
        %p791 = pneg %p450
      $region78: #{forward.1} parent=11 // pred_check_branch
        %793 = sbr.rel (%p791) target = $region80
      $region79: #{forward.1} parent=11 // pred_region
        _
      $region80: #{forward.1} parent=11 // pred_fallthru
        _
      // Predicated region
      $region81: #{forward.1} parent=11 // pred_check
        %p794 = pneg %p471
      $region82: #{forward.1} parent=11 // pred_check_branch
        %796 = sbr.rel (%p794) target = $region84
      $region83: #{forward.1} parent=11 // pred_region
        _
      $region84: #{forward.1} parent=11 // pred_fallthru
        _
      // Predicated region
      $region85: #{forward.1} parent=11 // pred_check
        %p797 = pneg %p492
      $region86: #{forward.1} parent=11 // pred_check_branch
        %799 = sbr.rel (%p797) target = $region88
      $region87: #{forward.1} parent=11 // pred_region
        _
      $region88: #{forward.1} parent=11 // pred_fallthru
        _
      // Predicated region
      $region89: #{forward.1} parent=11 // pred_check
        %p800 = pneg %p513
      $region90: #{forward.1} parent=11 // pred_check_branch
        %802 = sbr.rel (%p800) target = $region92
      $region91: #{forward.1} parent=11 // pred_region
        _
      $region92: #{forward.1} parent=11 // pred_fallthru
        _
      // Predicated region
      $region93: #{forward.1} parent=11 // pred_check
        %p803 = pneg %p534
      $region94: #{forward.1} parent=11 // pred_check_branch
        %805 = sbr.rel (%p803) target = $region96
      $region95: #{forward.1} parent=11 // pred_region
        _
      $region96: #{forward.1} parent=11 // pred_fallthru
        _
      // Predicated region
      $region97: #{forward.1} parent=11 // pred_check
        %p806 = pneg %p555
      $region98: #{forward.1} parent=11 // pred_check_branch
        %808 = sbr.rel (%p806) target = $region100
      $region99: #{forward.1} parent=11 // pred_region
        _
      $region100: #{forward.1} parent=11 // pred_fallthru
        _
      // Predicated region
      $region101: #{forward.1} parent=11 // pred_check
        %p809 = pneg %p576
      $region102: #{forward.1} parent=11 // pred_check_branch
        %811 = sbr.rel (%p809) target = $region104
      $region103: #{forward.1} parent=11 // pred_region
        _
      $region104: #{forward.1} parent=11 // pred_fallthru
        _
      // Predicated region
      $region105: #{forward.1} parent=11 // pred_check
        %p812 = pneg %p597
      $region106: #{forward.1} parent=11 // pred_check_branch
        %814 = sbr.rel (%p812) target = $region108
      $region107: #{forward.1} parent=11 // pred_region
        _
      $region108: #{forward.1} parent=11 // pred_fallthru
        _
      // Predicated region
      $region109: #{forward.1} parent=11 // pred_check
        %p815 = pneg %p618
      $region110: #{forward.1} parent=11 // pred_check_branch
        %817 = sbr.rel (%p815) target = $region112
      $region111: #{forward.1} parent=11 // pred_region
        _
      $region112: #{forward.1} parent=11 // pred_fallthru
        _
      // Predicated region
      $region113: #{forward.1} parent=11 // pred_check
        %p818 = pneg %p639
      $region114: #{forward.1} parent=11 // pred_check_branch
        %820 = sbr.rel (%p818) target = $region116
      $region115: #{forward.1} parent=11 // pred_region
        _
      $region116: #{forward.1} parent=11 // pred_fallthru
        _
      // Predicated region
      $region117: #{forward.1} parent=11 // pred_check
        %p821 = pneg %p660
      $region118: #{forward.1} parent=11 // pred_check_branch
        %823 = sbr.rel (%p821) target = $region120
      $region119: #{forward.1} parent=11 // pred_region
        _
      $region120: #{forward.1} parent=11 // pred_fallthru
        _
      // Predicated region
      $region121: #{forward.1} parent=11 // pred_check
        %p824 = pneg %p681
      $region122: #{forward.1} parent=11 // pred_check_branch
        %826 = sbr.rel (%p824) target = $region124
      $region123: #{forward.1} parent=11 // pred_region
        _
      $region124: #{forward.1} parent=11 // pred_fallthru
        _
      // Predicated region
      $region125: #{forward.1} parent=11 // pred_check
        %p827 = pneg %p702
      $region126: #{forward.1} parent=11 // pred_check_branch
        %829 = sbr.rel (%p827) target = $region128
      $region127: #{forward.1} parent=11 // pred_region
        _
      $region128: #{forward.1} parent=11 // pred_fallthru
        _
    $region12: #{forward.1} parent=5 // pred_fallthru
      _
    %p830 = scmp.lt.s32.totalorder %s67, 2
    // Predicated region
    $region129: #{forward.1} parent=5 // pred_check
      %p831 = pneg %p830
    $region130: #{forward.1} parent=5 // pred_check_branch
      %833 = sbr.rel (%p831) target = $region132
    $region131: #{forward.1} parent=5 // pred_region
      // Predicated region
      $region133: #{forward.1} parent=131 // pred_check
        %p834 = pneg %p87
      $region134: #{forward.1} parent=131 // pred_check_branch
        %836 = sbr.rel (%p834) target = $region136
      $region135: #{forward.1} parent=131 // pred_region
        %p837 = scmp.lt.s32.totalorder %s67, 1
        %s838 = scalar_select %p837, %s67, 1
        %s839 = smul.addr %s838, 2
        %s840 = smul.addr %s839, 8
        %s841 = scalar_lea.vmem %s1, %s840
      $region136: #{forward.1} parent=131 // pred_fallthru
        _
    $region132: #{forward.1} parent=5 // pred_fallthru
      _
    %p842 = scmp.le.s32.totalorder 1, %s67
    %p843 = scmp.lt.s32.totalorder %s67, 3
    %p844 = pnand %p842, %p843
    %p845 = pneg %p844
    // Predicated region
    $region137: #{forward.1} parent=5 // pred_check
      _
    $region138: #{forward.1} parent=5 // pred_check_branch
      %847 = sbr.rel (%p844) target = $region140
    $region139: #{forward.1} parent=5 // pred_region
      %s848 = ssub.s32 %s67, 1
      %p849 = scmp.lt.s32.totalorder %s72, 1
      %s850 = scalar_select %p849, %s72, 1
      %s851 = smul.addr %s850, 2
      %s852 = smul.addr %s851, 8
      %s853 = scalar_lea.vmem %s1, %s852
      %p854 = pneg %p93
      %p855 = pneg %p90
      %p856 = pneg %p114
      %p857 = pneg %p111
      %p858 = pneg %p135
      %p859 = pneg %p132
      %p860 = pneg %p156
      %p861 = pneg %p153
      %p862 = pneg %p177
      %p863 = pneg %p174
      %p864 = pneg %p198
      %p865 = pneg %p195
      %p866 = pneg %p219
      %p867 = pneg %p216
      %p868 = pneg %p240
      %p869 = pneg %p237
      %p870 = pneg %p261
      %p871 = pneg %p258
      %p872 = pneg %p282
      %p873 = pneg %p279
      %p874 = pneg %p303
      %p875 = pneg %p300
      %p876 = pneg %p324
      %p877 = pneg %p321
      %p878 = pneg %p345
      %p879 = pneg %p342
      %p880 = pneg %p366
      %p881 = pneg %p363
      %p882 = pneg %p387
      %p883 = pneg %p384
      %p884 = pneg %p408
      %p885 = pneg %p405
      %p886 = pneg %p429
      %p887 = pneg %p426
      %p888 = pneg %p450
      %p889 = pneg %p447
      %p890 = pneg %p471
      %p891 = pneg %p468
      %p892 = pneg %p492
      %p893 = pneg %p489
      %p894 = pneg %p513
      %p895 = pneg %p510
      %p896 = pneg %p534
      %p897 = pneg %p531
      %p898 = pneg %p555
      %p899 = pneg %p552
      %p900 = pneg %p576
      %p901 = pneg %p573
      %p902 = pneg %p597
      %p903 = pneg %p594
      %p904 = pneg %p618
      %p905 = pneg %p615
      %p906 = pneg %p639
      %p907 = pneg %p636
      %p908 = pneg %p660
      %p909 = pneg %p657
      %p910 = pneg %p681
      %p911 = pneg %p678
      %p912 = pneg %p702
      %p913 = pneg %p699
      %p914 = pneg %p728
      %p915 = pneg %p725
      %p916 = scmp.lt.s32.totalorder %s72, 1
      %s917 = scalar_select %p916, %s72, 1
      %s918 = smul.addr %s917, 2
      %s919 = smul.addr %s918, 8
      %s920 = scalar_lea.vmem %s61, %s919
      %p921 = scmp.lt.s32.totalorder %s72, 1
      %s922 = scalar_select %p921, %s72, 1
      %s923 = smul.addr %s922, 2
      %s924 = smul.addr %s923, 8
      %s925 = scalar_lea.vmem %s1, %s924
      %p926 = scmp.lt.s32.totalorder %s72, 1
      %s927 = scalar_select %p926, %s72, 1
      %s928 = smul.addr %s927, 2
      %s929 = smul.addr %s928, 8
      %s930 = scalar_lea.vmem %s61, %s929
      %v932 = vld [vmem:[%s925] sm:$0xff]
      %v933 = vld [vmem:[%s925 + $0x8] sm:$0xff]
      %v934 = vpack.c.bf16 %v933, %v932
      %v935 = vld [vmem:[%s3] sm:$0xf]
      %v936 = vld [vmem:[%s3 + $0x4] sm:$0xf]
      %v937 = vld [vmem:[%s3 + $0x8] sm:$0xf]
      %v938 = vld [vmem:[%s3 + $0xc] sm:$0xf]
      %v939 = vld [vmem:[%s3 + $0x10] sm:$0xf]
      %v940 = vld [vmem:[%s3 + $0x14] sm:$0xf]
      %v941 = vld [vmem:[%s3 + $0x18] sm:$0xf]
      %v942 = vld [vmem:[%s3 + $0x1c] sm:$0xf]
      %v943 = vld [vmem:[%s3 + $0x20] sm:$0xf]
      %v944 = vld [vmem:[%s3 + $0x24] sm:$0xf]
      %v945 = vld [vmem:[%s3 + $0x28] sm:$0xf]
      %v946 = vld [vmem:[%s3 + $0x2c] sm:$0xf]
      %v947 = vld [vmem:[%s5] sm:$0xff]
      %v948 = vld [vmem:[%s5 + $0x8] sm:$0xff]
      %v961 = vunpack.c.l.b16 %v935
      %v962 = vunpack.c.l.b16 %v936
      %v963 = vunpack.c.l.b16 %v937
      %v964 = vunpack.c.l.b16 %v938
      %v965 = vunpack.c.l.b16 %v939
      %v966 = vunpack.c.l.b16 %v940
      %v967 = vunpack.c.l.b16 %v941
      %v968 = vunpack.c.l.b16 %v942
      %v969 = vunpack.c.l.b16 %v943
      %v970 = vunpack.c.l.b16 %v944
      %v971 = vunpack.c.l.b16 %v945
      %v972 = vunpack.c.l.b16 %v946
      %v973 = vpack.c.b16 %v962, %v961
      %v974 = vpack.c.b16 %v964, %v963
      %v975 = vpack.c.b16 %v966, %v965
      %v976 = vpack.c.b16 %v968, %v967
      %v977 = vpack.c.b16 %v970, %v969
      %v978 = vpack.c.b16 %v972, %v971
      %vm985 = vcmask 785408
      %v987 = vsel %vm985, %v934, 0
      %989 = vmatpush.bf16.msra.mxu0 0
      %990 = vmatpush.bf16.msra.mxu0 0
      %991 = vmatpush.bf16.msra.mxu0 %v978
      %992 = vmatpush.bf16.msra.mxu0 %v977
      %993 = vmatpush.bf16.msra.mxu0 %v976
      %994 = vmatpush.bf16.msra.mxu0 %v975
      %995 = vmatpush.bf16.msra.mxu0 %v974
      %996 = vmatpush.bf16.msra.mxu0 %v973
      %997 = vmatmul.bf16.gmra.mxu0 %v987
      %v998 = vpop.f32.mrf.mxu0
      %v999 = vadd.f32 %v947, %v998
      %v1000 = vpop.f32.mrf.mxu0
      %v1001 = vadd.f32 %v948, %v1000
      %1002 = vdwg.mxu0
      %v1003 = vld [vmem:[%s7] sm:$0x1]
      %v1004 = vld [vmem:[%s9] sm:$0x1]
      %vm1005 = vcmask 261120
      %v1006 = vsel %vm1005, %v999, 0.0
      %1007 = vadd.xlane.f32.xlu0 %v1006
      %v1008 = vpop.xlane.xlu0 %1007
      %v1009 = vsel %vm1005, %v1001, 0.0
      %1010 = vadd.xlane.f32.xlu0 %v1009
      %v1011 = vpop.xlane.xlu0 %1010
      %v1012 = vrcp.pop 32.0
      %v1013 = vmul.f32 32.0, %v1012
      %v1014 = vsub.f32 1.0, %v1013
      %v1015 = vmul.f32 %v1012, %v1014
      %v1016 = vadd.f32 %v1012, %v1015
      %vm1017 = vweird.f32 %v1012
      %v1018 = vsel %vm1017, %v1012, %v1016
      %v1019 = vmul.f32 %v1008, %v1018
      %v1020 = vmul.f32 %v1011, %v1018
      %v1021 = vsub.f32 %v999, %v1019
      %v1022 = vsub.f32 %v1001, %v1020
      %v1023 = vmul.f32 %v1021, %v1021
      %v1024 = vmul.f32 %v1022, %v1022
      %v1025 = vsel %vm1005, %v1023, 0.0
      %1026 = vadd.xlane.f32.xlu0 %v1025
      %v1027 = vpop.xlane.xlu0 %1026
      %v1028 = vsel %vm1005, %v1024, 0.0
      %1029 = vadd.xlane.f32.xlu0 %v1028
      %v1030 = vpop.xlane.xlu0 %1029
      %v1031 = vmul.f32 %v1027, %v1018
      %v1032 = vmul.f32 %v1030, %v1018
      %v1033 = vadd.f32 %v1031, 1e-05
      %v1034 = vadd.f32 %v1032, 1e-05
      %v1035 = vrsqrt.pop %v1033
      %v1036 = vmul.f32 %v1035, %v1033
      %v1037 = vmul.f32 %v1036, %v1035
      %v1038 = vmul.f32 0.5, %v1037
      %v1039 = vsub.f32 1.5, %v1038
      %v1040 = vmul.f32 %v1035, %v1039
      %vm1041 = vweird.f32 %v1033
      %vm1042 = vweird.f32 %v1035
      %vm1043 = vmor %vm1041, %vm1042
      %v1044 = vsel %vm1043, %v1035, %v1040
      %v1045 = vrsqrt.pop %v1034
      %v1046 = vmul.f32 %v1045, %v1034
      %v1047 = vmul.f32 %v1046, %v1045
      %v1048 = vmul.f32 0.5, %v1047
      %v1049 = vsub.f32 1.5, %v1048
      %v1050 = vmul.f32 %v1045, %v1049
      %vm1051 = vweird.f32 %v1034
      %vm1052 = vweird.f32 %v1045
      %vm1053 = vmor %vm1051, %vm1052
      %v1054 = vsel %vm1053, %v1045, %v1050
      %v1055 = vmul.f32 %v1021, %v1044
      %v1056 = vmul.f32 %v1022, %v1054
      %v1058 = vperm.slane %v1003, 0
      %v1060 = vmul.f32 %v1055, %v1058
      %v1061 = vmul.f32 %v1056, %v1058
      %v1063 = vperm.slane %v1004, 0
      %v1065 = vadd.f32 %v1060, %v1063
      %v1066 = vadd.f32 %v1061, %v1063
      %v1067 = vpack.c.bf16 %v1066, %v1065
      %v1068 = vld [vmem:[%s11] sm:$0xf]
      %v1069 = vld [vmem:[%s11 + $0x4] sm:$0xf]
      %v1070 = vld [vmem:[%s11 + $0x8] sm:$0xf]
      %v1071 = vld [vmem:[%s11 + $0xc] sm:$0xf]
      %v1072 = vld [vmem:[%s13] sm:$0x1]
      %v1074 = vperm.slane %v1072, 0
      %v1080 = vunpack.c.l.b16 %v1068
      %v1081 = vunpack.c.l.b16 %v1069
      %v1082 = vunpack.c.l.b16 %v1070
      %v1083 = vunpack.c.l.b16 %v1071
      %v1084 = vpack.c.b16 %v1081, %v1080
      %v1085 = vpack.c.b16 %v1083, %v1082
      %v1089 = vsel %vm1005, %v1067, 0
      %1091 = vmatpush.bf16.msra.mxu0 0
      %1092 = vmatpush.bf16.msra.mxu0 0
      %1093 = vmatpush.bf16.msra.mxu0 0
      %1094 = vmatpush.bf16.msra.mxu0 0
      %1095 = vmatpush.bf16.msra.mxu0 0
      %1096 = vmatpush.bf16.msra.mxu0 0
      %1097 = vmatpush.bf16.msra.mxu0 %v1085
      %1098 = vmatpush.bf16.msra.mxu0 %v1084
      %1099 = vmatmul.bf16.gmra.mxu0 %v1089
      %v1100 = vpop.f32.mrf.mxu0
      %v1101 = vadd.f32 %v1074, %v1100
      %v1102 = vpop.f32.mrf.mxu0
      %v1103 = vadd.f32 %v1074, %v1102
      %1104 = vdwg.mxu0
      %v1105 = vld [vmem:[%s15] sm:$0xf]
      %v1106 = vld [vmem:[%s15 + $0x4] sm:$0xf]
      %v1107 = vld [vmem:[%s15 + $0x8] sm:$0xf]
      %v1108 = vld [vmem:[%s15 + $0xc] sm:$0xf]
      %v1109 = vld [vmem:[%s17] sm:$0x1]
      %v1111 = vperm.slane %v1109, 0
      %v1117 = vunpack.c.l.b16 %v1105
      %v1118 = vunpack.c.l.b16 %v1106
      %v1119 = vunpack.c.l.b16 %v1107
      %v1120 = vunpack.c.l.b16 %v1108
      %v1121 = vpack.c.b16 %v1118, %v1117
      %v1122 = vpack.c.b16 %v1120, %v1119
      %1125 = vmatpush.bf16.msra.mxu0 0
      %1126 = vmatpush.bf16.msra.mxu0 0
      %1127 = vmatpush.bf16.msra.mxu0 0
      %1128 = vmatpush.bf16.msra.mxu0 0
      %1129 = vmatpush.bf16.msra.mxu0 0
      %1130 = vmatpush.bf16.msra.mxu0 0
      %1131 = vmatpush.bf16.msra.mxu0 %v1122
      %1132 = vmatpush.bf16.msra.mxu0 %v1121
      %1133 = vmatmul.bf16.gmra.mxu0 %v1089
      %v1134 = vpop.f32.mrf.mxu0
      %v1135 = vadd.f32 %v1111, %v1134
      %v1136 = vpop.f32.mrf.mxu0
      %v1137 = vadd.f32 %v1111, %v1136
      %1138 = vdwg.mxu0
      %v1139 = vld [vmem:[%s19] sm:$0xf]
      %v1140 = vld [vmem:[%s19 + $0x4] sm:$0xf]
      %v1141 = vld [vmem:[%s19 + $0x8] sm:$0xf]
      %v1142 = vld [vmem:[%s19 + $0xc] sm:$0xf]
      %v1143 = vld [vmem:[%s21] sm:$0x1]
      %v1145 = vperm.slane %v1143, 0
      %v1151 = vunpack.c.l.b16 %v1139
      %v1152 = vunpack.c.l.b16 %v1140
      %v1153 = vunpack.c.l.b16 %v1141
      %v1154 = vunpack.c.l.b16 %v1142
      %v1155 = vpack.c.b16 %v1152, %v1151
      %v1156 = vpack.c.b16 %v1154, %v1153
      %1159 = vmatpush.bf16.msra.mxu0 0
      %1160 = vmatpush.bf16.msra.mxu0 0
      %1161 = vmatpush.bf16.msra.mxu0 0
      %1162 = vmatpush.bf16.msra.mxu0 0
      %1163 = vmatpush.bf16.msra.mxu0 0
      %1164 = vmatpush.bf16.msra.mxu0 0
      %1165 = vmatpush.bf16.msra.mxu0 %v1156
      %1166 = vmatpush.bf16.msra.mxu0 %v1155
      %1167 = vmatmul.bf16.gmra.mxu0 %v1089
      %v1168 = vpop.f32.mrf.mxu0
      %v1169 = vadd.f32 %v1145, %v1168
      %v1170 = vpop.f32.mrf.mxu0
      %v1171 = vadd.f32 %v1145, %v1170
      %1172 = vdwg.mxu0
      %v1173 = vpack.c.bf16 %v1103, %v1101
      %v1174 = vpack.c.bf16 %v1137, %v1135
      %vm1175 = vcmask 64512
      %v1177 = vsel %vm1175, %v1173, 0
      %v1180 = vsel %vm1175, %v1174, 0
      %1182 = vmatpush.bf16.xpose.msra.mxu0 0
      %1183 = vmatpush.bf16.xpose.msra.mxu0 0
      %1184 = vmatpush.bf16.xpose.msra.mxu0 0
      %1185 = vmatpush.bf16.xpose.msra.mxu0 0
      %1186 = vmatpush.bf16.xpose.msra.mxu0 0
      %1187 = vmatpush.bf16.xpose.msra.mxu0 0
      %1188 = vmatpush.bf16.xpose.msra.mxu0 0
      %1189 = vmatpush.bf16.xpose.msra.mxu0 %v1180
      %1190 = vmatmul.bf16.gmra.mxu0 %v1177
      %v1191 = vpop.f32.mrf.mxu0
      %v1192 = vadd.f32 0.0, %v1191
      %v1193 = vpop.f32.mrf.mxu0
      %v1194 = vadd.f32 0.0, %v1193
      %1195 = vdwg.mxu0
      %vm1196 = vcmask 130048
      %v1197 = vsel %vm1196, %v1192, -inf
      %1198 = vmax.xlane.f32.xlu0 %v1197
      %v1199 = vpop.xlane.xlu0 %1198
      %v1200 = vsel %vm1196, %v1194, -inf
      %1201 = vmax.xlane.f32.xlu0 %v1200
      %v1202 = vpop.xlane.xlu0 %1201
      %v1203 = vsub.f32 %v1192, %v1199
      %v1204 = vsub.f32 %v1194, %v1202
      %v1205 = vmul.f32 %v1203, 1.442695
      %v1206 = vpow.pop %v1205
      %v1207 = vmul.f32 %v1204, 1.442695
      %v1208 = vpow.pop %v1207
      %v1209 = vsel %vm1196, %v1206, 0.0
      %1210 = vadd.xlane.f32.xlu0 %v1209
      %v1211 = vpop.xlane.xlu0 %1210
      %v1212 = vsel %vm1196, %v1208, 0.0
      %1213 = vadd.xlane.f32.xlu0 %v1212
      %v1214 = vpop.xlane.xlu0 %1213
      %v1215 = vrcp.pop %v1211
      %v1216 = vrcp.pop %v1214
      %v1217 = vmul.f32 %v1206, %v1215
      %v1218 = vmul.f32 %v1208, %v1216
      %v1219 = vpack.c.bf16 %v1218, %v1217
      %v1220 = vpack.c.bf16 %v1171, %v1169
      %v1222 = vsel %vm1196, %v1219, 0
      %1224 = vmatpush.bf16.msra.mxu0 0
      %1225 = vmatpush.bf16.msra.mxu0 0
      %1226 = vmatpush.bf16.msra.mxu0 0
      %1227 = vmatpush.bf16.msra.mxu0 0
      %1228 = vmatpush.bf16.msra.mxu0 0
      %1229 = vmatpush.bf16.msra.mxu0 0
      %1230 = vmatpush.bf16.msra.mxu0 0
      %1231 = vmatpush.bf16.msra.mxu0 %v1220
      %1232 = vmatmul.bf16.gmra.mxu0 %v1222
      %v1233 = vpop.f32.mrf.mxu0
      %v1234 = vadd.f32 0.0, %v1233
      %v1235 = vpop.f32.mrf.mxu0
      %v1236 = vadd.f32 0.0, %v1235
      %1237 = vdwg.mxu0
      %v1238 = vpack.c.bf16 %v1236, %v1234
      %v1239 = vld [vmem:[%s23] sm:$0xf]
      %s1240 = scalar_lea.vmem %s11, 16
      %v1241 = vld [vmem:[%s1240] sm:$0xf]
      %v1242 = vld [vmem:[%s1240 + $0x4] sm:$0xf]
      %v1243 = vld [vmem:[%s1240 + $0x8] sm:$0xf]
      %v1244 = vld [vmem:[%s1240 + $0xc] sm:$0xf]
      %s1245 = scalar_lea.vmem %s13, 1
      %v1246 = vld [vmem:[%s1245] sm:$0x1]
      %v1248 = vperm.slane %v1246, 0
      %v1254 = vunpack.c.l.b16 %v1241
      %v1255 = vunpack.c.l.b16 %v1242
      %v1256 = vunpack.c.l.b16 %v1243
      %v1257 = vunpack.c.l.b16 %v1244
      %v1258 = vpack.c.b16 %v1255, %v1254
      %v1259 = vpack.c.b16 %v1257, %v1256
      %1262 = vmatpush.bf16.msra.mxu0 0
      %1263 = vmatpush.bf16.msra.mxu0 0
      %1264 = vmatpush.bf16.msra.mxu0 0
      %1265 = vmatpush.bf16.msra.mxu0 0
      %1266 = vmatpush.bf16.msra.mxu0 0
      %1267 = vmatpush.bf16.msra.mxu0 0
      %1268 = vmatpush.bf16.msra.mxu0 %v1259
      %1269 = vmatpush.bf16.msra.mxu0 %v1258
      %1270 = vmatmul.bf16.gmra.mxu0 %v1089
      %v1271 = vpop.f32.mrf.mxu0
      %v1272 = vadd.f32 %v1248, %v1271
      %v1273 = vpop.f32.mrf.mxu0
      %v1274 = vadd.f32 %v1248, %v1273
      %1275 = vdwg.mxu0
      %s1276 = scalar_lea.vmem %s15, 16
      %v1277 = vld [vmem:[%s1276] sm:$0xf]
      %v1278 = vld [vmem:[%s1276 + $0x4] sm:$0xf]
      %v1279 = vld [vmem:[%s1276 + $0x8] sm:$0xf]
      %v1280 = vld [vmem:[%s1276 + $0xc] sm:$0xf]
      %s1281 = scalar_lea.vmem %s17, 1
      %v1282 = vld [vmem:[%s1281] sm:$0x1]
      %v1284 = vperm.slane %v1282, 0
      %v1290 = vunpack.c.l.b16 %v1277
      %v1291 = vunpack.c.l.b16 %v1278
      %v1292 = vunpack.c.l.b16 %v1279
      %v1293 = vunpack.c.l.b16 %v1280
      %v1294 = vpack.c.b16 %v1291, %v1290
      %v1295 = vpack.c.b16 %v1293, %v1292
      %1298 = vmatpush.bf16.msra.mxu0 0
      %1299 = vmatpush.bf16.msra.mxu0 0
      %1300 = vmatpush.bf16.msra.mxu0 0
      %1301 = vmatpush.bf16.msra.mxu0 0
      %1302 = vmatpush.bf16.msra.mxu0 0
      %1303 = vmatpush.bf16.msra.mxu0 0
      %1304 = vmatpush.bf16.msra.mxu0 %v1295
      %1305 = vmatpush.bf16.msra.mxu0 %v1294
      %1306 = vmatmul.bf16.gmra.mxu0 %v1089
      %v1307 = vpop.f32.mrf.mxu0
      %v1308 = vadd.f32 %v1284, %v1307
      %v1309 = vpop.f32.mrf.mxu0
      %v1310 = vadd.f32 %v1284, %v1309
      %1311 = vdwg.mxu0
      %s1312 = scalar_lea.vmem %s19, 16
      %v1313 = vld [vmem:[%s1312] sm:$0xf]
      %v1314 = vld [vmem:[%s1312 + $0x4] sm:$0xf]
      %v1315 = vld [vmem:[%s1312 + $0x8] sm:$0xf]
      %v1316 = vld [vmem:[%s1312 + $0xc] sm:$0xf]
      %s1317 = scalar_lea.vmem %s21, 1
      %v1318 = vld [vmem:[%s1317] sm:$0x1]
      %v1320 = vperm.slane %v1318, 0
      %v1326 = vunpack.c.l.b16 %v1313
      %v1327 = vunpack.c.l.b16 %v1314
      %v1328 = vunpack.c.l.b16 %v1315
      %v1329 = vunpack.c.l.b16 %v1316
      %v1330 = vpack.c.b16 %v1327, %v1326
      %v1331 = vpack.c.b16 %v1329, %v1328
      %1334 = vmatpush.bf16.msra.mxu0 0
      %1335 = vmatpush.bf16.msra.mxu0 0
      %1336 = vmatpush.bf16.msra.mxu0 0
      %1337 = vmatpush.bf16.msra.mxu0 0
      %1338 = vmatpush.bf16.msra.mxu0 0
      %1339 = vmatpush.bf16.msra.mxu0 0
      %1340 = vmatpush.bf16.msra.mxu0 %v1331
      %1341 = vmatpush.bf16.msra.mxu0 %v1330
      %1342 = vmatmul.bf16.gmra.mxu0 %v1089
      %v1343 = vpop.f32.mrf.mxu0
      %v1344 = vadd.f32 %v1320, %v1343
      %v1345 = vpop.f32.mrf.mxu0
      %v1346 = vadd.f32 %v1320, %v1345
      %1347 = vdwg.mxu0
      %v1348 = vpack.c.bf16 %v1274, %v1272
      %v1349 = vpack.c.bf16 %v1310, %v1308
      %v1351 = vsel %vm1175, %v1348, 0
      %v1354 = vsel %vm1175, %v1349, 0
      %1356 = vmatpush.bf16.xpose.msra.mxu0 0
      %1357 = vmatpush.bf16.xpose.msra.mxu0 0
      %1358 = vmatpush.bf16.xpose.msra.mxu0 0
      %1359 = vmatpush.bf16.xpose.msra.mxu0 0
      %1360 = vmatpush.bf16.xpose.msra.mxu0 0
      %1361 = vmatpush.bf16.xpose.msra.mxu0 0
      %1362 = vmatpush.bf16.xpose.msra.mxu0 0
      %1363 = vmatpush.bf16.xpose.msra.mxu0 %v1354
      %1364 = vmatmul.bf16.gmra.mxu0 %v1351
      %v1365 = vpop.f32.mrf.mxu0
      %v1366 = vadd.f32 0.0, %v1365
      %v1367 = vpop.f32.mrf.mxu0
      %v1368 = vadd.f32 0.0, %v1367
      %1369 = vdwg.mxu0
      %v1370 = vsel %vm1196, %v1366, -inf
      %1371 = vmax.xlane.f32.xlu0 %v1370
      %v1372 = vpop.xlane.xlu0 %1371
      %v1373 = vsel %vm1196, %v1368, -inf
      %1374 = vmax.xlane.f32.xlu0 %v1373
      %v1375 = vpop.xlane.xlu0 %1374
      %v1376 = vsub.f32 %v1366, %v1372
      %v1377 = vsub.f32 %v1368, %v1375
      %v1378 = vmul.f32 %v1376, 1.442695
      %v1379 = vpow.pop %v1378
      %v1380 = vmul.f32 %v1377, 1.442695
      %v1381 = vpow.pop %v1380
      %v1382 = vsel %vm1196, %v1379, 0.0
      %1383 = vadd.xlane.f32.xlu0 %v1382
      %v1384 = vpop.xlane.xlu0 %1383
      %v1385 = vsel %vm1196, %v1381, 0.0
      %1386 = vadd.xlane.f32.xlu0 %v1385
      %v1387 = vpop.xlane.xlu0 %1386
      %v1388 = vrcp.pop %v1384
      %v1389 = vrcp.pop %v1387
      %v1390 = vmul.f32 %v1379, %v1388
      %v1391 = vmul.f32 %v1381, %v1389
      %v1392 = vpack.c.bf16 %v1391, %v1390
      %v1393 = vpack.c.bf16 %v1346, %v1344
      %v1395 = vsel %vm1196, %v1392, 0
      %1397 = vmatpush.bf16.msra.mxu0 0
      %1398 = vmatpush.bf16.msra.mxu0 0
      %1399 = vmatpush.bf16.msra.mxu0 0
      %1400 = vmatpush.bf16.msra.mxu0 0
      %1401 = vmatpush.bf16.msra.mxu0 0
      %1402 = vmatpush.bf16.msra.mxu0 0
      %1403 = vmatpush.bf16.msra.mxu0 0
      %1404 = vmatpush.bf16.msra.mxu0 %v1393
      %1405 = vmatmul.bf16.gmra.mxu0 %v1395
      %v1406 = vpop.f32.mrf.mxu0
      %v1407 = vadd.f32 0.0, %v1406
      %v1408 = vpop.f32.mrf.mxu0
      %v1409 = vadd.f32 0.0, %v1408
      %1410 = vdwg.mxu0
      %v1411 = vpack.c.bf16 %v1409, %v1407
      %s1412 = scalar_lea.vmem %s23, 4
      %v1413 = vld [vmem:[%s1412] sm:$0xf]
      %v1415 = vsel %vm1175, %v1411, 0
      %vm1417 = vcmask 1043456
      %v1419 = vsel %vm1417, %v1413, 0
      %1421 = vmatpush.bf16.msra.mxu0 0
      %1422 = vmatpush.bf16.msra.mxu0 0
      %1423 = vmatpush.bf16.msra.mxu0 0
      %1424 = vmatpush.bf16.msra.mxu0 0
      %1425 = vmatpush.bf16.msra.mxu0 0
      %1426 = vmatpush.bf16.msra.mxu0 0
      %1427 = vmatpush.bf16.msra.mxu0 0
      %1428 = vmatpush.bf16.msra.mxu0 %v1419
      %1429 = vmatmul.bf16.gmra.mxu0 %v1415
      %v1430 = vpop.f32.mrf.mxu0
      %v1431 = vadd.f32 0.0, %v1430
      %v1432 = vpop.f32.mrf.mxu0
      %v1433 = vadd.f32 0.0, %v1432
      %1434 = vdwg.mxu0
      %v1436 = vsel %vm1175, %v1238, 0
      %v1439 = vsel %vm1417, %v1239, 0
      %1441 = vmatpush.bf16.msra.mxu0 0
      %1442 = vmatpush.bf16.msra.mxu0 0
      %1443 = vmatpush.bf16.msra.mxu0 0
      %1444 = vmatpush.bf16.msra.mxu0 0
      %1445 = vmatpush.bf16.msra.mxu0 0
      %1446 = vmatpush.bf16.msra.mxu0 0
      %1447 = vmatpush.bf16.msra.mxu0 0
      %1448 = vmatpush.bf16.msra.mxu0 %v1439
      %1449 = vmatmul.bf16.gmra.mxu0 %v1436
      %v1450 = vpop.f32.mrf.mxu0
      %v1451 = vadd.f32 %v1431, %v1450
      %v1452 = vpop.f32.mrf.mxu0
      %v1453 = vadd.f32 %v1433, %v1452
      %1454 = vdwg.mxu0
      %s1455 = scalar_lea.vmem %s11, 32
      %v1456 = vld [vmem:[%s1455] sm:$0xf]
      %v1457 = vld [vmem:[%s1455 + $0x4] sm:$0xf]
      %v1458 = vld [vmem:[%s1455 + $0x8] sm:$0xf]
      %v1459 = vld [vmem:[%s1455 + $0xc] sm:$0xf]
      %s1460 = scalar_lea.vmem %s13, 2
      %v1461 = vld [vmem:[%s1460] sm:$0x1]
      %v1463 = vperm.slane %v1461, 0
      %v1469 = vunpack.c.l.b16 %v1456
      %v1470 = vunpack.c.l.b16 %v1457
      %v1471 = vunpack.c.l.b16 %v1458
      %v1472 = vunpack.c.l.b16 %v1459
      %v1473 = vpack.c.b16 %v1470, %v1469
      %v1474 = vpack.c.b16 %v1472, %v1471
      %1477 = vmatpush.bf16.msra.mxu0 0
      %1478 = vmatpush.bf16.msra.mxu0 0
      %1479 = vmatpush.bf16.msra.mxu0 0
      %1480 = vmatpush.bf16.msra.mxu0 0
      %1481 = vmatpush.bf16.msra.mxu0 0
      %1482 = vmatpush.bf16.msra.mxu0 0
      %1483 = vmatpush.bf16.msra.mxu0 %v1474
      %1484 = vmatpush.bf16.msra.mxu0 %v1473
      %1485 = vmatmul.bf16.gmra.mxu0 %v1089
      %v1486 = vpop.f32.mrf.mxu0
      %v1487 = vadd.f32 %v1463, %v1486
      %v1488 = vpop.f32.mrf.mxu0
      %v1489 = vadd.f32 %v1463, %v1488
      %1490 = vdwg.mxu0
      %s1491 = scalar_lea.vmem %s15, 32
      %v1492 = vld [vmem:[%s1491] sm:$0xf]
      %v1493 = vld [vmem:[%s1491 + $0x4] sm:$0xf]
      %v1494 = vld [vmem:[%s1491 + $0x8] sm:$0xf]
      %v1495 = vld [vmem:[%s1491 + $0xc] sm:$0xf]
      %s1496 = scalar_lea.vmem %s17, 2
      %v1497 = vld [vmem:[%s1496] sm:$0x1]
      %v1499 = vperm.slane %v1497, 0
      %v1505 = vunpack.c.l.b16 %v1492
      %v1506 = vunpack.c.l.b16 %v1493
      %v1507 = vunpack.c.l.b16 %v1494
      %v1508 = vunpack.c.l.b16 %v1495
      %v1509 = vpack.c.b16 %v1506, %v1505
      %v1510 = vpack.c.b16 %v1508, %v1507
      %1513 = vmatpush.bf16.msra.mxu0 0
      %1514 = vmatpush.bf16.msra.mxu0 0
      %1515 = vmatpush.bf16.msra.mxu0 0
      %1516 = vmatpush.bf16.msra.mxu0 0
      %1517 = vmatpush.bf16.msra.mxu0 0
      %1518 = vmatpush.bf16.msra.mxu0 0
      %1519 = vmatpush.bf16.msra.mxu0 %v1510
      %1520 = vmatpush.bf16.msra.mxu0 %v1509
      %1521 = vmatmul.bf16.gmra.mxu0 %v1089
      %v1522 = vpop.f32.mrf.mxu0
      %v1523 = vadd.f32 %v1499, %v1522
      %v1524 = vpop.f32.mrf.mxu0
      %v1525 = vadd.f32 %v1499, %v1524
      %1526 = vdwg.mxu0
      %s1527 = scalar_lea.vmem %s19, 32
      %v1528 = vld [vmem:[%s1527] sm:$0xf]
      %v1529 = vld [vmem:[%s1527 + $0x4] sm:$0xf]
      %v1530 = vld [vmem:[%s1527 + $0x8] sm:$0xf]
      %v1531 = vld [vmem:[%s1527 + $0xc] sm:$0xf]
      %s1532 = scalar_lea.vmem %s21, 2
      %v1533 = vld [vmem:[%s1532] sm:$0x1]
      %v1535 = vperm.slane %v1533, 0
      %v1541 = vunpack.c.l.b16 %v1528
      %v1542 = vunpack.c.l.b16 %v1529
      %v1543 = vunpack.c.l.b16 %v1530
      %v1544 = vunpack.c.l.b16 %v1531
      %v1545 = vpack.c.b16 %v1542, %v1541
      %v1546 = vpack.c.b16 %v1544, %v1543
      %1549 = vmatpush.bf16.msra.mxu0 0
      %1550 = vmatpush.bf16.msra.mxu0 0
      %1551 = vmatpush.bf16.msra.mxu0 0
      %1552 = vmatpush.bf16.msra.mxu0 0
      %1553 = vmatpush.bf16.msra.mxu0 0
      %1554 = vmatpush.bf16.msra.mxu0 0
      %1555 = vmatpush.bf16.msra.mxu0 %v1546
      %1556 = vmatpush.bf16.msra.mxu0 %v1545
      %1557 = vmatmul.bf16.gmra.mxu0 %v1089
      %v1558 = vpop.f32.mrf.mxu0
      %v1559 = vadd.f32 %v1535, %v1558
      %v1560 = vpop.f32.mrf.mxu0
      %v1561 = vadd.f32 %v1535, %v1560
      %1562 = vdwg.mxu0
      %v1563 = vpack.c.bf16 %v1489, %v1487
      %v1564 = vpack.c.bf16 %v1525, %v1523
      %v1566 = vsel %vm1175, %v1563, 0
      %v1569 = vsel %vm1175, %v1564, 0
      %1571 = vmatpush.bf16.xpose.msra.mxu0 0
      %1572 = vmatpush.bf16.xpose.msra.mxu0 0
      %1573 = vmatpush.bf16.xpose.msra.mxu0 0
      %1574 = vmatpush.bf16.xpose.msra.mxu0 0
      %1575 = vmatpush.bf16.xpose.msra.mxu0 0
      %1576 = vmatpush.bf16.xpose.msra.mxu0 0
      %1577 = vmatpush.bf16.xpose.msra.mxu0 0
      %1578 = vmatpush.bf16.xpose.msra.mxu0 %v1569
      %1579 = vmatmul.bf16.gmra.mxu0 %v1566
      %v1580 = vpop.f32.mrf.mxu0
      %v1581 = vadd.f32 0.0, %v1580
      %v1582 = vpop.f32.mrf.mxu0
      %v1583 = vadd.f32 0.0, %v1582
      %1584 = vdwg.mxu0
      %v1585 = vsel %vm1196, %v1581, -inf
      %1586 = vmax.xlane.f32.xlu0 %v1585
      %v1587 = vpop.xlane.xlu0 %1586
      %v1588 = vsel %vm1196, %v1583, -inf
      %1589 = vmax.xlane.f32.xlu0 %v1588
      %v1590 = vpop.xlane.xlu0 %1589
      %v1591 = vsub.f32 %v1581, %v1587
      %v1592 = vsub.f32 %v1583, %v1590
      %v1593 = vmul.f32 %v1591, 1.442695
      %v1594 = vpow.pop %v1593
      %v1595 = vmul.f32 %v1592, 1.442695
      %v1596 = vpow.pop %v1595
      %v1597 = vsel %vm1196, %v1594, 0.0
      %1598 = vadd.xlane.f32.xlu0 %v1597
      %v1599 = vpop.xlane.xlu0 %1598
      %v1600 = vsel %vm1196, %v1596, 0.0
      %1601 = vadd.xlane.f32.xlu0 %v1600
      %v1602 = vpop.xlane.xlu0 %1601
      %v1603 = vrcp.pop %v1599
      %v1604 = vrcp.pop %v1602
      %v1605 = vmul.f32 %v1594, %v1603
      %v1606 = vmul.f32 %v1596, %v1604
      %v1607 = vpack.c.bf16 %v1606, %v1605
      %v1608 = vpack.c.bf16 %v1561, %v1559
      %v1610 = vsel %vm1196, %v1607, 0
      %1612 = vmatpush.bf16.msra.mxu0 0
      %1613 = vmatpush.bf16.msra.mxu0 0
      %1614 = vmatpush.bf16.msra.mxu0 0
      %1615 = vmatpush.bf16.msra.mxu0 0
      %1616 = vmatpush.bf16.msra.mxu0 0
      %1617 = vmatpush.bf16.msra.mxu0 0
      %1618 = vmatpush.bf16.msra.mxu0 0
      %1619 = vmatpush.bf16.msra.mxu0 %v1608
      %1620 = vmatmul.bf16.gmra.mxu0 %v1610
      %v1621 = vpop.f32.mrf.mxu0
      %v1622 = vadd.f32 0.0, %v1621
      %v1623 = vpop.f32.mrf.mxu0
      %v1624 = vadd.f32 0.0, %v1623
      %1625 = vdwg.mxu0
      %v1626 = vpack.c.bf16 %v1624, %v1622
      %s1627 = scalar_lea.vmem %s23, 8
      %v1628 = vld [vmem:[%s1627] sm:$0xf]
      %v1630 = vsel %vm1175, %v1626, 0
      %v1633 = vsel %vm1417, %v1628, 0
      %1635 = vmatpush.bf16.msra.mxu0 0
      %1636 = vmatpush.bf16.msra.mxu0 0
      %1637 = vmatpush.bf16.msra.mxu0 0
      %1638 = vmatpush.bf16.msra.mxu0 0
      %1639 = vmatpush.bf16.msra.mxu0 0
      %1640 = vmatpush.bf16.msra.mxu0 0
      %1641 = vmatpush.bf16.msra.mxu0 0
      %1642 = vmatpush.bf16.msra.mxu0 %v1633
      %1643 = vmatmul.bf16.gmra.mxu0 %v1630
      %v1644 = vpop.f32.mrf.mxu0
      %v1645 = vadd.f32 0.0, %v1644
      %v1646 = vpop.f32.mrf.mxu0
      %v1647 = vadd.f32 0.0, %v1646
      %1648 = vdwg.mxu0
      %v1649 = vadd.f32 %v1451, %v1645
      %v1650 = vadd.f32 %v1453, %v1647
      %s1651 = scalar_lea.vmem %s11, 48
      %v1652 = vld [vmem:[%s1651] sm:$0xf]
      %v1653 = vld [vmem:[%s1651 + $0x4] sm:$0xf]
      %v1654 = vld [vmem:[%s1651 + $0x8] sm:$0xf]
      %v1655 = vld [vmem:[%s1651 + $0xc] sm:$0xf]
      %s1656 = scalar_lea.vmem %s13, 3
      %v1657 = vld [vmem:[%s1656] sm:$0x1]
      %v1659 = vperm.slane %v1657, 0
      %v1665 = vunpack.c.l.b16 %v1652
      %v1666 = vunpack.c.l.b16 %v1653
      %v1667 = vunpack.c.l.b16 %v1654
      %v1668 = vunpack.c.l.b16 %v1655
      %v1669 = vpack.c.b16 %v1666, %v1665
      %v1670 = vpack.c.b16 %v1668, %v1667
      %1673 = vmatpush.bf16.msra.mxu0 0
      %1674 = vmatpush.bf16.msra.mxu0 0
      %1675 = vmatpush.bf16.msra.mxu0 0
      %1676 = vmatpush.bf16.msra.mxu0 0
      %1677 = vmatpush.bf16.msra.mxu0 0
      %1678 = vmatpush.bf16.msra.mxu0 0
      %1679 = vmatpush.bf16.msra.mxu0 %v1670
      %1680 = vmatpush.bf16.msra.mxu0 %v1669
      %1681 = vmatmul.bf16.gmra.mxu0 %v1089
      %v1682 = vpop.f32.mrf.mxu0
      %v1683 = vadd.f32 %v1659, %v1682
      %v1684 = vpop.f32.mrf.mxu0
      %v1685 = vadd.f32 %v1659, %v1684
      %1686 = vdwg.mxu0
      %s1687 = scalar_lea.vmem %s15, 48
      %v1688 = vld [vmem:[%s1687] sm:$0xf]
      %v1689 = vld [vmem:[%s1687 + $0x4] sm:$0xf]
      %v1690 = vld [vmem:[%s1687 + $0x8] sm:$0xf]
      %v1691 = vld [vmem:[%s1687 + $0xc] sm:$0xf]
      %s1692 = scalar_lea.vmem %s17, 3
      %v1693 = vld [vmem:[%s1692] sm:$0x1]
      %v1695 = vperm.slane %v1693, 0
      %v1701 = vunpack.c.l.b16 %v1688
      %v1702 = vunpack.c.l.b16 %v1689
      %v1703 = vunpack.c.l.b16 %v1690
      %v1704 = vunpack.c.l.b16 %v1691
      %v1705 = vpack.c.b16 %v1702, %v1701
      %v1706 = vpack.c.b16 %v1704, %v1703
      %1709 = vmatpush.bf16.msra.mxu0 0
      %1710 = vmatpush.bf16.msra.mxu0 0
      %1711 = vmatpush.bf16.msra.mxu0 0
      %1712 = vmatpush.bf16.msra.mxu0 0
      %1713 = vmatpush.bf16.msra.mxu0 0
      %1714 = vmatpush.bf16.msra.mxu0 0
      %1715 = vmatpush.bf16.msra.mxu0 %v1706
      %1716 = vmatpush.bf16.msra.mxu0 %v1705
      %1717 = vmatmul.bf16.gmra.mxu0 %v1089
      %v1718 = vpop.f32.mrf.mxu0
      %v1719 = vadd.f32 %v1695, %v1718
      %v1720 = vpop.f32.mrf.mxu0
      %v1721 = vadd.f32 %v1695, %v1720
      %1722 = vdwg.mxu0
      %s1723 = scalar_lea.vmem %s19, 48
      %v1724 = vld [vmem:[%s1723] sm:$0xf]
      %v1725 = vld [vmem:[%s1723 + $0x4] sm:$0xf]
      %v1726 = vld [vmem:[%s1723 + $0x8] sm:$0xf]
      %v1727 = vld [vmem:[%s1723 + $0xc] sm:$0xf]
      %s1728 = scalar_lea.vmem %s21, 3
      %v1729 = vld [vmem:[%s1728] sm:$0x1]
      %v1731 = vperm.slane %v1729, 0
      %v1737 = vunpack.c.l.b16 %v1724
      %v1738 = vunpack.c.l.b16 %v1725
      %v1739 = vunpack.c.l.b16 %v1726
      %v1740 = vunpack.c.l.b16 %v1727
      %v1741 = vpack.c.b16 %v1738, %v1737
      %v1742 = vpack.c.b16 %v1740, %v1739
      %1745 = vmatpush.bf16.msra.mxu0 0
      %1746 = vmatpush.bf16.msra.mxu0 0
      %1747 = vmatpush.bf16.msra.mxu0 0
      %1748 = vmatpush.bf16.msra.mxu0 0
      %1749 = vmatpush.bf16.msra.mxu0 0
      %1750 = vmatpush.bf16.msra.mxu0 0
      %1751 = vmatpush.bf16.msra.mxu0 %v1742
      %1752 = vmatpush.bf16.msra.mxu0 %v1741
      %1753 = vmatmul.bf16.gmra.mxu0 %v1089
      %v1754 = vpop.f32.mrf.mxu0
      %v1755 = vadd.f32 %v1731, %v1754
      %v1756 = vpop.f32.mrf.mxu0
      %v1757 = vadd.f32 %v1731, %v1756
      %1758 = vdwg.mxu0
      %v1759 = vpack.c.bf16 %v1685, %v1683
      %v1760 = vpack.c.bf16 %v1721, %v1719
      %v1762 = vsel %vm1175, %v1759, 0
      %v1765 = vsel %vm1175, %v1760, 0
      %1767 = vmatpush.bf16.xpose.msra.mxu0 0
      %1768 = vmatpush.bf16.xpose.msra.mxu0 0
      %1769 = vmatpush.bf16.xpose.msra.mxu0 0
      %1770 = vmatpush.bf16.xpose.msra.mxu0 0
      %1771 = vmatpush.bf16.xpose.msra.mxu0 0
      %1772 = vmatpush.bf16.xpose.msra.mxu0 0
      %1773 = vmatpush.bf16.xpose.msra.mxu0 0
      %1774 = vmatpush.bf16.xpose.msra.mxu0 %v1765
      %1775 = vmatmul.bf16.gmra.mxu0 %v1762
      %v1776 = vpop.f32.mrf.mxu0
      %v1777 = vadd.f32 0.0, %v1776
      %v1778 = vpop.f32.mrf.mxu0
      %v1779 = vadd.f32 0.0, %v1778
      %1780 = vdwg.mxu0
      %v1781 = vsel %vm1196, %v1777, -inf
      %1782 = vmax.xlane.f32.xlu0 %v1781
      %v1783 = vpop.xlane.xlu0 %1782
      %v1784 = vsel %vm1196, %v1779, -inf
      %1785 = vmax.xlane.f32.xlu0 %v1784
      %v1786 = vpop.xlane.xlu0 %1785
      %v1787 = vsub.f32 %v1777, %v1783
      %v1788 = vsub.f32 %v1779, %v1786
      %v1789 = vmul.f32 %v1787, 1.442695
      %v1790 = vpow.pop %v1789
      %v1791 = vmul.f32 %v1788, 1.442695
      %v1792 = vpow.pop %v1791
      %v1793 = vsel %vm1196, %v1790, 0.0
      %1794 = vadd.xlane.f32.xlu0 %v1793
      %v1795 = vpop.xlane.xlu0 %1794
      %v1796 = vsel %vm1196, %v1792, 0.0
      %1797 = vadd.xlane.f32.xlu0 %v1796
      %v1798 = vpop.xlane.xlu0 %1797
      %v1799 = vrcp.pop %v1795
      %v1800 = vrcp.pop %v1798
      %v1801 = vmul.f32 %v1790, %v1799
      %v1802 = vmul.f32 %v1792, %v1800
      %v1803 = vpack.c.bf16 %v1802, %v1801
      %v1804 = vpack.c.bf16 %v1757, %v1755
      %v1806 = vsel %vm1196, %v1803, 0
      %1808 = vmatpush.bf16.msra.mxu0 0
      %1809 = vmatpush.bf16.msra.mxu0 0
      %1810 = vmatpush.bf16.msra.mxu0 0
      %1811 = vmatpush.bf16.msra.mxu0 0
      %1812 = vmatpush.bf16.msra.mxu0 0
      %1813 = vmatpush.bf16.msra.mxu0 0
      %1814 = vmatpush.bf16.msra.mxu0 0
      %1815 = vmatpush.bf16.msra.mxu0 %v1804
      %1816 = vmatmul.bf16.gmra.mxu0 %v1806
      %v1817 = vpop.f32.mrf.mxu0
      %v1818 = vadd.f32 0.0, %v1817
      %v1819 = vpop.f32.mrf.mxu0
      %v1820 = vadd.f32 0.0, %v1819
      %1821 = vdwg.mxu0
      %v1822 = vpack.c.bf16 %v1820, %v1818
      %s1823 = scalar_lea.vmem %s23, 12
      %v1824 = vld [vmem:[%s1823] sm:$0xf]
      %v1826 = vsel %vm1175, %v1822, 0
      %v1829 = vsel %vm1417, %v1824, 0
      %1831 = vmatpush.bf16.msra.mxu0 0
      %1832 = vmatpush.bf16.msra.mxu0 0
      %1833 = vmatpush.bf16.msra.mxu0 0
      %1834 = vmatpush.bf16.msra.mxu0 0
      %1835 = vmatpush.bf16.msra.mxu0 0
      %1836 = vmatpush.bf16.msra.mxu0 0
      %1837 = vmatpush.bf16.msra.mxu0 0
      %1838 = vmatpush.bf16.msra.mxu0 %v1829
      %1839 = vmatmul.bf16.gmra.mxu0 %v1826
      %v1840 = vpop.f32.mrf.mxu0
      %v1841 = vadd.f32 0.0, %v1840
      %v1842 = vpop.f32.mrf.mxu0
      %v1843 = vadd.f32 0.0, %v1842
      %1844 = vdwg.mxu0
      %v1845 = vadd.f32 %v1649, %v1841
      %v1846 = vadd.f32 %v1650, %v1843
      %v1847 = vadd.f32 %v999, %v1845
      %v1848 = vadd.f32 %v1001, %v1846
      %v1849 = vld [vmem:[%s25] sm:$0x1]
      %v1851 = vperm.slane %v1849, 0
      %v1853 = vadd.f32 %v1847, %v1851
      %v1854 = vadd.f32 %v1848, %v1851
      %v1855 = vld [vmem:[%s27] sm:$0x1]
      %v1856 = vld [vmem:[%s29] sm:$0x1]
      %v1857 = vsel %vm1005, %v1853, 0.0
      %1858 = vadd.xlane.f32.xlu0 %v1857
      %v1859 = vpop.xlane.xlu0 %1858
      %v1860 = vsel %vm1005, %v1854, 0.0
      %1861 = vadd.xlane.f32.xlu0 %v1860
      %v1862 = vpop.xlane.xlu0 %1861
      %v1863 = vmul.f32 %v1859, %v1018
      %v1864 = vmul.f32 %v1862, %v1018
      %v1865 = vsub.f32 %v1853, %v1863
      %v1866 = vsub.f32 %v1854, %v1864
      %v1867 = vmul.f32 %v1865, %v1865
      %v1868 = vmul.f32 %v1866, %v1866
      %v1869 = vsel %vm1005, %v1867, 0.0
      %1870 = vadd.xlane.f32.xlu0 %v1869
      %v1871 = vpop.xlane.xlu0 %1870
      %v1872 = vsel %vm1005, %v1868, 0.0
      %1873 = vadd.xlane.f32.xlu0 %v1872
      %v1874 = vpop.xlane.xlu0 %1873
      %v1875 = vmul.f32 %v1871, %v1018
      %v1876 = vmul.f32 %v1874, %v1018
      %v1877 = vadd.f32 %v1875, 1e-05
      %v1878 = vadd.f32 %v1876, 1e-05
      %v1879 = vrsqrt.pop %v1877
      %v1880 = vmul.f32 %v1879, %v1877
      %v1881 = vmul.f32 %v1880, %v1879
      %v1882 = vmul.f32 0.5, %v1881
      %v1883 = vsub.f32 1.5, %v1882
      %v1884 = vmul.f32 %v1879, %v1883
      %vm1885 = vweird.f32 %v1877
      %vm1886 = vweird.f32 %v1879
      %vm1887 = vmor %vm1885, %vm1886
      %v1888 = vsel %vm1887, %v1879, %v1884
      %v1889 = vrsqrt.pop %v1878
      %v1890 = vmul.f32 %v1889, %v1878
      %v1891 = vmul.f32 %v1890, %v1889
      %v1892 = vmul.f32 0.5, %v1891
      %v1893 = vsub.f32 1.5, %v1892
      %v1894 = vmul.f32 %v1889, %v1893
      %vm1895 = vweird.f32 %v1878
      %vm1896 = vweird.f32 %v1889
      %vm1897 = vmor %vm1895, %vm1896
      %v1898 = vsel %vm1897, %v1889, %v1894
      %v1899 = vmul.f32 %v1865, %v1888
      %v1900 = vmul.f32 %v1866, %v1898
      %v1902 = vperm.slane %v1855, 0
      %v1904 = vmul.f32 %v1899, %v1902
      %v1905 = vmul.f32 %v1900, %v1902
      %v1907 = vperm.slane %v1856, 0
      %v1909 = vadd.f32 %v1904, %v1907
      %v1910 = vadd.f32 %v1905, %v1907
      %v1911 = vpack.c.bf16 %v1910, %v1909
      %v1912 = vld [vmem:[%s31] sm:$0xf]
      %v1913 = vld [vmem:[%s31 + $0x4] sm:$0xf]
      %v1914 = vld [vmem:[%s31 + $0x8] sm:$0xf]
      %v1915 = vld [vmem:[%s31 + $0xc] sm:$0xf]
      %v1916 = vld [vmem:[%s33] sm:$0x1]
      %v1918 = vperm.slane %v1916, 0
      %v1924 = vunpack.c.l.b16 %v1912
      %v1925 = vunpack.c.l.b16 %v1913
      %v1926 = vunpack.c.l.b16 %v1914
      %v1927 = vunpack.c.l.b16 %v1915
      %v1928 = vpack.c.b16 %v1925, %v1924
      %v1929 = vpack.c.b16 %v1927, %v1926
      %v1933 = vsel %vm1005, %v1911, 0
      %1935 = vmatpush.bf16.msra.mxu0 0
      %1936 = vmatpush.bf16.msra.mxu0 0
      %1937 = vmatpush.bf16.msra.mxu0 0
      %1938 = vmatpush.bf16.msra.mxu0 0
      %1939 = vmatpush.bf16.msra.mxu0 0
      %1940 = vmatpush.bf16.msra.mxu0 0
      %1941 = vmatpush.bf16.msra.mxu0 %v1929
      %1942 = vmatpush.bf16.msra.mxu0 %v1928
      %1943 = vmatmul.bf16.gmra.mxu0 %v1933
      %v1944 = vpop.f32.mrf.mxu0
      %v1945 = vadd.f32 %v1918, %v1944
      %v1946 = vpop.f32.mrf.mxu0
      %v1947 = vadd.f32 %v1918, %v1946
      %1948 = vdwg.mxu0
      %v1949 = vmul.f32 %v1945, 0.5
      %v1950 = vmul.f32 %v1947, 0.5
      %v1951 = vmul.f32 %v1945, 0.044715
      %v1952 = vmul.f32 %v1947, 0.044715
      %v1953 = vmul.f32 %v1951, %v1945
      %v1954 = vmul.f32 %v1952, %v1947
      %v1955 = vmul.f32 %v1953, %v1945
      %v1956 = vmul.f32 %v1954, %v1947
      %v1957 = vadd.f32 %v1945, %v1955
      %v1958 = vadd.f32 %v1947, %v1956
      %v1959 = vmul.f32 %v1957, 0.7978846
      %v1960 = vmul.f32 %v1958, 0.7978846
      %v1961 = vtanh.pop %v1959
      %v1962 = vtanh.pop %v1960
      %v1963 = vadd.f32 %v1961, 1.0
      %v1964 = vadd.f32 %v1962, 1.0
      %v1965 = vmul.f32 %v1949, %v1963
      %v1966 = vmul.f32 %v1950, %v1964
      %v1967 = vpack.c.bf16 %v1966, %v1965
      %v1968 = vld [vmem:[%s35] sm:$0xf]
      %v1969 = vld [vmem:[%s35 + $0x4] sm:$0xf]
      %v1970 = vld [vmem:[%s35 + $0x8] sm:$0xf]
      %v1971 = vld [vmem:[%s35 + $0xc] sm:$0xf]
      %v1972 = vld [vmem:[%s35 + $0x10] sm:$0xf]
      %v1973 = vld [vmem:[%s35 + $0x14] sm:$0xf]
      %v1974 = vld [vmem:[%s35 + $0x18] sm:$0xf]
      %v1975 = vld [vmem:[%s35 + $0x1c] sm:$0xf]
      %v1976 = vld [vmem:[%s35 + $0x20] sm:$0xf]
      %v1977 = vld [vmem:[%s35 + $0x24] sm:$0xf]
      %v1978 = vld [vmem:[%s35 + $0x28] sm:$0xf]
      %v1979 = vld [vmem:[%s35 + $0x2c] sm:$0xf]
      %v1980 = vld [vmem:[%s35 + $0x30] sm:$0xf]
      %v1981 = vld [vmem:[%s35 + $0x34] sm:$0xf]
      %v1982 = vld [vmem:[%s35 + $0x38] sm:$0xf]
      %v1983 = vld [vmem:[%s35 + $0x3c] sm:$0xf]
      %v2000 = vunpack.c.l.b16 %v1968
      %v2001 = vunpack.c.l.b16 %v1969
      %v2002 = vunpack.c.l.b16 %v1970
      %v2003 = vunpack.c.l.b16 %v1971
      %v2004 = vunpack.c.l.b16 %v1972
      %v2005 = vunpack.c.l.b16 %v1973
      %v2006 = vunpack.c.l.b16 %v1974
      %v2007 = vunpack.c.l.b16 %v1975
      %v2008 = vunpack.c.l.b16 %v1976
      %v2009 = vunpack.c.l.b16 %v1977
      %v2010 = vunpack.c.l.b16 %v1978
      %v2011 = vunpack.c.l.b16 %v1979
      %v2012 = vunpack.c.l.b16 %v1980
      %v2013 = vunpack.c.l.b16 %v1981
      %v2014 = vunpack.c.l.b16 %v1982
      %v2015 = vunpack.c.l.b16 %v1983
      %v2016 = vpack.c.b16 %v2001, %v2000
      %v2017 = vpack.c.b16 %v2003, %v2002
      %v2018 = vpack.c.b16 %v2005, %v2004
      %v2019 = vpack.c.b16 %v2007, %v2006
      %v2020 = vpack.c.b16 %v2009, %v2008
      %v2021 = vpack.c.b16 %v2011, %v2010
      %v2022 = vpack.c.b16 %v2013, %v2012
      %v2023 = vpack.c.b16 %v2015, %v2014
      %2032 = vmatpush.bf16.msra.mxu0 %v2023
      %2033 = vmatpush.bf16.msra.mxu0 %v2022
      %2034 = vmatpush.bf16.msra.mxu0 %v2021
      %2035 = vmatpush.bf16.msra.mxu0 %v2020
      %2036 = vmatpush.bf16.msra.mxu0 %v2019
      %2037 = vmatpush.bf16.msra.mxu0 %v2018
      %2038 = vmatpush.bf16.msra.mxu0 %v2017
      %2039 = vmatpush.bf16.msra.mxu0 %v2016
      %2040 = vmatmul.bf16.gmra.mxu0 %v1967
      %v2041 = vpop.f32.mrf.mxu0
      %v2042 = vadd.f32 0.0, %v2041
      %v2043 = vpop.f32.mrf.mxu0
      %v2044 = vadd.f32 0.0, %v2043
      %2045 = vdwg.mxu0
      %v2046 = vadd.f32 %v1853, %v2042
      %v2047 = vadd.f32 %v1854, %v2044
      %v2048 = vld [vmem:[%s37] sm:$0x1]
      %v2050 = vperm.slane %v2048, 0
      %v2052 = vadd.f32 %v2046, %v2050
      %v2053 = vadd.f32 %v2047, %v2050
      %s2054 = scalar_lea.vmem %s7, 1
      %v2055 = vld [vmem:[%s2054] sm:$0x1]
      %s2056 = scalar_lea.vmem %s9, 1
      %v2057 = vld [vmem:[%s2056] sm:$0x1]
      %v2058 = vsel %vm1005, %v2052, 0.0
      %2059 = vadd.xlane.f32.xlu0 %v2058
      %v2060 = vpop.xlane.xlu0 %2059
      %v2061 = vsel %vm1005, %v2053, 0.0
      %2062 = vadd.xlane.f32.xlu0 %v2061
      %v2063 = vpop.xlane.xlu0 %2062
      %v2064 = vmul.f32 %v2060, %v1018
      %v2065 = vmul.f32 %v2063, %v1018
      %v2066 = vsub.f32 %v2052, %v2064
      %v2067 = vsub.f32 %v2053, %v2065
      %v2068 = vmul.f32 %v2066, %v2066
      %v2069 = vmul.f32 %v2067, %v2067
      %v2070 = vsel %vm1005, %v2068, 0.0
      %2071 = vadd.xlane.f32.xlu0 %v2070
      %v2072 = vpop.xlane.xlu0 %2071
      %v2073 = vsel %vm1005, %v2069, 0.0
      %2074 = vadd.xlane.f32.xlu0 %v2073
      %v2075 = vpop.xlane.xlu0 %2074
      %v2076 = vmul.f32 %v2072, %v1018
      %v2077 = vmul.f32 %v2075, %v1018
      %v2078 = vadd.f32 %v2076, 1e-05
      %v2079 = vadd.f32 %v2077, 1e-05
      %v2080 = vrsqrt.pop %v2078
      %v2081 = vmul.f32 %v2080, %v2078
      %v2082 = vmul.f32 %v2081, %v2080
      %v2083 = vmul.f32 0.5, %v2082
      %v2084 = vsub.f32 1.5, %v2083
      %v2085 = vmul.f32 %v2080, %v2084
      %vm2086 = vweird.f32 %v2078
      %vm2087 = vweird.f32 %v2080
      %vm2088 = vmor %vm2086, %vm2087
      %v2089 = vsel %vm2088, %v2080, %v2085
      %v2090 = vrsqrt.pop %v2079
      %v2091 = vmul.f32 %v2090, %v2079
      %v2092 = vmul.f32 %v2091, %v2090
      %v2093 = vmul.f32 0.5, %v2092
      %v2094 = vsub.f32 1.5, %v2093
      %v2095 = vmul.f32 %v2090, %v2094
      %vm2096 = vweird.f32 %v2079
      %vm2097 = vweird.f32 %v2090
      %vm2098 = vmor %vm2096, %vm2097
      %v2099 = vsel %vm2098, %v2090, %v2095
      %v2100 = vmul.f32 %v2066, %v2089
      %v2101 = vmul.f32 %v2067, %v2099
      %v2103 = vperm.slane %v2055, 0
      %v2105 = vmul.f32 %v2100, %v2103
      %v2106 = vmul.f32 %v2101, %v2103
      %v2108 = vperm.slane %v2057, 0
      %v2110 = vadd.f32 %v2105, %v2108
      %v2111 = vadd.f32 %v2106, %v2108
      %v2112 = vpack.c.bf16 %v2111, %v2110
      %s2113 = scalar_lea.vmem %s11, 64
      %v2114 = vld [vmem:[%s2113] sm:$0xf]
      %v2115 = vld [vmem:[%s2113 + $0x4] sm:$0xf]
      %v2116 = vld [vmem:[%s2113 + $0x8] sm:$0xf]
      %v2117 = vld [vmem:[%s2113 + $0xc] sm:$0xf]
      %s2118 = scalar_lea.vmem %s13, 4
      %v2119 = vld [vmem:[%s2118] sm:$0x1]
      %v2121 = vperm.slane %v2119, 0
      %v2127 = vunpack.c.l.b16 %v2114
      %v2128 = vunpack.c.l.b16 %v2115
      %v2129 = vunpack.c.l.b16 %v2116
      %v2130 = vunpack.c.l.b16 %v2117
      %v2131 = vpack.c.b16 %v2128, %v2127
      %v2132 = vpack.c.b16 %v2130, %v2129
      %v2136 = vsel %vm1005, %v2112, 0
      %2138 = vmatpush.bf16.msra.mxu0 0
      %2139 = vmatpush.bf16.msra.mxu0 0
      %2140 = vmatpush.bf16.msra.mxu0 0
      %2141 = vmatpush.bf16.msra.mxu0 0
      %2142 = vmatpush.bf16.msra.mxu0 0
      %2143 = vmatpush.bf16.msra.mxu0 0
      %2144 = vmatpush.bf16.msra.mxu0 %v2132
      %2145 = vmatpush.bf16.msra.mxu0 %v2131
      %2146 = vmatmul.bf16.gmra.mxu0 %v2136
      %v2147 = vpop.f32.mrf.mxu0
      %v2148 = vadd.f32 %v2121, %v2147
      %v2149 = vpop.f32.mrf.mxu0
      %v2150 = vadd.f32 %v2121, %v2149
      %2151 = vdwg.mxu0
      %s2152 = scalar_lea.vmem %s15, 64
      %v2153 = vld [vmem:[%s2152] sm:$0xf]
      %v2154 = vld [vmem:[%s2152 + $0x4] sm:$0xf]
      %v2155 = vld [vmem:[%s2152 + $0x8] sm:$0xf]
      %v2156 = vld [vmem:[%s2152 + $0xc] sm:$0xf]
      %s2157 = scalar_lea.vmem %s17, 4
      %v2158 = vld [vmem:[%s2157] sm:$0x1]
      %v2160 = vperm.slane %v2158, 0
      %v2166 = vunpack.c.l.b16 %v2153
      %v2167 = vunpack.c.l.b16 %v2154
      %v2168 = vunpack.c.l.b16 %v2155
      %v2169 = vunpack.c.l.b16 %v2156
      %v2170 = vpack.c.b16 %v2167, %v2166
      %v2171 = vpack.c.b16 %v2169, %v2168
      %2174 = vmatpush.bf16.msra.mxu0 0
      %2175 = vmatpush.bf16.msra.mxu0 0
      %2176 = vmatpush.bf16.msra.mxu0 0
      %2177 = vmatpush.bf16.msra.mxu0 0
      %2178 = vmatpush.bf16.msra.mxu0 0
      %2179 = vmatpush.bf16.msra.mxu0 0
      %2180 = vmatpush.bf16.msra.mxu0 %v2171
      %2181 = vmatpush.bf16.msra.mxu0 %v2170
      %2182 = vmatmul.bf16.gmra.mxu0 %v2136
      %v2183 = vpop.f32.mrf.mxu0
      %v2184 = vadd.f32 %v2160, %v2183
      %v2185 = vpop.f32.mrf.mxu0
      %v2186 = vadd.f32 %v2160, %v2185
      %2187 = vdwg.mxu0
      %s2188 = scalar_lea.vmem %s19, 64
      %v2189 = vld [vmem:[%s2188] sm:$0xf]
      %v2190 = vld [vmem:[%s2188 + $0x4] sm:$0xf]
      %v2191 = vld [vmem:[%s2188 + $0x8] sm:$0xf]
      %v2192 = vld [vmem:[%s2188 + $0xc] sm:$0xf]
      %s2193 = scalar_lea.vmem %s21, 4
      %v2194 = vld [vmem:[%s2193] sm:$0x1]
      %v2196 = vperm.slane %v2194, 0
      %v2202 = vunpack.c.l.b16 %v2189
      %v2203 = vunpack.c.l.b16 %v2190
      %v2204 = vunpack.c.l.b16 %v2191
      %v2205 = vunpack.c.l.b16 %v2192
      %v2206 = vpack.c.b16 %v2203, %v2202
      %v2207 = vpack.c.b16 %v2205, %v2204
      %2210 = vmatpush.bf16.msra.mxu0 0
      %2211 = vmatpush.bf16.msra.mxu0 0
      %2212 = vmatpush.bf16.msra.mxu0 0
      %2213 = vmatpush.bf16.msra.mxu0 0
      %2214 = vmatpush.bf16.msra.mxu0 0
      %2215 = vmatpush.bf16.msra.mxu0 0
      %2216 = vmatpush.bf16.msra.mxu0 %v2207
      %2217 = vmatpush.bf16.msra.mxu0 %v2206
      %2218 = vmatmul.bf16.gmra.mxu0 %v2136
      %v2219 = vpop.f32.mrf.mxu0
      %v2220 = vadd.f32 %v2196, %v2219
      %v2221 = vpop.f32.mrf.mxu0
      %v2222 = vadd.f32 %v2196, %v2221
      %2223 = vdwg.mxu0
      %v2224 = vpack.c.bf16 %v2150, %v2148
      %v2225 = vpack.c.bf16 %v2186, %v2184
      %v2227 = vsel %vm1175, %v2224, 0
      %v2230 = vsel %vm1175, %v2225, 0
      %2232 = vmatpush.bf16.xpose.msra.mxu0 0
      %2233 = vmatpush.bf16.xpose.msra.mxu0 0
      %2234 = vmatpush.bf16.xpose.msra.mxu0 0
      %2235 = vmatpush.bf16.xpose.msra.mxu0 0
      %2236 = vmatpush.bf16.xpose.msra.mxu0 0
      %2237 = vmatpush.bf16.xpose.msra.mxu0 0
      %2238 = vmatpush.bf16.xpose.msra.mxu0 0
      %2239 = vmatpush.bf16.xpose.msra.mxu0 %v2230
      %2240 = vmatmul.bf16.gmra.mxu0 %v2227
      %v2241 = vpop.f32.mrf.mxu0
      %v2242 = vadd.f32 0.0, %v2241
      %v2243 = vpop.f32.mrf.mxu0
      %v2244 = vadd.f32 0.0, %v2243
      %2245 = vdwg.mxu0
      %v2246 = vsel %vm1196, %v2242, -inf
      %2247 = vmax.xlane.f32.xlu0 %v2246
      %v2248 = vpop.xlane.xlu0 %2247
      %v2249 = vsel %vm1196, %v2244, -inf
      %2250 = vmax.xlane.f32.xlu0 %v2249
      %v2251 = vpop.xlane.xlu0 %2250
      %v2252 = vsub.f32 %v2242, %v2248
      %v2253 = vsub.f32 %v2244, %v2251
      %v2254 = vmul.f32 %v2252, 1.442695
      %v2255 = vpow.pop %v2254
      %v2256 = vmul.f32 %v2253, 1.442695
      %v2257 = vpow.pop %v2256
      %v2258 = vsel %vm1196, %v2255, 0.0
      %2259 = vadd.xlane.f32.xlu0 %v2258
      %v2260 = vpop.xlane.xlu0 %2259
      %v2261 = vsel %vm1196, %v2257, 0.0
      %2262 = vadd.xlane.f32.xlu0 %v2261
      %v2263 = vpop.xlane.xlu0 %2262
      %v2264 = vrcp.pop %v2260
      %v2265 = vrcp.pop %v2263
      %v2266 = vmul.f32 %v2255, %v2264
      %v2267 = vmul.f32 %v2257, %v2265
      %v2268 = vpack.c.bf16 %v2267, %v2266
      %v2269 = vpack.c.bf16 %v2222, %v2220
      %v2271 = vsel %vm1196, %v2268, 0
      %2273 = vmatpush.bf16.msra.mxu0 0
      %2274 = vmatpush.bf16.msra.mxu0 0
      %2275 = vmatpush.bf16.msra.mxu0 0
      %2276 = vmatpush.bf16.msra.mxu0 0
      %2277 = vmatpush.bf16.msra.mxu0 0
      %2278 = vmatpush.bf16.msra.mxu0 0
      %2279 = vmatpush.bf16.msra.mxu0 0
      %2280 = vmatpush.bf16.msra.mxu0 %v2269
      %2281 = vmatmul.bf16.gmra.mxu0 %v2271
      %v2282 = vpop.f32.mrf.mxu0
      %v2283 = vadd.f32 0.0, %v2282
      %v2284 = vpop.f32.mrf.mxu0
      %v2285 = vadd.f32 0.0, %v2284
      %2286 = vdwg.mxu0
      %v2287 = vpack.c.bf16 %v2285, %v2283
      %s2288 = scalar_lea.vmem %s23, 16
      %v2289 = vld [vmem:[%s2288] sm:$0xf]
      %s2290 = scalar_lea.vmem %s11, 80
      %v2291 = vld [vmem:[%s2290] sm:$0xf]
      %v2292 = vld [vmem:[%s2290 + $0x4] sm:$0xf]
      %v2293 = vld [vmem:[%s2290 + $0x8] sm:$0xf]
      %v2294 = vld [vmem:[%s2290 + $0xc] sm:$0xf]
      %s2295 = scalar_lea.vmem %s13, 5
      %v2296 = vld [vmem:[%s2295] sm:$0x1]
      %v2298 = vperm.slane %v2296, 0
      %v2304 = vunpack.c.l.b16 %v2291
      %v2305 = vunpack.c.l.b16 %v2292
      %v2306 = vunpack.c.l.b16 %v2293
      %v2307 = vunpack.c.l.b16 %v2294
      %v2308 = vpack.c.b16 %v2305, %v2304
      %v2309 = vpack.c.b16 %v2307, %v2306
      %2312 = vmatpush.bf16.msra.mxu0 0
      %2313 = vmatpush.bf16.msra.mxu0 0
      %2314 = vmatpush.bf16.msra.mxu0 0
      %2315 = vmatpush.bf16.msra.mxu0 0
      %2316 = vmatpush.bf16.msra.mxu0 0
      %2317 = vmatpush.bf16.msra.mxu0 0
      %2318 = vmatpush.bf16.msra.mxu0 %v2309
      %2319 = vmatpush.bf16.msra.mxu0 %v2308
      %2320 = vmatmul.bf16.gmra.mxu0 %v2136
      %v2321 = vpop.f32.mrf.mxu0
      %v2322 = vadd.f32 %v2298, %v2321
      %v2323 = vpop.f32.mrf.mxu0
      %v2324 = vadd.f32 %v2298, %v2323
      %2325 = vdwg.mxu0
      %s2326 = scalar_lea.vmem %s15, 80
      %v2327 = vld [vmem:[%s2326] sm:$0xf]
      %v2328 = vld [vmem:[%s2326 + $0x4] sm:$0xf]
      %v2329 = vld [vmem:[%s2326 + $0x8] sm:$0xf]
      %v2330 = vld [vmem:[%s2326 + $0xc] sm:$0xf]
      %s2331 = scalar_lea.vmem %s17, 5
      %v2332 = vld [vmem:[%s2331] sm:$0x1]
      %v2334 = vperm.slane %v2332, 0
      %v2340 = vunpack.c.l.b16 %v2327
      %v2341 = vunpack.c.l.b16 %v2328
      %v2342 = vunpack.c.l.b16 %v2329
      %v2343 = vunpack.c.l.b16 %v2330
      %v2344 = vpack.c.b16 %v2341, %v2340
      %v2345 = vpack.c.b16 %v2343, %v2342
      %2348 = vmatpush.bf16.msra.mxu0 0
      %2349 = vmatpush.bf16.msra.mxu0 0
      %2350 = vmatpush.bf16.msra.mxu0 0
      %2351 = vmatpush.bf16.msra.mxu0 0
      %2352 = vmatpush.bf16.msra.mxu0 0
      %2353 = vmatpush.bf16.msra.mxu0 0
      %2354 = vmatpush.bf16.msra.mxu0 %v2345
      %2355 = vmatpush.bf16.msra.mxu0 %v2344
      %2356 = vmatmul.bf16.gmra.mxu0 %v2136
      %v2357 = vpop.f32.mrf.mxu0
      %v2358 = vadd.f32 %v2334, %v2357
      %v2359 = vpop.f32.mrf.mxu0
      %v2360 = vadd.f32 %v2334, %v2359
      %2361 = vdwg.mxu0
      %s2362 = scalar_lea.vmem %s19, 80
      %v2363 = vld [vmem:[%s2362] sm:$0xf]
      %v2364 = vld [vmem:[%s2362 + $0x4] sm:$0xf]
      %v2365 = vld [vmem:[%s2362 + $0x8] sm:$0xf]
      %v2366 = vld [vmem:[%s2362 + $0xc] sm:$0xf]
      %s2367 = scalar_lea.vmem %s21, 5
      %v2368 = vld [vmem:[%s2367] sm:$0x1]
      %v2370 = vperm.slane %v2368, 0
      %v2376 = vunpack.c.l.b16 %v2363
      %v2377 = vunpack.c.l.b16 %v2364
      %v2378 = vunpack.c.l.b16 %v2365
      %v2379 = vunpack.c.l.b16 %v2366
      %v2380 = vpack.c.b16 %v2377, %v2376
      %v2381 = vpack.c.b16 %v2379, %v2378
      %2384 = vmatpush.bf16.msra.mxu0 0
      %2385 = vmatpush.bf16.msra.mxu0 0
      %2386 = vmatpush.bf16.msra.mxu0 0
      %2387 = vmatpush.bf16.msra.mxu0 0
      %2388 = vmatpush.bf16.msra.mxu0 0
      %2389 = vmatpush.bf16.msra.mxu0 0
      %2390 = vmatpush.bf16.msra.mxu0 %v2381
      %2391 = vmatpush.bf16.msra.mxu0 %v2380
      %2392 = vmatmul.bf16.gmra.mxu0 %v2136
      %v2393 = vpop.f32.mrf.mxu0
      %v2394 = vadd.f32 %v2370, %v2393
      %v2395 = vpop.f32.mrf.mxu0
      %v2396 = vadd.f32 %v2370, %v2395
      %2397 = vdwg.mxu0
      %v2398 = vpack.c.bf16 %v2324, %v2322
      %v2399 = vpack.c.bf16 %v2360, %v2358
      %v2401 = vsel %vm1175, %v2398, 0
      %v2404 = vsel %vm1175, %v2399, 0
      %2406 = vmatpush.bf16.xpose.msra.mxu0 0
      %2407 = vmatpush.bf16.xpose.msra.mxu0 0
      %2408 = vmatpush.bf16.xpose.msra.mxu0 0
      %2409 = vmatpush.bf16.xpose.msra.mxu0 0
      %2410 = vmatpush.bf16.xpose.msra.mxu0 0
      %2411 = vmatpush.bf16.xpose.msra.mxu0 0
      %2412 = vmatpush.bf16.xpose.msra.mxu0 0
      %2413 = vmatpush.bf16.xpose.msra.mxu0 %v2404
      %2414 = vmatmul.bf16.gmra.mxu0 %v2401
      %v2415 = vpop.f32.mrf.mxu0
      %v2416 = vadd.f32 0.0, %v2415
      %v2417 = vpop.f32.mrf.mxu0
      %v2418 = vadd.f32 0.0, %v2417
      %2419 = vdwg.mxu0
      %v2420 = vsel %vm1196, %v2416, -inf
      %2421 = vmax.xlane.f32.xlu0 %v2420
      %v2422 = vpop.xlane.xlu0 %2421
      %v2423 = vsel %vm1196, %v2418, -inf
      %2424 = vmax.xlane.f32.xlu0 %v2423
      %v2425 = vpop.xlane.xlu0 %2424
      %v2426 = vsub.f32 %v2416, %v2422
      %v2427 = vsub.f32 %v2418, %v2425
      %v2428 = vmul.f32 %v2426, 1.442695
      %v2429 = vpow.pop %v2428
      %v2430 = vmul.f32 %v2427, 1.442695
      %v2431 = vpow.pop %v2430
      %v2432 = vsel %vm1196, %v2429, 0.0
      %2433 = vadd.xlane.f32.xlu0 %v2432
      %v2434 = vpop.xlane.xlu0 %2433
      %v2435 = vsel %vm1196, %v2431, 0.0
      %2436 = vadd.xlane.f32.xlu0 %v2435
      %v2437 = vpop.xlane.xlu0 %2436
      %v2438 = vrcp.pop %v2434
      %v2439 = vrcp.pop %v2437
      %v2440 = vmul.f32 %v2429, %v2438
      %v2441 = vmul.f32 %v2431, %v2439
      %v2442 = vpack.c.bf16 %v2441, %v2440
      %v2443 = vpack.c.bf16 %v2396, %v2394
      %v2445 = vsel %vm1196, %v2442, 0
      %2447 = vmatpush.bf16.msra.mxu0 0
      %2448 = vmatpush.bf16.msra.mxu0 0
      %2449 = vmatpush.bf16.msra.mxu0 0
      %2450 = vmatpush.bf16.msra.mxu0 0
      %2451 = vmatpush.bf16.msra.mxu0 0
      %2452 = vmatpush.bf16.msra.mxu0 0
      %2453 = vmatpush.bf16.msra.mxu0 0
      %2454 = vmatpush.bf16.msra.mxu0 %v2443
      %2455 = vmatmul.bf16.gmra.mxu0 %v2445
      %v2456 = vpop.f32.mrf.mxu0
      %v2457 = vadd.f32 0.0, %v2456
      %v2458 = vpop.f32.mrf.mxu0
      %v2459 = vadd.f32 0.0, %v2458
      %2460 = vdwg.mxu0
      %v2461 = vpack.c.bf16 %v2459, %v2457
      %s2462 = scalar_lea.vmem %s23, 20
      %v2463 = vld [vmem:[%s2462] sm:$0xf]
      %v2465 = vsel %vm1175, %v2461, 0
      %v2468 = vsel %vm1417, %v2463, 0
      %2470 = vmatpush.bf16.msra.mxu0 0
      %2471 = vmatpush.bf16.msra.mxu0 0
      %2472 = vmatpush.bf16.msra.mxu0 0
      %2473 = vmatpush.bf16.msra.mxu0 0
      %2474 = vmatpush.bf16.msra.mxu0 0
      %2475 = vmatpush.bf16.msra.mxu0 0
      %2476 = vmatpush.bf16.msra.mxu0 0
      %2477 = vmatpush.bf16.msra.mxu0 %v2468
      %2478 = vmatmul.bf16.gmra.mxu0 %v2465
      %v2479 = vpop.f32.mrf.mxu0
      %v2480 = vadd.f32 0.0, %v2479
      %v2481 = vpop.f32.mrf.mxu0
      %v2482 = vadd.f32 0.0, %v2481
      %2483 = vdwg.mxu0
      %v2485 = vsel %vm1175, %v2287, 0
      %v2488 = vsel %vm1417, %v2289, 0
      %2490 = vmatpush.bf16.msra.mxu0 0
      %2491 = vmatpush.bf16.msra.mxu0 0
      %2492 = vmatpush.bf16.msra.mxu0 0
      %2493 = vmatpush.bf16.msra.mxu0 0
      %2494 = vmatpush.bf16.msra.mxu0 0
      %2495 = vmatpush.bf16.msra.mxu0 0
      %2496 = vmatpush.bf16.msra.mxu0 0
      %2497 = vmatpush.bf16.msra.mxu0 %v2488
      %2498 = vmatmul.bf16.gmra.mxu0 %v2485
      %v2499 = vpop.f32.mrf.mxu0
      %v2500 = vadd.f32 %v2480, %v2499
      %v2501 = vpop.f32.mrf.mxu0
      %v2502 = vadd.f32 %v2482, %v2501
      %2503 = vdwg.mxu0
      %s2504 = scalar_lea.vmem %s11, 96
      %v2505 = vld [vmem:[%s2504] sm:$0xf]
      %v2506 = vld [vmem:[%s2504 + $0x4] sm:$0xf]
      %v2507 = vld [vmem:[%s2504 + $0x8] sm:$0xf]
      %v2508 = vld [vmem:[%s2504 + $0xc] sm:$0xf]
      %s2509 = scalar_lea.vmem %s13, 6
      %v2510 = vld [vmem:[%s2509] sm:$0x1]
      %v2512 = vperm.slane %v2510, 0
      %v2518 = vunpack.c.l.b16 %v2505
      %v2519 = vunpack.c.l.b16 %v2506
      %v2520 = vunpack.c.l.b16 %v2507
      %v2521 = vunpack.c.l.b16 %v2508
      %v2522 = vpack.c.b16 %v2519, %v2518
      %v2523 = vpack.c.b16 %v2521, %v2520
      %2526 = vmatpush.bf16.msra.mxu0 0
      %2527 = vmatpush.bf16.msra.mxu0 0
      %2528 = vmatpush.bf16.msra.mxu0 0
      %2529 = vmatpush.bf16.msra.mxu0 0
      %2530 = vmatpush.bf16.msra.mxu0 0
      %2531 = vmatpush.bf16.msra.mxu0 0
      %2532 = vmatpush.bf16.msra.mxu0 %v2523
      %2533 = vmatpush.bf16.msra.mxu0 %v2522
      %2534 = vmatmul.bf16.gmra.mxu0 %v2136
      %v2535 = vpop.f32.mrf.mxu0
      %v2536 = vadd.f32 %v2512, %v2535
      %v2537 = vpop.f32.mrf.mxu0
      %v2538 = vadd.f32 %v2512, %v2537
      %2539 = vdwg.mxu0
      %s2540 = scalar_lea.vmem %s15, 96
      %v2541 = vld [vmem:[%s2540] sm:$0xf]
      %v2542 = vld [vmem:[%s2540 + $0x4] sm:$0xf]
      %v2543 = vld [vmem:[%s2540 + $0x8] sm:$0xf]
      %v2544 = vld [vmem:[%s2540 + $0xc] sm:$0xf]
      %s2545 = scalar_lea.vmem %s17, 6
      %v2546 = vld [vmem:[%s2545] sm:$0x1]
      %v2548 = vperm.slane %v2546, 0
      %v2554 = vunpack.c.l.b16 %v2541
      %v2555 = vunpack.c.l.b16 %v2542
      %v2556 = vunpack.c.l.b16 %v2543
      %v2557 = vunpack.c.l.b16 %v2544
      %v2558 = vpack.c.b16 %v2555, %v2554
      %v2559 = vpack.c.b16 %v2557, %v2556
      %2562 = vmatpush.bf16.msra.mxu0 0
      %2563 = vmatpush.bf16.msra.mxu0 0
      %2564 = vmatpush.bf16.msra.mxu0 0
      %2565 = vmatpush.bf16.msra.mxu0 0
      %2566 = vmatpush.bf16.msra.mxu0 0
      %2567 = vmatpush.bf16.msra.mxu0 0
      %2568 = vmatpush.bf16.msra.mxu0 %v2559
      %2569 = vmatpush.bf16.msra.mxu0 %v2558
      %2570 = vmatmul.bf16.gmra.mxu0 %v2136
      %v2571 = vpop.f32.mrf.mxu0
      %v2572 = vadd.f32 %v2548, %v2571
      %v2573 = vpop.f32.mrf.mxu0
      %v2574 = vadd.f32 %v2548, %v2573
      %2575 = vdwg.mxu0
      %s2576 = scalar_lea.vmem %s19, 96
      %v2577 = vld [vmem:[%s2576] sm:$0xf]
      %v2578 = vld [vmem:[%s2576 + $0x4] sm:$0xf]
      %v2579 = vld [vmem:[%s2576 + $0x8] sm:$0xf]
      %v2580 = vld [vmem:[%s2576 + $0xc] sm:$0xf]
      %s2581 = scalar_lea.vmem %s21, 6
      %v2582 = vld [vmem:[%s2581] sm:$0x1]
      %v2584 = vperm.slane %v2582, 0
      %v2590 = vunpack.c.l.b16 %v2577
      %v2591 = vunpack.c.l.b16 %v2578
      %v2592 = vunpack.c.l.b16 %v2579
      %v2593 = vunpack.c.l.b16 %v2580
      %v2594 = vpack.c.b16 %v2591, %v2590
      %v2595 = vpack.c.b16 %v2593, %v2592
      %2598 = vmatpush.bf16.msra.mxu0 0
      %2599 = vmatpush.bf16.msra.mxu0 0
      %2600 = vmatpush.bf16.msra.mxu0 0
      %2601 = vmatpush.bf16.msra.mxu0 0
      %2602 = vmatpush.bf16.msra.mxu0 0
      %2603 = vmatpush.bf16.msra.mxu0 0
      %2604 = vmatpush.bf16.msra.mxu0 %v2595
      %2605 = vmatpush.bf16.msra.mxu0 %v2594
      %2606 = vmatmul.bf16.gmra.mxu0 %v2136
      %v2607 = vpop.f32.mrf.mxu0
      %v2608 = vadd.f32 %v2584, %v2607
      %v2609 = vpop.f32.mrf.mxu0
      %v2610 = vadd.f32 %v2584, %v2609
      %2611 = vdwg.mxu0
      %v2612 = vpack.c.bf16 %v2538, %v2536
      %v2613 = vpack.c.bf16 %v2574, %v2572
      %v2615 = vsel %vm1175, %v2612, 0
      %v2618 = vsel %vm1175, %v2613, 0
      %2620 = vmatpush.bf16.xpose.msra.mxu0 0
      %2621 = vmatpush.bf16.xpose.msra.mxu0 0
      %2622 = vmatpush.bf16.xpose.msra.mxu0 0
      %2623 = vmatpush.bf16.xpose.msra.mxu0 0
      %2624 = vmatpush.bf16.xpose.msra.mxu0 0
      %2625 = vmatpush.bf16.xpose.msra.mxu0 0
      %2626 = vmatpush.bf16.xpose.msra.mxu0 0
      %2627 = vmatpush.bf16.xpose.msra.mxu0 %v2618
      %2628 = vmatmul.bf16.gmra.mxu0 %v2615
      %v2629 = vpop.f32.mrf.mxu0
      %v2630 = vadd.f32 0.0, %v2629
      %v2631 = vpop.f32.mrf.mxu0
      %v2632 = vadd.f32 0.0, %v2631
      %2633 = vdwg.mxu0
      %v2634 = vsel %vm1196, %v2630, -inf
      %2635 = vmax.xlane.f32.xlu0 %v2634
      %v2636 = vpop.xlane.xlu0 %2635
      %v2637 = vsel %vm1196, %v2632, -inf
      %2638 = vmax.xlane.f32.xlu0 %v2637
      %v2639 = vpop.xlane.xlu0 %2638
      %v2640 = vsub.f32 %v2630, %v2636
      %v2641 = vsub.f32 %v2632, %v2639
      %v2642 = vmul.f32 %v2640, 1.442695
      %v2643 = vpow.pop %v2642
      %v2644 = vmul.f32 %v2641, 1.442695
      %v2645 = vpow.pop %v2644
      %v2646 = vsel %vm1196, %v2643, 0.0
      %2647 = vadd.xlane.f32.xlu0 %v2646
      %v2648 = vpop.xlane.xlu0 %2647
      %v2649 = vsel %vm1196, %v2645, 0.0
      %2650 = vadd.xlane.f32.xlu0 %v2649
      %v2651 = vpop.xlane.xlu0 %2650
      %v2652 = vrcp.pop %v2648
      %v2653 = vrcp.pop %v2651
      %v2654 = vmul.f32 %v2643, %v2652
      %v2655 = vmul.f32 %v2645, %v2653
      %v2656 = vpack.c.bf16 %v2655, %v2654
      %v2657 = vpack.c.bf16 %v2610, %v2608
      %v2659 = vsel %vm1196, %v2656, 0
      %2661 = vmatpush.bf16.msra.mxu0 0
      %2662 = vmatpush.bf16.msra.mxu0 0
      %2663 = vmatpush.bf16.msra.mxu0 0
      %2664 = vmatpush.bf16.msra.mxu0 0
      %2665 = vmatpush.bf16.msra.mxu0 0
      %2666 = vmatpush.bf16.msra.mxu0 0
      %2667 = vmatpush.bf16.msra.mxu0 0
      %2668 = vmatpush.bf16.msra.mxu0 %v2657
      %2669 = vmatmul.bf16.gmra.mxu0 %v2659
      %v2670 = vpop.f32.mrf.mxu0
      %v2671 = vadd.f32 0.0, %v2670
      %v2672 = vpop.f32.mrf.mxu0
      %v2673 = vadd.f32 0.0, %v2672
      %2674 = vdwg.mxu0
      %v2675 = vpack.c.bf16 %v2673, %v2671
      %s2676 = scalar_lea.vmem %s23, 24
      %v2677 = vld [vmem:[%s2676] sm:$0xf]
      %v2679 = vsel %vm1175, %v2675, 0
      %v2682 = vsel %vm1417, %v2677, 0
      %2684 = vmatpush.bf16.msra.mxu0 0
      %2685 = vmatpush.bf16.msra.mxu0 0
      %2686 = vmatpush.bf16.msra.mxu0 0
      %2687 = vmatpush.bf16.msra.mxu0 0
      %2688 = vmatpush.bf16.msra.mxu0 0
      %2689 = vmatpush.bf16.msra.mxu0 0
      %2690 = vmatpush.bf16.msra.mxu0 0
      %2691 = vmatpush.bf16.msra.mxu0 %v2682
      %2692 = vmatmul.bf16.gmra.mxu0 %v2679
      %v2693 = vpop.f32.mrf.mxu0
      %v2694 = vadd.f32 0.0, %v2693
      %v2695 = vpop.f32.mrf.mxu0
      %v2696 = vadd.f32 0.0, %v2695
      %2697 = vdwg.mxu0
      %v2698 = vadd.f32 %v2500, %v2694
      %v2699 = vadd.f32 %v2502, %v2696
      %s2700 = scalar_lea.vmem %s11, 112
      %v2701 = vld [vmem:[%s2700] sm:$0xf]
      %v2702 = vld [vmem:[%s2700 + $0x4] sm:$0xf]
      %v2703 = vld [vmem:[%s2700 + $0x8] sm:$0xf]
      %v2704 = vld [vmem:[%s2700 + $0xc] sm:$0xf]
      %s2705 = scalar_lea.vmem %s13, 7
      %v2706 = vld [vmem:[%s2705] sm:$0x1]
      %v2708 = vperm.slane %v2706, 0
      %v2714 = vunpack.c.l.b16 %v2701
      %v2715 = vunpack.c.l.b16 %v2702
      %v2716 = vunpack.c.l.b16 %v2703
      %v2717 = vunpack.c.l.b16 %v2704
      %v2718 = vpack.c.b16 %v2715, %v2714
      %v2719 = vpack.c.b16 %v2717, %v2716
      %2722 = vmatpush.bf16.msra.mxu0 0
      %2723 = vmatpush.bf16.msra.mxu0 0
      %2724 = vmatpush.bf16.msra.mxu0 0
      %2725 = vmatpush.bf16.msra.mxu0 0
      %2726 = vmatpush.bf16.msra.mxu0 0
      %2727 = vmatpush.bf16.msra.mxu0 0
      %2728 = vmatpush.bf16.msra.mxu0 %v2719
      %2729 = vmatpush.bf16.msra.mxu0 %v2718
      %2730 = vmatmul.bf16.gmra.mxu0 %v2136
      %v2731 = vpop.f32.mrf.mxu0
      %v2732 = vadd.f32 %v2708, %v2731
      %v2733 = vpop.f32.mrf.mxu0
      %v2734 = vadd.f32 %v2708, %v2733
      %2735 = vdwg.mxu0
      %s2736 = scalar_lea.vmem %s15, 112
      %v2737 = vld [vmem:[%s2736] sm:$0xf]
      %v2738 = vld [vmem:[%s2736 + $0x4] sm:$0xf]
      %v2739 = vld [vmem:[%s2736 + $0x8] sm:$0xf]
      %v2740 = vld [vmem:[%s2736 + $0xc] sm:$0xf]
      %s2741 = scalar_lea.vmem %s17, 7
      %v2742 = vld [vmem:[%s2741] sm:$0x1]
      %v2744 = vperm.slane %v2742, 0
      %v2750 = vunpack.c.l.b16 %v2737
      %v2751 = vunpack.c.l.b16 %v2738
      %v2752 = vunpack.c.l.b16 %v2739
      %v2753 = vunpack.c.l.b16 %v2740
      %v2754 = vpack.c.b16 %v2751, %v2750
      %v2755 = vpack.c.b16 %v2753, %v2752
      %2758 = vmatpush.bf16.msra.mxu0 0
      %2759 = vmatpush.bf16.msra.mxu0 0
      %2760 = vmatpush.bf16.msra.mxu0 0
      %2761 = vmatpush.bf16.msra.mxu0 0
      %2762 = vmatpush.bf16.msra.mxu0 0
      %2763 = vmatpush.bf16.msra.mxu0 0
      %2764 = vmatpush.bf16.msra.mxu0 %v2755
      %2765 = vmatpush.bf16.msra.mxu0 %v2754
      %2766 = vmatmul.bf16.gmra.mxu0 %v2136
      %v2767 = vpop.f32.mrf.mxu0
      %v2768 = vadd.f32 %v2744, %v2767
      %v2769 = vpop.f32.mrf.mxu0
      %v2770 = vadd.f32 %v2744, %v2769
      %2771 = vdwg.mxu0
      %s2772 = scalar_lea.vmem %s19, 112
      %v2773 = vld [vmem:[%s2772] sm:$0xf]
      %v2774 = vld [vmem:[%s2772 + $0x4] sm:$0xf]
      %v2775 = vld [vmem:[%s2772 + $0x8] sm:$0xf]
      %v2776 = vld [vmem:[%s2772 + $0xc] sm:$0xf]
      %s2777 = scalar_lea.vmem %s21, 7
      %v2778 = vld [vmem:[%s2777] sm:$0x1]
      %v2780 = vperm.slane %v2778, 0
      %v2786 = vunpack.c.l.b16 %v2773
      %v2787 = vunpack.c.l.b16 %v2774
      %v2788 = vunpack.c.l.b16 %v2775
      %v2789 = vunpack.c.l.b16 %v2776
      %v2790 = vpack.c.b16 %v2787, %v2786
      %v2791 = vpack.c.b16 %v2789, %v2788
      %2794 = vmatpush.bf16.msra.mxu0 0
      %2795 = vmatpush.bf16.msra.mxu0 0
      %2796 = vmatpush.bf16.msra.mxu0 0
      %2797 = vmatpush.bf16.msra.mxu0 0
      %2798 = vmatpush.bf16.msra.mxu0 0
      %2799 = vmatpush.bf16.msra.mxu0 0
      %2800 = vmatpush.bf16.msra.mxu0 %v2791
      %2801 = vmatpush.bf16.msra.mxu0 %v2790
      %2802 = vmatmul.bf16.gmra.mxu0 %v2136
      %v2803 = vpop.f32.mrf.mxu0
      %v2804 = vadd.f32 %v2780, %v2803
      %v2805 = vpop.f32.mrf.mxu0
      %v2806 = vadd.f32 %v2780, %v2805
      %2807 = vdwg.mxu0
      %v2808 = vpack.c.bf16 %v2734, %v2732
      %v2809 = vpack.c.bf16 %v2770, %v2768
      %v2811 = vsel %vm1175, %v2808, 0
      %v2814 = vsel %vm1175, %v2809, 0
      %2816 = vmatpush.bf16.xpose.msra.mxu0 0
      %2817 = vmatpush.bf16.xpose.msra.mxu0 0
      %2818 = vmatpush.bf16.xpose.msra.mxu0 0
      %2819 = vmatpush.bf16.xpose.msra.mxu0 0
      %2820 = vmatpush.bf16.xpose.msra.mxu0 0
      %2821 = vmatpush.bf16.xpose.msra.mxu0 0
      %2822 = vmatpush.bf16.xpose.msra.mxu0 0
      %2823 = vmatpush.bf16.xpose.msra.mxu0 %v2814
      %2824 = vmatmul.bf16.gmra.mxu0 %v2811
      %v2825 = vpop.f32.mrf.mxu0
      %v2826 = vadd.f32 0.0, %v2825
      %v2827 = vpop.f32.mrf.mxu0
      %v2828 = vadd.f32 0.0, %v2827
      %2829 = vdwg.mxu0
      %v2830 = vsel %vm1196, %v2826, -inf
      %2831 = vmax.xlane.f32.xlu0 %v2830
      %v2832 = vpop.xlane.xlu0 %2831
      %v2833 = vsel %vm1196, %v2828, -inf
      %2834 = vmax.xlane.f32.xlu0 %v2833
      %v2835 = vpop.xlane.xlu0 %2834
      %v2836 = vsub.f32 %v2826, %v2832
      %v2837 = vsub.f32 %v2828, %v2835
      %v2838 = vmul.f32 %v2836, 1.442695
      %v2839 = vpow.pop %v2838
      %v2840 = vmul.f32 %v2837, 1.442695
      %v2841 = vpow.pop %v2840
      %v2842 = vsel %vm1196, %v2839, 0.0
      %2843 = vadd.xlane.f32.xlu0 %v2842
      %v2844 = vpop.xlane.xlu0 %2843
      %v2845 = vsel %vm1196, %v2841, 0.0
      %2846 = vadd.xlane.f32.xlu0 %v2845
      %v2847 = vpop.xlane.xlu0 %2846
      %v2848 = vrcp.pop %v2844
      %v2849 = vrcp.pop %v2847
      %v2850 = vmul.f32 %v2839, %v2848
      %v2851 = vmul.f32 %v2841, %v2849
      %v2852 = vpack.c.bf16 %v2851, %v2850
      %v2853 = vpack.c.bf16 %v2806, %v2804
      %v2855 = vsel %vm1196, %v2852, 0
      %2857 = vmatpush.bf16.msra.mxu0 0
      %2858 = vmatpush.bf16.msra.mxu0 0
      %2859 = vmatpush.bf16.msra.mxu0 0
      %2860 = vmatpush.bf16.msra.mxu0 0
      %2861 = vmatpush.bf16.msra.mxu0 0
      %2862 = vmatpush.bf16.msra.mxu0 0
      %2863 = vmatpush.bf16.msra.mxu0 0
      %2864 = vmatpush.bf16.msra.mxu0 %v2853
      %2865 = vmatmul.bf16.gmra.mxu0 %v2855
      %v2866 = vpop.f32.mrf.mxu0
      %v2867 = vadd.f32 0.0, %v2866
      %v2868 = vpop.f32.mrf.mxu0
      %v2869 = vadd.f32 0.0, %v2868
      %2870 = vdwg.mxu0
      %v2871 = vpack.c.bf16 %v2869, %v2867
      %s2872 = scalar_lea.vmem %s23, 28
      %v2873 = vld [vmem:[%s2872] sm:$0xf]
      %v2875 = vsel %vm1175, %v2871, 0
      %v2878 = vsel %vm1417, %v2873, 0
      %2880 = vmatpush.bf16.msra.mxu0 0
      %2881 = vmatpush.bf16.msra.mxu0 0
      %2882 = vmatpush.bf16.msra.mxu0 0
      %2883 = vmatpush.bf16.msra.mxu0 0
      %2884 = vmatpush.bf16.msra.mxu0 0
      %2885 = vmatpush.bf16.msra.mxu0 0
      %2886 = vmatpush.bf16.msra.mxu0 0
      %2887 = vmatpush.bf16.msra.mxu0 %v2878
      %2888 = vmatmul.bf16.gmra.mxu0 %v2875
      %v2889 = vpop.f32.mrf.mxu0
      %v2890 = vadd.f32 0.0, %v2889
      %v2891 = vpop.f32.mrf.mxu0
      %v2892 = vadd.f32 0.0, %v2891
      %2893 = vdwg.mxu0
      %v2894 = vadd.f32 %v2698, %v2890
      %v2895 = vadd.f32 %v2699, %v2892
      %v2896 = vadd.f32 %v2052, %v2894
      %v2897 = vadd.f32 %v2053, %v2895
      %s2898 = scalar_lea.vmem %s25, 1
      %v2899 = vld [vmem:[%s2898] sm:$0x1]
      %v2901 = vperm.slane %v2899, 0
      %v2903 = vadd.f32 %v2896, %v2901
      %v2904 = vadd.f32 %v2897, %v2901
      %s2905 = scalar_lea.vmem %s27, 1
      %v2906 = vld [vmem:[%s2905] sm:$0x1]
      %s2907 = scalar_lea.vmem %s29, 1
      %v2908 = vld [vmem:[%s2907] sm:$0x1]
      %v2909 = vsel %vm1005, %v2903, 0.0
      %2910 = vadd.xlane.f32.xlu0 %v2909
      %v2911 = vpop.xlane.xlu0 %2910
      %v2912 = vsel %vm1005, %v2904, 0.0
      %2913 = vadd.xlane.f32.xlu0 %v2912
      %v2914 = vpop.xlane.xlu0 %2913
      %v2915 = vmul.f32 %v2911, %v1018
      %v2916 = vmul.f32 %v2914, %v1018
      %v2917 = vsub.f32 %v2903, %v2915
      %v2918 = vsub.f32 %v2904, %v2916
      %v2919 = vmul.f32 %v2917, %v2917
      %v2920 = vmul.f32 %v2918, %v2918
      %v2921 = vsel %vm1005, %v2919, 0.0
      %2922 = vadd.xlane.f32.xlu0 %v2921
      %v2923 = vpop.xlane.xlu0 %2922
      %v2924 = vsel %vm1005, %v2920, 0.0
      %2925 = vadd.xlane.f32.xlu0 %v2924
      %v2926 = vpop.xlane.xlu0 %2925
      %v2927 = vmul.f32 %v2923, %v1018
      %v2928 = vmul.f32 %v2926, %v1018
      %v2929 = vadd.f32 %v2927, 1e-05
      %v2930 = vadd.f32 %v2928, 1e-05
      %v2931 = vrsqrt.pop %v2929
      %v2932 = vmul.f32 %v2931, %v2929
      %v2933 = vmul.f32 %v2932, %v2931
      %v2934 = vmul.f32 0.5, %v2933
      %v2935 = vsub.f32 1.5, %v2934
      %v2936 = vmul.f32 %v2931, %v2935
      %vm2937 = vweird.f32 %v2929
      %vm2938 = vweird.f32 %v2931
      %vm2939 = vmor %vm2937, %vm2938
      %v2940 = vsel %vm2939, %v2931, %v2936
      %v2941 = vrsqrt.pop %v2930
      %v2942 = vmul.f32 %v2941, %v2930
      %v2943 = vmul.f32 %v2942, %v2941
      %v2944 = vmul.f32 0.5, %v2943
      %v2945 = vsub.f32 1.5, %v2944
      %v2946 = vmul.f32 %v2941, %v2945
      %vm2947 = vweird.f32 %v2930
      %vm2948 = vweird.f32 %v2941
      %vm2949 = vmor %vm2947, %vm2948
      %v2950 = vsel %vm2949, %v2941, %v2946
      %v2951 = vmul.f32 %v2917, %v2940
      %v2952 = vmul.f32 %v2918, %v2950
      %v2954 = vperm.slane %v2906, 0
      %v2956 = vmul.f32 %v2951, %v2954
      %v2957 = vmul.f32 %v2952, %v2954
      %v2959 = vperm.slane %v2908, 0
      %v2961 = vadd.f32 %v2956, %v2959
      %v2962 = vadd.f32 %v2957, %v2959
      %v2963 = vpack.c.bf16 %v2962, %v2961
      %s2964 = scalar_lea.vmem %s31, 16
      %v2965 = vld [vmem:[%s2964] sm:$0xf]
      %v2966 = vld [vmem:[%s2964 + $0x4] sm:$0xf]
      %v2967 = vld [vmem:[%s2964 + $0x8] sm:$0xf]
      %v2968 = vld [vmem:[%s2964 + $0xc] sm:$0xf]
      %s2969 = scalar_lea.vmem %s33, 1
      %v2970 = vld [vmem:[%s2969] sm:$0x1]
      %v2972 = vperm.slane %v2970, 0
      %v2978 = vunpack.c.l.b16 %v2965
      %v2979 = vunpack.c.l.b16 %v2966
      %v2980 = vunpack.c.l.b16 %v2967
      %v2981 = vunpack.c.l.b16 %v2968
      %v2982 = vpack.c.b16 %v2979, %v2978
      %v2983 = vpack.c.b16 %v2981, %v2980
      %v2987 = vsel %vm1005, %v2963, 0
      %2989 = vmatpush.bf16.msra.mxu0 0
      %2990 = vmatpush.bf16.msra.mxu0 0
      %2991 = vmatpush.bf16.msra.mxu0 0
      %2992 = vmatpush.bf16.msra.mxu0 0
      %2993 = vmatpush.bf16.msra.mxu0 0
      %2994 = vmatpush.bf16.msra.mxu0 0
      %2995 = vmatpush.bf16.msra.mxu0 %v2983
      %2996 = vmatpush.bf16.msra.mxu0 %v2982
      %2997 = vmatmul.bf16.gmra.mxu0 %v2987
      %v2998 = vpop.f32.mrf.mxu0
      %v2999 = vadd.f32 %v2972, %v2998
      %v3000 = vpop.f32.mrf.mxu0
      %v3001 = vadd.f32 %v2972, %v3000
      %3002 = vdwg.mxu0
      %v3003 = vmul.f32 %v2999, 0.5
      %v3004 = vmul.f32 %v3001, 0.5
      %v3005 = vmul.f32 %v2999, 0.044715
      %v3006 = vmul.f32 %v3001, 0.044715
      %v3007 = vmul.f32 %v3005, %v2999
      %v3008 = vmul.f32 %v3006, %v3001
      %v3009 = vmul.f32 %v3007, %v2999
      %v3010 = vmul.f32 %v3008, %v3001
      %v3011 = vadd.f32 %v2999, %v3009
      %v3012 = vadd.f32 %v3001, %v3010
      %v3013 = vmul.f32 %v3011, 0.7978846
      %v3014 = vmul.f32 %v3012, 0.7978846
      %v3015 = vtanh.pop %v3013
      %v3016 = vtanh.pop %v3014
      %v3017 = vadd.f32 %v3015, 1.0
      %v3018 = vadd.f32 %v3016, 1.0
      %v3019 = vmul.f32 %v3003, %v3017
      %v3020 = vmul.f32 %v3004, %v3018
      %v3021 = vpack.c.bf16 %v3020, %v3019
      %s3022 = scalar_lea.vmem %s35, 64
      %v3023 = vld [vmem:[%s3022] sm:$0xf]
      %v3024 = vld [vmem:[%s3022 + $0x4] sm:$0xf]
      %v3025 = vld [vmem:[%s3022 + $0x8] sm:$0xf]
      %v3026 = vld [vmem:[%s3022 + $0xc] sm:$0xf]
      %v3027 = vld [vmem:[%s3022 + $0x10] sm:$0xf]
      %v3028 = vld [vmem:[%s3022 + $0x14] sm:$0xf]
      %v3029 = vld [vmem:[%s3022 + $0x18] sm:$0xf]
      %v3030 = vld [vmem:[%s3022 + $0x1c] sm:$0xf]
      %v3031 = vld [vmem:[%s3022 + $0x20] sm:$0xf]
      %v3032 = vld [vmem:[%s3022 + $0x24] sm:$0xf]
      %v3033 = vld [vmem:[%s3022 + $0x28] sm:$0xf]
      %v3034 = vld [vmem:[%s3022 + $0x2c] sm:$0xf]
      %v3035 = vld [vmem:[%s3022 + $0x30] sm:$0xf]
      %v3036 = vld [vmem:[%s3022 + $0x34] sm:$0xf]
      %v3037 = vld [vmem:[%s3022 + $0x38] sm:$0xf]
      %v3038 = vld [vmem:[%s3022 + $0x3c] sm:$0xf]
      %v3055 = vunpack.c.l.b16 %v3023
      %v3056 = vunpack.c.l.b16 %v3024
      %v3057 = vunpack.c.l.b16 %v3025
      %v3058 = vunpack.c.l.b16 %v3026
      %v3059 = vunpack.c.l.b16 %v3027
      %v3060 = vunpack.c.l.b16 %v3028
      %v3061 = vunpack.c.l.b16 %v3029
      %v3062 = vunpack.c.l.b16 %v3030
      %v3063 = vunpack.c.l.b16 %v3031
      %v3064 = vunpack.c.l.b16 %v3032
      %v3065 = vunpack.c.l.b16 %v3033
      %v3066 = vunpack.c.l.b16 %v3034
      %v3067 = vunpack.c.l.b16 %v3035
      %v3068 = vunpack.c.l.b16 %v3036
      %v3069 = vunpack.c.l.b16 %v3037
      %v3070 = vunpack.c.l.b16 %v3038
      %v3071 = vpack.c.b16 %v3056, %v3055
      %v3072 = vpack.c.b16 %v3058, %v3057
      %v3073 = vpack.c.b16 %v3060, %v3059
      %v3074 = vpack.c.b16 %v3062, %v3061
      %v3075 = vpack.c.b16 %v3064, %v3063
      %v3076 = vpack.c.b16 %v3066, %v3065
      %v3077 = vpack.c.b16 %v3068, %v3067
      %v3078 = vpack.c.b16 %v3070, %v3069
      %3087 = vmatpush.bf16.msra.mxu0 %v3078
      %3088 = vmatpush.bf16.msra.mxu0 %v3077
      %3089 = vmatpush.bf16.msra.mxu0 %v3076
      %3090 = vmatpush.bf16.msra.mxu0 %v3075
      %3091 = vmatpush.bf16.msra.mxu0 %v3074
      %3092 = vmatpush.bf16.msra.mxu0 %v3073
      %3093 = vmatpush.bf16.msra.mxu0 %v3072
      %3094 = vmatpush.bf16.msra.mxu0 %v3071
      %3095 = vmatmul.bf16.gmra.mxu0 %v3021
      %v3096 = vpop.f32.mrf.mxu0
      %v3097 = vadd.f32 0.0, %v3096
      %v3098 = vpop.f32.mrf.mxu0
      %v3099 = vadd.f32 0.0, %v3098
      %3100 = vdwg.mxu0
      %v3101 = vadd.f32 %v2903, %v3097
      %v3102 = vadd.f32 %v2904, %v3099
      %s3103 = scalar_lea.vmem %s37, 1
      %v3104 = vld [vmem:[%s3103] sm:$0x1]
      %v3106 = vperm.slane %v3104, 0
      %v3108 = vadd.f32 %v3101, %v3106
      %v3109 = vadd.f32 %v3102, %v3106
      %v3110 = vpack.c.bf16 %v3109, %v3108
      %v3111 = vld [vmem:[%s39] sm:$0xf]
      %v3112 = vld [vmem:[%s39 + $0x4] sm:$0xf]
      %v3113 = vld [vmem:[%s39 + $0x8] sm:$0xf]
      %v3114 = vld [vmem:[%s39 + $0xc] sm:$0xf]
      %v3119 = vunpack.c.l.b16 %v3111
      %v3120 = vunpack.c.l.b16 %v3112
      %v3121 = vunpack.c.l.b16 %v3113
      %v3122 = vunpack.c.l.b16 %v3114
      %v3123 = vpack.c.b16 %v3120, %v3119
      %v3124 = vpack.c.b16 %v3122, %v3121
      %v3128 = vsel %vm1005, %v3110, 0
      %3130 = vmatpush.bf16.msra.mxu0 0
      %3131 = vmatpush.bf16.msra.mxu0 0
      %3132 = vmatpush.bf16.msra.mxu0 0
      %3133 = vmatpush.bf16.msra.mxu0 0
      %3134 = vmatpush.bf16.msra.mxu0 0
      %3135 = vmatpush.bf16.msra.mxu0 0
      %3136 = vmatpush.bf16.msra.mxu0 %v3124
      %3137 = vmatpush.bf16.msra.mxu0 %v3123
      %3138 = vmatmul.bf16.gmra.mxu0 %v3128
      %v3139 = vpop.f32.mrf.mxu0
      %v3140 = vadd.f32 0.0, %v3139
      %v3141 = vpop.f32.mrf.mxu0
      %v3142 = vadd.f32 0.0, %v3141
      %3143 = vdwg.mxu0
      %v3144 = vld [vmem:[%s41] sm:$0x1]
      %v3145 = vld [vmem:[%s43] sm:$0x1]
      %v3146 = vsel %vm1005, %v3140, 0.0
      %3147 = vadd.xlane.f32.xlu0 %v3146
      %v3148 = vpop.xlane.xlu0 %3147
      %v3149 = vsel %vm1005, %v3142, 0.0
      %3150 = vadd.xlane.f32.xlu0 %v3149
      %v3151 = vpop.xlane.xlu0 %3150
      %v3152 = vmul.f32 %v3148, %v1018
      %v3153 = vmul.f32 %v3151, %v1018
      %v3154 = vsub.f32 %v3140, %v3152
      %v3155 = vsub.f32 %v3142, %v3153
      %v3156 = vmul.f32 %v3154, %v3154
      %v3157 = vmul.f32 %v3155, %v3155
      %v3158 = vsel %vm1005, %v3156, 0.0
      %3159 = vadd.xlane.f32.xlu0 %v3158
      %v3160 = vpop.xlane.xlu0 %3159
      %v3161 = vsel %vm1005, %v3157, 0.0
      %3162 = vadd.xlane.f32.xlu0 %v3161
      %v3163 = vpop.xlane.xlu0 %3162
      %v3164 = vmul.f32 %v3160, %v1018
      %v3165 = vmul.f32 %v3163, %v1018
      %v3166 = vadd.f32 %v3164, 1e-06
      %v3167 = vadd.f32 %v3165, 1e-06
      %v3168 = vrsqrt.pop %v3166
      %v3169 = vmul.f32 %v3168, %v3166
      %v3170 = vmul.f32 %v3169, %v3168
      %v3171 = vmul.f32 0.5, %v3170
      %v3172 = vsub.f32 1.5, %v3171
      %v3173 = vmul.f32 %v3168, %v3172
      %vm3174 = vweird.f32 %v3166
      %vm3175 = vweird.f32 %v3168
      %vm3176 = vmor %vm3174, %vm3175
      %v3177 = vsel %vm3176, %v3168, %v3173
      %v3178 = vrsqrt.pop %v3167
      %v3179 = vmul.f32 %v3178, %v3167
      %v3180 = vmul.f32 %v3179, %v3178
      %v3181 = vmul.f32 0.5, %v3180
      %v3182 = vsub.f32 1.5, %v3181
      %v3183 = vmul.f32 %v3178, %v3182
      %vm3184 = vweird.f32 %v3167
      %vm3185 = vweird.f32 %v3178
      %vm3186 = vmor %vm3184, %vm3185
      %v3187 = vsel %vm3186, %v3178, %v3183
      %v3188 = vmul.f32 %v3154, %v3177
      %v3189 = vmul.f32 %v3155, %v3187
      %v3191 = vperm.slane %v3144, 0
      %v3193 = vmul.f32 %v3188, %v3191
      %v3194 = vmul.f32 %v3189, %v3191
      %v3196 = vperm.slane %v3145, 0
      %v3198 = vadd.f32 %v3193, %v3196
      %v3199 = vadd.f32 %v3194, %v3196
      %v3200 = vpack.c.bf16 %v3199, %v3198
      %v3201 = vld [vmem:[%s45] sm:$0xf]
      %v3202 = vld [vmem:[%s45 + $0x4] sm:$0xf]
      %v3205 = vunpack.c.l.b16 %v3201
      %v3206 = vunpack.c.l.b16 %v3202
      %v3207 = vpack.c.b16 %v3206, %v3205
      %v3209 = vsel %vm1196, %v3207, 0
      %3211 = vmatpush.bf16.msra.mxu0 0
      %3212 = vmatpush.bf16.msra.mxu0 0
      %3213 = vmatpush.bf16.msra.mxu0 0
      %3214 = vmatpush.bf16.msra.mxu0 0
      %3215 = vmatpush.bf16.msra.mxu0 0
      %3216 = vmatpush.bf16.msra.mxu0 0
      %3217 = vmatpush.bf16.msra.mxu0 0
      %3218 = vmatpush.bf16.msra.mxu0 %v3200
      %3219 = vmatmul.bf16.gmra.mxu0 %v3209
      %v3220 = vpop.f32.mrf.mxu0
      %v3221 = vadd.f32 0.0, %v3220
      %v3222 = vpop.f32.mrf.mxu0
      %v3223 = vadd.f32 0.0, %v3222
      %3224 = vdwg.mxu0
      %v3225 = vpack.c.bf16 %v3223, %v3221
      %v3226 = vld [vmem:[%s47] sm:$0xf]
      %v3227 = vld [vmem:[%s47 + $0x4] sm:$0xf]
      %v3228 = vld [vmem:[%s47 + $0x8] sm:$0xf]
      %v3229 = vld [vmem:[%s47 + $0xc] sm:$0xf]
      %s3230 = scalar_lea.vmem %s45, 8
      %v3231 = vld [vmem:[%s3230] sm:$0xf]
      %v3232 = vld [vmem:[%s3230 + $0x4] sm:$0xf]
      %v3235 = vunpack.c.l.b16 %v3231
      %v3236 = vunpack.c.l.b16 %v3232
      %v3237 = vpack.c.b16 %v3236, %v3235
      %v3239 = vsel %vm1196, %v3237, 0
      %3241 = vmatpush.bf16.msra.mxu0 0
      %3242 = vmatpush.bf16.msra.mxu0 0
      %3243 = vmatpush.bf16.msra.mxu0 0
      %3244 = vmatpush.bf16.msra.mxu0 0
      %3245 = vmatpush.bf16.msra.mxu0 0
      %3246 = vmatpush.bf16.msra.mxu0 0
      %3247 = vmatpush.bf16.msra.mxu0 0
      %3248 = vmatpush.bf16.msra.mxu0 %v3200
      %3249 = vmatmul.bf16.gmra.mxu0 %v3239
      %v3250 = vpop.f32.mrf.mxu0
      %v3251 = vadd.f32 0.0, %v3250
      %v3252 = vpop.f32.mrf.mxu0
      %v3253 = vadd.f32 0.0, %v3252
      %3254 = vdwg.mxu0
      %v3255 = vpack.c.bf16 %v3253, %v3251
      %s3256 = scalar_lea.vmem %s47, 16
      %v3257 = vld [vmem:[%s3256] sm:$0xf]
      %v3258 = vld [vmem:[%s3256 + $0x4] sm:$0xf]
      %v3259 = vld [vmem:[%s3256 + $0x8] sm:$0xf]
      %v3260 = vld [vmem:[%s3256 + $0xc] sm:$0xf]
      %v3265 = vunpack.c.l.b16 %v3257
      %v3266 = vunpack.c.l.b16 %v3258
      %v3267 = vunpack.c.l.b16 %v3259
      %v3268 = vunpack.c.l.b16 %v3260
      %v3269 = vpack.c.b16 %v3266, %v3265
      %v3270 = vpack.c.b16 %v3268, %v3267
      %v3274 = vsel %vm1005, %v3255, 0
      %3276 = vmatpush.bf16.msra.mxu0 0
      %3277 = vmatpush.bf16.msra.mxu0 0
      %3278 = vmatpush.bf16.msra.mxu0 0
      %3279 = vmatpush.bf16.msra.mxu0 0
      %3280 = vmatpush.bf16.msra.mxu0 0
      %3281 = vmatpush.bf16.msra.mxu0 0
      %3282 = vmatpush.bf16.msra.mxu0 %v3270
      %3283 = vmatpush.bf16.msra.mxu0 %v3269
      %3284 = vmatmul.bf16.gmra.mxu0 %v3274
      %v3285 = vpop.f32.mrf.mxu0
      %v3286 = vadd.f32 0.0, %v3285
      %v3287 = vpop.f32.mrf.mxu0
      %v3288 = vadd.f32 0.0, %v3287
      %3289 = vdwg.mxu0
      %v3294 = vunpack.c.l.b16 %v3226
      %v3295 = vunpack.c.l.b16 %v3227
      %v3296 = vunpack.c.l.b16 %v3228
      %v3297 = vunpack.c.l.b16 %v3229
      %v3298 = vpack.c.b16 %v3295, %v3294
      %v3299 = vpack.c.b16 %v3297, %v3296
      %v3303 = vsel %vm1005, %v3225, 0
      %3305 = vmatpush.bf16.msra.mxu0 0
      %3306 = vmatpush.bf16.msra.mxu0 0
      %3307 = vmatpush.bf16.msra.mxu0 0
      %3308 = vmatpush.bf16.msra.mxu0 0
      %3309 = vmatpush.bf16.msra.mxu0 0
      %3310 = vmatpush.bf16.msra.mxu0 0
      %3311 = vmatpush.bf16.msra.mxu0 %v3299
      %3312 = vmatpush.bf16.msra.mxu0 %v3298
      %3313 = vmatmul.bf16.gmra.mxu0 %v3303
      %v3314 = vpop.f32.mrf.mxu0
      %v3315 = vadd.f32 %v3286, %v3314
      %v3316 = vpop.f32.mrf.mxu0
      %v3317 = vadd.f32 %v3288, %v3316
      %3318 = vdwg.mxu0
      %s3319 = scalar_lea.vmem %s45, 16
      %v3320 = vld [vmem:[%s3319] sm:$0xf]
      %v3321 = vld [vmem:[%s3319 + $0x4] sm:$0xf]
      %v3324 = vunpack.c.l.b16 %v3320
      %v3325 = vunpack.c.l.b16 %v3321
      %v3326 = vpack.c.b16 %v3325, %v3324
      %v3328 = vsel %vm1196, %v3326, 0
      %3330 = vmatpush.bf16.msra.mxu0 0
      %3331 = vmatpush.bf16.msra.mxu0 0
      %3332 = vmatpush.bf16.msra.mxu0 0
      %3333 = vmatpush.bf16.msra.mxu0 0
      %3334 = vmatpush.bf16.msra.mxu0 0
      %3335 = vmatpush.bf16.msra.mxu0 0
      %3336 = vmatpush.bf16.msra.mxu0 0
      %3337 = vmatpush.bf16.msra.mxu0 %v3200
      %3338 = vmatmul.bf16.gmra.mxu0 %v3328
      %v3339 = vpop.f32.mrf.mxu0
      %v3340 = vadd.f32 0.0, %v3339
      %v3341 = vpop.f32.mrf.mxu0
      %v3342 = vadd.f32 0.0, %v3341
      %3343 = vdwg.mxu0
      %v3344 = vpack.c.bf16 %v3342, %v3340
      %s3345 = scalar_lea.vmem %s47, 32
      %v3346 = vld [vmem:[%s3345] sm:$0xf]
      %v3347 = vld [vmem:[%s3345 + $0x4] sm:$0xf]
      %v3348 = vld [vmem:[%s3345 + $0x8] sm:$0xf]
      %v3349 = vld [vmem:[%s3345 + $0xc] sm:$0xf]
      %v3354 = vunpack.c.l.b16 %v3346
      %v3355 = vunpack.c.l.b16 %v3347
      %v3356 = vunpack.c.l.b16 %v3348
      %v3357 = vunpack.c.l.b16 %v3349
      %v3358 = vpack.c.b16 %v3355, %v3354
      %v3359 = vpack.c.b16 %v3357, %v3356
      %v3363 = vsel %vm1005, %v3344, 0
      %3365 = vmatpush.bf16.msra.mxu0 0
      %3366 = vmatpush.bf16.msra.mxu0 0
      %3367 = vmatpush.bf16.msra.mxu0 0
      %3368 = vmatpush.bf16.msra.mxu0 0
      %3369 = vmatpush.bf16.msra.mxu0 0
      %3370 = vmatpush.bf16.msra.mxu0 0
      %3371 = vmatpush.bf16.msra.mxu0 %v3359
      %3372 = vmatpush.bf16.msra.mxu0 %v3358
      %3373 = vmatmul.bf16.gmra.mxu0 %v3363
      %v3374 = vpop.f32.mrf.mxu0
      %v3375 = vadd.f32 0.0, %v3374
      %v3376 = vpop.f32.mrf.mxu0
      %v3377 = vadd.f32 0.0, %v3376
      %3378 = vdwg.mxu0
      %v3379 = vadd.f32 %v3315, %v3375
      %v3380 = vadd.f32 %v3317, %v3377
      %s3381 = scalar_lea.vmem %s45, 24
      %v3382 = vld [vmem:[%s3381] sm:$0xf]
      %v3383 = vld [vmem:[%s3381 + $0x4] sm:$0xf]
      %v3386 = vunpack.c.l.b16 %v3382
      %v3387 = vunpack.c.l.b16 %v3383
      %v3388 = vpack.c.b16 %v3387, %v3386
      %v3390 = vsel %vm1196, %v3388, 0
      %3392 = vmatpush.bf16.msra.mxu0 0
      %3393 = vmatpush.bf16.msra.mxu0 0
      %3394 = vmatpush.bf16.msra.mxu0 0
      %3395 = vmatpush.bf16.msra.mxu0 0
      %3396 = vmatpush.bf16.msra.mxu0 0
      %3397 = vmatpush.bf16.msra.mxu0 0
      %3398 = vmatpush.bf16.msra.mxu0 0
      %3399 = vmatpush.bf16.msra.mxu0 %v3200
      %3400 = vmatmul.bf16.gmra.mxu0 %v3390
      %v3401 = vpop.f32.mrf.mxu0
      %v3402 = vadd.f32 0.0, %v3401
      %v3403 = vpop.f32.mrf.mxu0
      %v3404 = vadd.f32 0.0, %v3403
      %3405 = vdwg.mxu0
      %v3406 = vpack.c.bf16 %v3404, %v3402
      %s3407 = scalar_lea.vmem %s47, 48
      %v3408 = vld [vmem:[%s3407] sm:$0xf]
      %v3409 = vld [vmem:[%s3407 + $0x4] sm:$0xf]
      %v3410 = vld [vmem:[%s3407 + $0x8] sm:$0xf]
      %v3411 = vld [vmem:[%s3407 + $0xc] sm:$0xf]
      %v3416 = vunpack.c.l.b16 %v3408
      %v3417 = vunpack.c.l.b16 %v3409
      %v3418 = vunpack.c.l.b16 %v3410
      %v3419 = vunpack.c.l.b16 %v3411
      %v3420 = vpack.c.b16 %v3417, %v3416
      %v3421 = vpack.c.b16 %v3419, %v3418
      %v3425 = vsel %vm1005, %v3406, 0
      %3427 = vmatpush.bf16.msra.mxu0 0
      %3428 = vmatpush.bf16.msra.mxu0 0
      %3429 = vmatpush.bf16.msra.mxu0 0
      %3430 = vmatpush.bf16.msra.mxu0 0
      %3431 = vmatpush.bf16.msra.mxu0 0
      %3432 = vmatpush.bf16.msra.mxu0 0
      %3433 = vmatpush.bf16.msra.mxu0 %v3421
      %3434 = vmatpush.bf16.msra.mxu0 %v3420
      %3435 = vmatmul.bf16.gmra.mxu0 %v3425
      %v3436 = vpop.f32.mrf.mxu0
      %v3437 = vadd.f32 0.0, %v3436
      %v3438 = vpop.f32.mrf.mxu0
      %v3439 = vadd.f32 0.0, %v3438
      %3440 = vdwg.mxu0
      %v3441 = vadd.f32 %v3379, %v3437
      %v3442 = vadd.f32 %v3380, %v3439
      %s3443 = scalar_lea.vmem %s45, 32
      %v3444 = vld [vmem:[%s3443] sm:$0xf]
      %v3445 = vld [vmem:[%s3443 + $0x4] sm:$0xf]
      %v3448 = vunpack.c.l.b16 %v3444
      %v3449 = vunpack.c.l.b16 %v3445
      %v3450 = vpack.c.b16 %v3449, %v3448
      %v3452 = vsel %vm1196, %v3450, 0
      %3454 = vmatpush.bf16.msra.mxu0 0
      %3455 = vmatpush.bf16.msra.mxu0 0
      %3456 = vmatpush.bf16.msra.mxu0 0
      %3457 = vmatpush.bf16.msra.mxu0 0
      %3458 = vmatpush.bf16.msra.mxu0 0
      %3459 = vmatpush.bf16.msra.mxu0 0
      %3460 = vmatpush.bf16.msra.mxu0 0
      %3461 = vmatpush.bf16.msra.mxu0 %v3200
      %3462 = vmatmul.bf16.gmra.mxu0 %v3452
      %v3463 = vpop.f32.mrf.mxu0
      %v3464 = vadd.f32 0.0, %v3463
      %v3465 = vpop.f32.mrf.mxu0
      %v3466 = vadd.f32 0.0, %v3465
      %3467 = vdwg.mxu0
      %v3468 = vpack.c.bf16 %v3466, %v3464
      %s3469 = scalar_lea.vmem %s47, 64
      %v3470 = vld [vmem:[%s3469] sm:$0xf]
      %v3471 = vld [vmem:[%s3469 + $0x4] sm:$0xf]
      %v3472 = vld [vmem:[%s3469 + $0x8] sm:$0xf]
      %v3473 = vld [vmem:[%s3469 + $0xc] sm:$0xf]
      %v3478 = vunpack.c.l.b16 %v3470
      %v3479 = vunpack.c.l.b16 %v3471
      %v3480 = vunpack.c.l.b16 %v3472
      %v3481 = vunpack.c.l.b16 %v3473
      %v3482 = vpack.c.b16 %v3479, %v3478
      %v3483 = vpack.c.b16 %v3481, %v3480
      %v3487 = vsel %vm1005, %v3468, 0
      %3489 = vmatpush.bf16.msra.mxu0 0
      %3490 = vmatpush.bf16.msra.mxu0 0
      %3491 = vmatpush.bf16.msra.mxu0 0
      %3492 = vmatpush.bf16.msra.mxu0 0
      %3493 = vmatpush.bf16.msra.mxu0 0
      %3494 = vmatpush.bf16.msra.mxu0 0
      %3495 = vmatpush.bf16.msra.mxu0 %v3483
      %3496 = vmatpush.bf16.msra.mxu0 %v3482
      %3497 = vmatmul.bf16.gmra.mxu0 %v3487
      %v3498 = vpop.f32.mrf.mxu0
      %v3499 = vadd.f32 0.0, %v3498
      %v3500 = vpop.f32.mrf.mxu0
      %v3501 = vadd.f32 0.0, %v3500
      %3502 = vdwg.mxu0
      %v3503 = vadd.f32 %v3441, %v3499
      %v3504 = vadd.f32 %v3442, %v3501
      %s3505 = scalar_lea.vmem %s45, 40
      %v3506 = vld [vmem:[%s3505] sm:$0xf]
      %v3507 = vld [vmem:[%s3505 + $0x4] sm:$0xf]
      %v3510 = vunpack.c.l.b16 %v3506
      %v3511 = vunpack.c.l.b16 %v3507
      %v3512 = vpack.c.b16 %v3511, %v3510
      %v3514 = vsel %vm1196, %v3512, 0
      %3516 = vmatpush.bf16.msra.mxu0 0
      %3517 = vmatpush.bf16.msra.mxu0 0
      %3518 = vmatpush.bf16.msra.mxu0 0
      %3519 = vmatpush.bf16.msra.mxu0 0
      %3520 = vmatpush.bf16.msra.mxu0 0
      %3521 = vmatpush.bf16.msra.mxu0 0
      %3522 = vmatpush.bf16.msra.mxu0 0
      %3523 = vmatpush.bf16.msra.mxu0 %v3200
      %3524 = vmatmul.bf16.gmra.mxu0 %v3514
      %v3525 = vpop.f32.mrf.mxu0
      %v3526 = vadd.f32 0.0, %v3525
      %v3527 = vpop.f32.mrf.mxu0
      %v3528 = vadd.f32 0.0, %v3527
      %3529 = vdwg.mxu0
      %v3530 = vpack.c.bf16 %v3528, %v3526
      %s3531 = scalar_lea.vmem %s47, 80
      %v3532 = vld [vmem:[%s3531] sm:$0xf]
      %v3533 = vld [vmem:[%s3531 + $0x4] sm:$0xf]
      %v3534 = vld [vmem:[%s3531 + $0x8] sm:$0xf]
      %v3535 = vld [vmem:[%s3531 + $0xc] sm:$0xf]
      %v3540 = vunpack.c.l.b16 %v3532
      %v3541 = vunpack.c.l.b16 %v3533
      %v3542 = vunpack.c.l.b16 %v3534
      %v3543 = vunpack.c.l.b16 %v3535
      %v3544 = vpack.c.b16 %v3541, %v3540
      %v3545 = vpack.c.b16 %v3543, %v3542
      %v3549 = vsel %vm1005, %v3530, 0
      %3551 = vmatpush.bf16.msra.mxu0 0
      %3552 = vmatpush.bf16.msra.mxu0 0
      %3553 = vmatpush.bf16.msra.mxu0 0
      %3554 = vmatpush.bf16.msra.mxu0 0
      %3555 = vmatpush.bf16.msra.mxu0 0
      %3556 = vmatpush.bf16.msra.mxu0 0
      %3557 = vmatpush.bf16.msra.mxu0 %v3545
      %3558 = vmatpush.bf16.msra.mxu0 %v3544
      %3559 = vmatmul.bf16.gmra.mxu0 %v3549
      %v3560 = vpop.f32.mrf.mxu0
      %v3561 = vadd.f32 0.0, %v3560
      %v3562 = vpop.f32.mrf.mxu0
      %v3563 = vadd.f32 0.0, %v3562
      %3564 = vdwg.mxu0
      %v3565 = vadd.f32 %v3503, %v3561
      %v3566 = vadd.f32 %v3504, %v3563
      %s3567 = scalar_lea.vmem %s45, 48
      %v3568 = vld [vmem:[%s3567] sm:$0xf]
      %v3569 = vld [vmem:[%s3567 + $0x4] sm:$0xf]
      %v3572 = vunpack.c.l.b16 %v3568
      %v3573 = vunpack.c.l.b16 %v3569
      %v3574 = vpack.c.b16 %v3573, %v3572
      %v3576 = vsel %vm1196, %v3574, 0
      %3578 = vmatpush.bf16.msra.mxu0 0
      %3579 = vmatpush.bf16.msra.mxu0 0
      %3580 = vmatpush.bf16.msra.mxu0 0
      %3581 = vmatpush.bf16.msra.mxu0 0
      %3582 = vmatpush.bf16.msra.mxu0 0
      %3583 = vmatpush.bf16.msra.mxu0 0
      %3584 = vmatpush.bf16.msra.mxu0 0
      %3585 = vmatpush.bf16.msra.mxu0 %v3200
      %3586 = vmatmul.bf16.gmra.mxu0 %v3576
      %v3587 = vpop.f32.mrf.mxu0
      %v3588 = vadd.f32 0.0, %v3587
      %v3589 = vpop.f32.mrf.mxu0
      %v3590 = vadd.f32 0.0, %v3589
      %3591 = vdwg.mxu0
      %v3592 = vpack.c.bf16 %v3590, %v3588
      %s3593 = scalar_lea.vmem %s47, 96
      %v3594 = vld [vmem:[%s3593] sm:$0xf]
      %v3595 = vld [vmem:[%s3593 + $0x4] sm:$0xf]
      %v3596 = vld [vmem:[%s3593 + $0x8] sm:$0xf]
      %v3597 = vld [vmem:[%s3593 + $0xc] sm:$0xf]
      %v3602 = vunpack.c.l.b16 %v3594
      %v3603 = vunpack.c.l.b16 %v3595
      %v3604 = vunpack.c.l.b16 %v3596
      %v3605 = vunpack.c.l.b16 %v3597
      %v3606 = vpack.c.b16 %v3603, %v3602
      %v3607 = vpack.c.b16 %v3605, %v3604
      %v3611 = vsel %vm1005, %v3592, 0
      %3613 = vmatpush.bf16.msra.mxu0 0
      %3614 = vmatpush.bf16.msra.mxu0 0
      %3615 = vmatpush.bf16.msra.mxu0 0
      %3616 = vmatpush.bf16.msra.mxu0 0
      %3617 = vmatpush.bf16.msra.mxu0 0
      %3618 = vmatpush.bf16.msra.mxu0 0
      %3619 = vmatpush.bf16.msra.mxu0 %v3607
      %3620 = vmatpush.bf16.msra.mxu0 %v3606
      %3621 = vmatmul.bf16.gmra.mxu0 %v3611
      %v3622 = vpop.f32.mrf.mxu0
      %v3623 = vadd.f32 0.0, %v3622
      %v3624 = vpop.f32.mrf.mxu0
      %v3625 = vadd.f32 0.0, %v3624
      %3626 = vdwg.mxu0
      %v3627 = vadd.f32 %v3565, %v3623
      %v3628 = vadd.f32 %v3566, %v3625
      %s3629 = scalar_lea.vmem %s45, 56
      %v3630 = vld [vmem:[%s3629] sm:$0xf]
      %v3631 = vld [vmem:[%s3629 + $0x4] sm:$0xf]
      %v3634 = vunpack.c.l.b16 %v3630
      %v3635 = vunpack.c.l.b16 %v3631
      %v3636 = vpack.c.b16 %v3635, %v3634
      %v3638 = vsel %vm1196, %v3636, 0
      %3640 = vmatpush.bf16.msra.mxu0 0
      %3641 = vmatpush.bf16.msra.mxu0 0
      %3642 = vmatpush.bf16.msra.mxu0 0
      %3643 = vmatpush.bf16.msra.mxu0 0
      %3644 = vmatpush.bf16.msra.mxu0 0
      %3645 = vmatpush.bf16.msra.mxu0 0
      %3646 = vmatpush.bf16.msra.mxu0 0
      %3647 = vmatpush.bf16.msra.mxu0 %v3200
      %3648 = vmatmul.bf16.gmra.mxu0 %v3638
      %v3649 = vpop.f32.mrf.mxu0
      %v3650 = vadd.f32 0.0, %v3649
      %v3651 = vpop.f32.mrf.mxu0
      %v3652 = vadd.f32 0.0, %v3651
      %3653 = vdwg.mxu0
      %v3654 = vpack.c.bf16 %v3652, %v3650
      %s3655 = scalar_lea.vmem %s47, 112
      %v3656 = vld [vmem:[%s3655] sm:$0xf]
      %v3657 = vld [vmem:[%s3655 + $0x4] sm:$0xf]
      %v3658 = vld [vmem:[%s3655 + $0x8] sm:$0xf]
      %v3659 = vld [vmem:[%s3655 + $0xc] sm:$0xf]
      %v3664 = vunpack.c.l.b16 %v3656
      %v3665 = vunpack.c.l.b16 %v3657
      %v3666 = vunpack.c.l.b16 %v3658
      %v3667 = vunpack.c.l.b16 %v3659
      %v3668 = vpack.c.b16 %v3665, %v3664
      %v3669 = vpack.c.b16 %v3667, %v3666
      %v3673 = vsel %vm1005, %v3654, 0
      %3675 = vmatpush.bf16.msra.mxu0 0
      %3676 = vmatpush.bf16.msra.mxu0 0
      %3677 = vmatpush.bf16.msra.mxu0 0
      %3678 = vmatpush.bf16.msra.mxu0 0
      %3679 = vmatpush.bf16.msra.mxu0 0
      %3680 = vmatpush.bf16.msra.mxu0 0
      %3681 = vmatpush.bf16.msra.mxu0 %v3669
      %3682 = vmatpush.bf16.msra.mxu0 %v3668
      %3683 = vmatmul.bf16.gmra.mxu0 %v3673
      %v3684 = vpop.f32.mrf.mxu0
      %v3685 = vadd.f32 0.0, %v3684
      %v3686 = vpop.f32.mrf.mxu0
      %v3687 = vadd.f32 0.0, %v3686
      %3688 = vdwg.mxu0
      %v3689 = vadd.f32 %v3627, %v3685
      %v3690 = vadd.f32 %v3628, %v3687
      %s3691 = scalar_lea.vmem %s45, 64
      %v3692 = vld [vmem:[%s3691] sm:$0xf]
      %v3693 = vld [vmem:[%s3691 + $0x4] sm:$0xf]
      %v3696 = vunpack.c.l.b16 %v3692
      %v3697 = vunpack.c.l.b16 %v3693
      %v3698 = vpack.c.b16 %v3697, %v3696
      %v3700 = vsel %vm1196, %v3698, 0
      %3702 = vmatpush.bf16.msra.mxu0 0
      %3703 = vmatpush.bf16.msra.mxu0 0
      %3704 = vmatpush.bf16.msra.mxu0 0
      %3705 = vmatpush.bf16.msra.mxu0 0
      %3706 = vmatpush.bf16.msra.mxu0 0
      %3707 = vmatpush.bf16.msra.mxu0 0
      %3708 = vmatpush.bf16.msra.mxu0 0
      %3709 = vmatpush.bf16.msra.mxu0 %v3200
      %3710 = vmatmul.bf16.gmra.mxu0 %v3700
      %v3711 = vpop.f32.mrf.mxu0
      %v3712 = vadd.f32 0.0, %v3711
      %v3713 = vpop.f32.mrf.mxu0
      %v3714 = vadd.f32 0.0, %v3713
      %3715 = vdwg.mxu0
      %v3716 = vpack.c.bf16 %v3714, %v3712
      %s3717 = scalar_lea.vmem %s47, 128
      %v3718 = vld [vmem:[%s3717] sm:$0xf]
      %v3719 = vld [vmem:[%s3717 + $0x4] sm:$0xf]
      %v3720 = vld [vmem:[%s3717 + $0x8] sm:$0xf]
      %v3721 = vld [vmem:[%s3717 + $0xc] sm:$0xf]
      %v3726 = vunpack.c.l.b16 %v3718
      %v3727 = vunpack.c.l.b16 %v3719
      %v3728 = vunpack.c.l.b16 %v3720
      %v3729 = vunpack.c.l.b16 %v3721
      %v3730 = vpack.c.b16 %v3727, %v3726
      %v3731 = vpack.c.b16 %v3729, %v3728
      %v3735 = vsel %vm1005, %v3716, 0
      %3737 = vmatpush.bf16.msra.mxu0 0
      %3738 = vmatpush.bf16.msra.mxu0 0
      %3739 = vmatpush.bf16.msra.mxu0 0
      %3740 = vmatpush.bf16.msra.mxu0 0
      %3741 = vmatpush.bf16.msra.mxu0 0
      %3742 = vmatpush.bf16.msra.mxu0 0
      %3743 = vmatpush.bf16.msra.mxu0 %v3731
      %3744 = vmatpush.bf16.msra.mxu0 %v3730
      %3745 = vmatmul.bf16.gmra.mxu0 %v3735
      %v3746 = vpop.f32.mrf.mxu0
      %v3747 = vadd.f32 0.0, %v3746
      %v3748 = vpop.f32.mrf.mxu0
      %v3749 = vadd.f32 0.0, %v3748
      %3750 = vdwg.mxu0
      %v3751 = vadd.f32 %v3689, %v3747
      %v3752 = vadd.f32 %v3690, %v3749
      %v3753 = vld [vmem:[%s49] sm:$0x1]
      %v3754 = vld [vmem:[%s51] sm:$0x1]
      %v3755 = vsel %vm1005, %v3751, 0.0
      %3756 = vadd.xlane.f32.xlu0 %v3755
      %v3757 = vpop.xlane.xlu0 %3756
      %v3758 = vsel %vm1005, %v3752, 0.0
      %3759 = vadd.xlane.f32.xlu0 %v3758
      %v3760 = vpop.xlane.xlu0 %3759
      %v3761 = vmul.f32 %v3757, %v1018
      %v3762 = vmul.f32 %v3760, %v1018
      %v3763 = vsub.f32 %v3751, %v3761
      %v3764 = vsub.f32 %v3752, %v3762
      %v3765 = vmul.f32 %v3763, %v3763
      %v3766 = vmul.f32 %v3764, %v3764
      %v3767 = vsel %vm1005, %v3765, 0.0
      %3768 = vadd.xlane.f32.xlu0 %v3767
      %v3769 = vpop.xlane.xlu0 %3768
      %v3770 = vsel %vm1005, %v3766, 0.0
      %3771 = vadd.xlane.f32.xlu0 %v3770
      %v3772 = vpop.xlane.xlu0 %3771
      %v3773 = vmul.f32 %v3769, %v1018
      %v3774 = vmul.f32 %v3772, %v1018
      %v3775 = vadd.f32 %v3773, 1e-06
      %v3776 = vadd.f32 %v3774, 1e-06
      %v3777 = vrsqrt.pop %v3775
      %v3778 = vmul.f32 %v3777, %v3775
      %v3779 = vmul.f32 %v3778, %v3777
      %v3780 = vmul.f32 0.5, %v3779
      %v3781 = vsub.f32 1.5, %v3780
      %v3782 = vmul.f32 %v3777, %v3781
      %vm3783 = vweird.f32 %v3775
      %vm3784 = vweird.f32 %v3777
      %vm3785 = vmor %vm3783, %vm3784
      %v3786 = vsel %vm3785, %v3777, %v3782
      %v3787 = vrsqrt.pop %v3776
      %v3788 = vmul.f32 %v3787, %v3776
      %v3789 = vmul.f32 %v3788, %v3787
      %v3790 = vmul.f32 0.5, %v3789
      %v3791 = vsub.f32 1.5, %v3790
      %v3792 = vmul.f32 %v3787, %v3791
      %vm3793 = vweird.f32 %v3776
      %vm3794 = vweird.f32 %v3787
      %vm3795 = vmor %vm3793, %vm3794
      %v3796 = vsel %vm3795, %v3787, %v3792
      %v3797 = vmul.f32 %v3763, %v3786
      %v3798 = vmul.f32 %v3764, %v3796
      %v3800 = vperm.slane %v3753, 0
      %v3802 = vmul.f32 %v3797, %v3800
      %v3803 = vmul.f32 %v3798, %v3800
      %v3805 = vperm.slane %v3754, 0
      %v3807 = vadd.f32 %v3802, %v3805
      %v3808 = vadd.f32 %v3803, %v3805
      %v3809 = vpack.c.bf16 %v3808, %v3807
      %v3810 = vld [vmem:[%s53] sm:$0xf]
      %v3811 = vld [vmem:[%s53 + $0x4] sm:$0xf]
      %v3812 = vld [vmem:[%s53 + $0x8] sm:$0xf]
      %v3813 = vld [vmem:[%s53 + $0xc] sm:$0xf]
      %v3814 = vld [vmem:[%s55] sm:$0x1]
      %v3816 = vperm.slane %v3814, 0
      %v3822 = vunpack.c.l.b16 %v3810
      %v3823 = vunpack.c.l.b16 %v3811
      %v3824 = vunpack.c.l.b16 %v3812
      %v3825 = vunpack.c.l.b16 %v3813
      %v3826 = vpack.c.b16 %v3823, %v3822
      %v3827 = vpack.c.b16 %v3825, %v3824
      %v3831 = vsel %vm1005, %v3809, 0
      %3833 = vmatpush.bf16.msra.mxu0 0
      %3834 = vmatpush.bf16.msra.mxu0 0
      %3835 = vmatpush.bf16.msra.mxu0 0
      %3836 = vmatpush.bf16.msra.mxu0 0
      %3837 = vmatpush.bf16.msra.mxu0 0
      %3838 = vmatpush.bf16.msra.mxu0 0
      %3839 = vmatpush.bf16.msra.mxu0 %v3827
      %3840 = vmatpush.bf16.msra.mxu0 %v3826
      %3841 = vmatmul.bf16.gmra.mxu0 %v3831
      %v3842 = vpop.f32.mrf.mxu0
      %v3843 = vadd.f32 %v3816, %v3842
      %v3844 = vpop.f32.mrf.mxu0
      %v3845 = vadd.f32 %v3816, %v3844
      %3846 = vdwg.mxu0
      %v3847 = vmul.f32 %v3843, 0.5
      %v3848 = vmul.f32 %v3845, 0.5
      %v3849 = vmul.f32 %v3843, 0.044715
      %v3850 = vmul.f32 %v3845, 0.044715
      %v3851 = vmul.f32 %v3849, %v3843
      %v3852 = vmul.f32 %v3850, %v3845
      %v3853 = vmul.f32 %v3851, %v3843
      %v3854 = vmul.f32 %v3852, %v3845
      %v3855 = vadd.f32 %v3843, %v3853
      %v3856 = vadd.f32 %v3845, %v3854
      %v3857 = vmul.f32 %v3855, 0.7978846
      %v3858 = vmul.f32 %v3856, 0.7978846
      %v3859 = vtanh.pop %v3857
      %v3860 = vtanh.pop %v3858
      %v3861 = vadd.f32 %v3859, 1.0
      %v3862 = vadd.f32 %v3860, 1.0
      %v3863 = vmul.f32 %v3847, %v3861
      %v3864 = vmul.f32 %v3848, %v3862
      %v3865 = vpack.c.bf16 %v3864, %v3863
      %s3866 = scalar_lea.vmem %s53, 16
      %v3867 = vld [vmem:[%s3866] sm:$0xf]
      %v3868 = vld [vmem:[%s3866 + $0x4] sm:$0xf]
      %v3869 = vld [vmem:[%s3866 + $0x8] sm:$0xf]
      %v3870 = vld [vmem:[%s3866 + $0xc] sm:$0xf]
      %s3871 = scalar_lea.vmem %s55, 1
      %v3872 = vld [vmem:[%s3871] sm:$0x1]
      %v3874 = vperm.slane %v3872, 0
      %v3880 = vunpack.c.l.b16 %v3867
      %v3881 = vunpack.c.l.b16 %v3868
      %v3882 = vunpack.c.l.b16 %v3869
      %v3883 = vunpack.c.l.b16 %v3870
      %v3884 = vpack.c.b16 %v3881, %v3880
      %v3885 = vpack.c.b16 %v3883, %v3882
      %v3889 = vsel %vm1005, %v3865, 0
      %3891 = vmatpush.bf16.msra.mxu0 0
      %3892 = vmatpush.bf16.msra.mxu0 0
      %3893 = vmatpush.bf16.msra.mxu0 0
      %3894 = vmatpush.bf16.msra.mxu0 0
      %3895 = vmatpush.bf16.msra.mxu0 0
      %3896 = vmatpush.bf16.msra.mxu0 0
      %3897 = vmatpush.bf16.msra.mxu0 %v3885
      %3898 = vmatpush.bf16.msra.mxu0 %v3884
      %3899 = vmatmul.bf16.gmra.mxu0 %v3889
      %v3900 = vpop.f32.mrf.mxu0
      %v3901 = vadd.f32 %v3874, %v3900
      %v3902 = vpop.f32.mrf.mxu0
      %v3903 = vadd.f32 %v3874, %v3902
      %3904 = vdwg.mxu0
      %v3905 = vmul.f32 %v3901, 0.5
      %v3906 = vmul.f32 %v3903, 0.5
      %v3907 = vmul.f32 %v3901, 0.044715
      %v3908 = vmul.f32 %v3903, 0.044715
      %v3909 = vmul.f32 %v3907, %v3901
      %v3910 = vmul.f32 %v3908, %v3903
      %v3911 = vmul.f32 %v3909, %v3901
      %v3912 = vmul.f32 %v3910, %v3903
      %v3913 = vadd.f32 %v3901, %v3911
      %v3914 = vadd.f32 %v3903, %v3912
      %v3915 = vmul.f32 %v3913, 0.7978846
      %v3916 = vmul.f32 %v3914, 0.7978846
      %v3917 = vtanh.pop %v3915
      %v3918 = vtanh.pop %v3916
      %v3919 = vadd.f32 %v3917, 1.0
      %v3920 = vadd.f32 %v3918, 1.0
      %v3921 = vmul.f32 %v3905, %v3919
      %v3922 = vmul.f32 %v3906, %v3920
      %v3923 = vpack.c.bf16 %v3922, %v3921
      %v3924 = vld [vmem:[%s57] sm:$0xf]
      %v3925 = vld [vmem:[%s57 + $0x4] sm:$0xf]
      %v3926 = vld [vmem:[%s57 + $0x8] sm:$0xf]
      %v3927 = vld [vmem:[%s57 + $0xc] sm:$0xf]
      %v3928 = vld [vmem:[%s59] sm:$0x1]
      %v3930 = vperm.slane %v3928, 0
      %v3936 = vunpack.c.l.b16 %v3924
      %v3937 = vunpack.c.l.b16 %v3925
      %v3938 = vunpack.c.l.b16 %v3926
      %v3939 = vunpack.c.l.b16 %v3927
      %v3940 = vpack.c.b16 %v3937, %v3936
      %v3941 = vpack.c.b16 %v3939, %v3938
      %v3945 = vsel %vm1005, %v3923, 0
      %3947 = vmatpush.bf16.msra.mxu0 0
      %3948 = vmatpush.bf16.msra.mxu0 0
      %3949 = vmatpush.bf16.msra.mxu0 0
      %3950 = vmatpush.bf16.msra.mxu0 0
      %3951 = vmatpush.bf16.msra.mxu0 0
      %3952 = vmatpush.bf16.msra.mxu0 0
      %3953 = vmatpush.bf16.msra.mxu0 %v3941
      %3954 = vmatpush.bf16.msra.mxu0 %v3940
      %3955 = vmatmul.bf16.gmra.mxu0 %v3945
      %v3956 = vpop.f32.mrf.mxu0
      %v3957 = vadd.f32 %v3930, %v3956
      %v3958 = vpop.f32.mrf.mxu0
      %v3959 = vadd.f32 %v3930, %v3958
      %3960 = vdwg.mxu0
      %vm3961 = vcmask 392192
      %3962 = vst.msk [vmem:[%s930] sm:$0xff] %vm3961, %v3957
      %3963 = vst.msk [vmem:[%s930 + $0x8] sm:$0xff] %vm3961, %v3959
      %p3964 = scmp.lt.s32.totalorder %s72, 1
      %s3965 = scalar_select %p3964, %s72, 1
      %s3966 = smul.addr %s3965, 2
      %s3967 = smul.addr %s3966, 8
      %s3968 = scalar_lea.vmem %s61, %s3967
      // Predicated region
      $region141: #{forward.1} parent=139 // pred_check
        %p3969 = pneg %p725
      $region142: #{forward.1} parent=139 // pred_check_branch
        %3971 = sbr.rel (%p3969) target = $region144
      $region143: #{forward.1} parent=139 // pred_region
        _
      $region144: #{forward.1} parent=139 // pred_fallthru
        _
    $region140: #{forward.1} parent=5 // pred_fallthru
      _
    %p3972 = scmp.le.s32.totalorder 2, %s67
    // Predicated region
    $region145: #{forward.1} parent=5 // pred_check
      %p3973 = pneg %p3972
    $region146: #{forward.1} parent=5 // pred_check_branch
      %3975 = sbr.rel (%p3973) target = $region148
    $region147: #{forward.1} parent=5 // pred_region
      %s3976 = ssub.s32 %s67, 2
      // Predicated region
      $region149: #{forward.1} parent=147 // pred_check
        %p3977 = pneg %p731
      $region150: #{forward.1} parent=147 // pred_check_branch
        %3979 = sbr.rel (%p3977) target = $region152
      $region151: #{forward.1} parent=147 // pred_region
        %p3980 = scmp.lt.s32.totalorder %s73, 1
        %s3981 = scalar_select %p3980, %s73, 1
        %s3982 = smul.addr %s3981, 2
        %s3983 = smul.addr %s3982, 8
        %s3984 = scalar_lea.vmem %s61, %s3983
      $region152: #{forward.1} parent=147 // pred_fallthru
        _
    $region148: #{forward.1} parent=5 // pred_fallthru
      _
  $region6: #{forward.1} parent=0 // loop_footer
    %s71 = sadd.s32 1, %s67
  $region7: #{forward.1} parent=0 // loop_footer_branch
    %66 = sbr.rel target = $region3
  $region8: #{forward.1} parent=0 // loop_exit
    _

</llo_original>
